<compile_context>
chip_gen: v7x
topology: tpu7x:2x2x1
jax: 0.10.0
libtpu: 0.0.40
codegen_flags: <defaults>
</compile_context>

<pallas_src>
import functools

import jax
import jax.numpy as jnp
from jax import lax
from jax.experimental import pallas as pl
from jax.experimental.pallas import tpu as pltpu


# ---------------------------------------------------------------------------
# Fused kernel: one batch element per grid step.
# ---------------------------------------------------------------------------
def _conv_block_mid_kernel(x_ref, col_ref, w1_ref, b1_ref, w2_ref, b2_ref,
                           o_ref, q1_ref, q2_ref, *, hp, wp, cin, cout):
    m = hp * wp

    # Scratch row layout (blocks of `wp` rows), image flattened (h, w) -> h*wp+w:
    #   block 0        : guard (zero; only read under a discarded where branch)
    #   block 1        : top replication row    (== image row 0)
    #   block 2..hp+1  : image rows 0..hp-1
    #   block hp+2     : bottom replication row (== image row hp-1)
    #   block hp+3     : guard (zero)
    def fill_padded(q_ref, row_fn):
        q_ref[...] = jnp.zeros(q_ref.shape, q_ref.dtype)
        for h in range(hp):                                   # static unroll (small hp)
            blk = row_fn(h)                                   # (wp, C)
            q_ref[pl.ds((h + 2) * wp, wp), :] = blk
            if h == 0:
                q_ref[pl.ds(1 * wp, wp), :] = blk             # top edge clamp
            if h == hp - 1:
                q_ref[pl.ds((hp + 2) * wp, wp), :] = blk      # bottom edge clamp

    # 3x3 VALID conv over the H-padded scratch, fused bias + ReLU.
    # W-direction replication pad is handled by the where() edge fix below.
    def conv3x3_relu(q_ref, w_ref, b_ref, n_out):
        c_in = q_ref.shape[-1]
        col = jnp.broadcast_to(col_ref[...], (m, c_in))       # w-index per row
        at_left = col == 0
        at_right = col == wp - 1
        acc = jnp.zeros((m, n_out), jnp.float32) + b_ref[...]
        for ki in range(3):
            base = q_ref[pl.ds((ki + 1) * wp, m), :]          # kj == 1 tap
            minus = q_ref[pl.ds((ki + 1) * wp - 1, m), :]     # kj == 0 tap
            plus = q_ref[pl.ds((ki + 1) * wp + 1, m), :]      # kj == 2 tap
            taps = (jnp.where(at_left, base, minus),          # clamp at w == 0
                    base,
                    jnp.where(at_right, base, plus))          # clamp at w == wp-1
            for kj in range(3):
                acc = acc + jnp.dot(taps[kj], w_ref[ki * 3 + kj],
                                    preferred_element_type=jnp.float32)
        return jnp.maximum(acc, 0.0)

    # ---- MaxPool2d(2): build H-replication-padded flat scratch --------------
    def pooled_row(h):
        pair = jnp.maximum(x_ref[0, h, 0, :, :], x_ref[0, h, 1, :, :])  # H pair
        return jnp.maximum(pair[:, :cin], pair[:, cin:])                # W pair

    fill_padded(q1_ref, pooled_row)

    # ---- Conv1 + ReLU, re-pad entirely in VMEM, Conv2 + ReLU ----------------
    y1 = conv3x3_relu(q1_ref, w1_ref, b1_ref, cout)           # (m, cout)
    fill_padded(q2_ref, lambda h: y1[h * wp:(h + 1) * wp, :])
    y2 = conv3x3_relu(q2_ref, w2_ref, b2_ref, cout)           # (m, cout)

    o_ref[0, :, :] = y2.astype(o_ref.dtype)


# ---------------------------------------------------------------------------
# Wrapper (NCHW in / NCHW out, matching PyTorch)
# ---------------------------------------------------------------------------
def conv_block_mid(x_nchw, params):
    w1, b1, w2, b2 = params                        # w*: (Cout, Cin, 3, 3)
    N, Cin, H, W = x_nchw.shape
    Cout = w1.shape[0]
    assert H % 2 == 0 and W % 2 == 0  # TODO(synk): masked tail for odd sizes
    Hp, Wp = H // 2, W // 2
    M = Hp * Wp

    # Layout prep: one NCHW->NHWC transpose + metadata-only reshapes.
    x_r = jnp.transpose(x_nchw, (0, 2, 3, 1)).reshape(N, Hp, 2, Wp, 2 * Cin)

    # Per-tap weights (ki, kj, Cin, Cout) flattened to (9, Cin, Cout).
    w1_r = jnp.transpose(w1, (2, 3, 1, 0)).reshape(9, Cin, Cout).astype(jnp.float32)
    w2_r = jnp.transpose(w2, (2, 3, 1, 0)).reshape(9, Cout, Cout).astype(jnp.float32)
    b1_r = b1.reshape(1, Cout).astype(jnp.float32)
    b2_r = b2.reshape(1, Cout).astype(jnp.float32)

    # Flattened w-index per output row (for the in-kernel W edge clamp).
    col_ids = (jnp.arange(M, dtype=jnp.int32) % Wp).reshape(M, 1)

    kernel = functools.partial(_conv_block_mid_kernel,
                               hp=Hp, wp=Wp, cin=Cin, cout=Cout)

    out_flat = pl.pallas_call(
        kernel,
        out_shape=jax.ShapeDtypeStruct((N, M, Cout), jnp.float32),
        grid=(N,),
        in_specs=[
            pl.BlockSpec((1, Hp, 2, Wp, 2 * Cin), lambda b: (b, 0, 0, 0, 0)),
            pl.BlockSpec((M, 1), lambda b: (0, 0)),
            pl.BlockSpec((9, Cin, Cout), lambda b: (0, 0, 0)),
            pl.BlockSpec((1, Cout), lambda b: (0, 0)),
            pl.BlockSpec((9, Cout, Cout), lambda b: (0, 0, 0)),
            pl.BlockSpec((1, Cout), lambda b: (0, 0)),
        ],
        out_specs=pl.BlockSpec((1, M, Cout), lambda b: (b, 0, 0)),
        scratch_shapes=[
            pltpu.VMEM(((Hp + 4) * Wp, Cin), jnp.float32),    # padded pooled x
            pltpu.VMEM(((Hp + 4) * Wp, Cout), jnp.float32),   # padded conv1 out
        ],
        compiler_params=pltpu.CompilerParams(
            dimension_semantics=("parallel",),
        ),
    )(x_r, col_ids, w1_r, b1_r, w2_r, b2_r)

    return jnp.transpose(out_flat.reshape(N, Hp, Wp, Cout), (0, 3, 1, 2))


# ---------------------------------------------------------------------------
# Pure-JAX reference (correctness check only)
# ---------------------------------------------------------------------------
def _reference(x_nchw, params):
    w1, b1, w2, b2 = params
    x = jnp.transpose(x_nchw, (0, 2, 3, 1))
    N, H, W, C = x.shape
    p = x.reshape(N, H // 2, 2, W // 2, 2, C).max(axis=(2, 4))

    def conv(xin, w, b):
        xp = jnp.pad(xin, ((0, 0), (1, 1), (1, 1), (0, 0)), mode="edge")
        y = lax.conv_general_dilated(
            xp, jnp.transpose(w, (2, 3, 1, 0)), window_strides=(1, 1),
            padding="VALID", dimension_numbers=("NHWC", "HWIO", "NHWC"))
        return jax.nn.relu(y + b)

    y1 = conv(p, w1, b1)
    y2 = conv(y1, w2, b2)
    return jnp.transpose(y2, (0, 3, 1, 2))


# ---------------------------------------------------------------------------
if __name__ == "__main__":
    N, Cin, Cout, H, W = 2, 4, 8, 16, 16

    key = jax.random.PRNGKey(0)
    kx, kw1, kb1, kw2, kb2 = jax.random.split(key, 5)

    x = jax.random.normal(kx, (N, Cin, H, W), dtype=jnp.float32)
    w1 = 0.1 * jax.random.normal(kw1, (Cout, Cin, 3, 3), dtype=jnp.float32)
    b1 = 0.1 * jax.random.normal(kb1, (Cout,), dtype=jnp.float32)
    w2 = 0.1 * jax.random.normal(kw2, (Cout, Cout, 3, 3), dtype=jnp.float32)
    b2 = 0.1 * jax.random.normal(kb2, (Cout,), dtype=jnp.float32)
    params = (w1, b1, w2, b2)

    out = jax.block_until_ready(conv_block_mid(x, params))
    ref = jax.block_until_ready(_reference(x, params))

    assert out.shape == (N, Cout, H // 2, W // 2), out.shape
    assert jnp.allclose(out, ref, atol=1e-4, rtol=1e-4), "mismatch vs reference"

    print("KERNEL_OK")
</pallas_src>

<mosaic_0001>
module attributes {stable_mosaic.version = 11 : i64} {
  func.func @_conv_block_mid_kernel(%arg0: i32, %arg1: memref<1x8x2x8x8xf32, #tpu.memory_space<vmem>>, %arg2: memref<64x1xi32, #tpu.memory_space<vmem>>, %arg3: memref<9x4x8xf32, #tpu.memory_space<vmem>>, %arg4: memref<1x8xf32, #tpu.memory_space<vmem>>, %arg5: memref<9x8x8xf32, #tpu.memory_space<vmem>>, %arg6: memref<1x8xf32, #tpu.memory_space<vmem>>, %arg7: memref<1x64x8xf32, #tpu.memory_space<vmem>>, %arg8: memref<96x4xf32, #tpu.memory_space<vmem>>, %arg9: memref<96x8xf32, #tpu.memory_space<vmem>>) attributes {dimension_semantics = [#tpu.dimension_semantics<parallel>], iteration_bounds = array<i64: 2>, scalar_prefetch = 0 : i64, scratch_operands = 2 : i64, tpu.core_type = #tpu.core_type<tc>, window_params = [{transform_indices = @transform_0, window_bounds = array<i64: 1, 8, 2, 8, 8>}, {pipeline_mode = #tpu.pipeline_mode<synchronous>, transform_indices = @transform_1, window_bounds = array<i64: 64, 1>}, {pipeline_mode = #tpu.pipeline_mode<synchronous>, transform_indices = @transform_2, window_bounds = array<i64: 9, 4, 8>}, {pipeline_mode = #tpu.pipeline_mode<synchronous>, transform_indices = @transform_3, window_bounds = array<i64: 1, 8>}, {pipeline_mode = #tpu.pipeline_mode<synchronous>, transform_indices = @transform_4, window_bounds = array<i64: 9, 8, 8>}, {pipeline_mode = #tpu.pipeline_mode<synchronous>, transform_indices = @transform_5, window_bounds = array<i64: 1, 8>}, {transform_indices = @transform_6, window_bounds = array<i64: 1, 64, 8>}]} {
    %cst = arith.constant 0.000000e+00 : f32
    %0 = vector.broadcast %cst : f32 to vector<96x4xf32>
    %c0 = arith.constant 0 : index
    %c0_0 = arith.constant 0 : index
    %1 = vector.load %arg8[%c0, %c0_0] : memref<96x4xf32, #tpu.memory_space<vmem>>, vector<96x4xf32>
    tpu.vector_store %arg8[%c0, %c0_0], %0 {strides = array<i32>} : memref<96x4xf32, #tpu.memory_space<vmem>>, vector<96x4xf32>,
    %c0_1 = arith.constant 0 : index
    %c0_2 = arith.constant 0 : index
    %c0_3 = arith.constant 0 : index
    %c0_4 = arith.constant 0 : index
    %c0_5 = arith.constant 0 : index
    %2 = vector.load %arg1[%c0_1, %c0_2, %c0_3, %c0_4, %c0_5] : memref<1x8x2x8x8xf32, #tpu.memory_space<vmem>>, vector<1x1x1x8x8xf32>
    %3 = vector.shape_cast %2 : vector<1x1x1x8x8xf32> to vector<8x8xf32>
    %c0_6 = arith.constant 0 : index
    %c0_7 = arith.constant 0 : index
    %c1 = arith.constant 1 : index
    %c0_8 = arith.constant 0 : index
    %c0_9 = arith.constant 0 : index
    %4 = vector.load %arg1[%c0_6, %c0_7, %c1, %c0_8, %c0_9] : memref<1x8x2x8x8xf32, #tpu.memory_space<vmem>>, vector<1x1x1x8x8xf32>
    %5 = vector.shape_cast %4 : vector<1x1x1x8x8xf32> to vector<8x8xf32>
    %6 = arith.maximumf %3, %5 : vector<8x8xf32>
    %7 = vector.extract_strided_slice %6 {offsets = [0, 0], sizes = [8, 4], strides = [1, 1]} : vector<8x8xf32> to vector<8x4xf32>
    %8 = vector.extract_strided_slice %6 {offsets = [0, 4], sizes = [8, 4], strides = [1, 1]} : vector<8x8xf32> to vector<8x4xf32>
    %9 = arith.maximumf %7, %8 : vector<8x4xf32>
    %c16 = arith.constant 16 : index
    %c0_10 = arith.constant 0 : index
    %10 = vector.load %arg8[%c16, %c0_10] : memref<96x4xf32, #tpu.memory_space<vmem>>, vector<8x4xf32>
    tpu.vector_store %arg8[%c16, %c0_10], %9 {strides = array<i32>} : memref<96x4xf32, #tpu.memory_space<vmem>>, vector<8x4xf32>,
    %c8 = arith.constant 8 : index
    %c0_11 = arith.constant 0 : index
    %11 = vector.load %arg8[%c8, %c0_11] : memref<96x4xf32, #tpu.memory_space<vmem>>, vector<8x4xf32>
    tpu.vector_store %arg8[%c8, %c0_11], %9 {strides = array<i32>} : memref<96x4xf32, #tpu.memory_space<vmem>>, vector<8x4xf32>,
    %c0_12 = arith.constant 0 : index
    %c1_13 = arith.constant 1 : index
    %c0_14 = arith.constant 0 : index
    %c0_15 = arith.constant 0 : index
    %c0_16 = arith.constant 0 : index
    %12 = vector.load %arg1[%c0_12, %c1_13, %c0_14, %c0_15, %c0_16] : memref<1x8x2x8x8xf32, #tpu.memory_space<vmem>>, vector<1x1x1x8x8xf32>
    %13 = vector.shape_cast %12 : vector<1x1x1x8x8xf32> to vector<8x8xf32>
    %c0_17 = arith.constant 0 : index
    %c1_18 = arith.constant 1 : index
    %c1_19 = arith.constant 1 : index
    %c0_20 = arith.constant 0 : index
    %c0_21 = arith.constant 0 : index
    %14 = vector.load %arg1[%c0_17, %c1_18, %c1_19, %c0_20, %c0_21] : memref<1x8x2x8x8xf32, #tpu.memory_space<vmem>>, vector<1x1x1x8x8xf32>
    %15 = vector.shape_cast %14 : vector<1x1x1x8x8xf32> to vector<8x8xf32>
    %16 = arith.maximumf %13, %15 : vector<8x8xf32>
    %17 = vector.extract_strided_slice %16 {offsets = [0, 0], sizes = [8, 4], strides = [1, 1]} : vector<8x8xf32> to vector<8x4xf32>
    %18 = vector.extract_strided_slice %16 {offsets = [0, 4], sizes = [8, 4], strides = [1, 1]} : vector<8x8xf32> to vector<8x4xf32>
    %19 = arith.maximumf %17, %18 : vector<8x4xf32>
    %c24 = arith.constant 24 : index
    %c0_22 = arith.constant 0 : index
    %20 = vector.load %arg8[%c24, %c0_22] : memref<96x4xf32, #tpu.memory_space<vmem>>, vector<8x4xf32>
    tpu.vector_store %arg8[%c24, %c0_22], %19 {strides = array<i32>} : memref<96x4xf32, #tpu.memory_space<vmem>>, vector<8x4xf32>,
    %c0_23 = arith.constant 0 : index
    %c2 = arith.constant 2 : index
    %c0_24 = arith.constant 0 : index
    %c0_25 = arith.constant 0 : index
    %c0_26 = arith.constant 0 : index
    %21 = vector.load %arg1[%c0_23, %c2, %c0_24, %c0_25, %c0_26] : memref<1x8x2x8x8xf32, #tpu.memory_space<vmem>>, vector<1x1x1x8x8xf32>
    %22 = vector.shape_cast %21 : vector<1x1x1x8x8xf32> to vector<8x8xf32>
    %c0_27 = arith.constant 0 : index
    %c2_28 = arith.constant 2 : index
    %c1_29 = arith.constant 1 : index
    %c0_30 = arith.constant 0 : index
    %c0_31 = arith.constant 0 : index
    %23 = vector.load %arg1[%c0_27, %c2_28, %c1_29, %c0_30, %c0_31] : memref<1x8x2x8x8xf32, #tpu.memory_space<vmem>>, vector<1x1x1x8x8xf32>
    %24 = vector.shape_cast %23 : vector<1x1x1x8x8xf32> to vector<8x8xf32>
    %25 = arith.maximumf %22, %24 : vector<8x8xf32>
    %26 = vector.extract_strided_slice %25 {offsets = [0, 0], sizes = [8, 4], strides = [1, 1]} : vector<8x8xf32> to vector<8x4xf32>
    %27 = vector.extract_strided_slice %25 {offsets = [0, 4], sizes = [8, 4], strides = [1, 1]} : vector<8x8xf32> to vector<8x4xf32>
    %28 = arith.maximumf %26, %27 : vector<8x4xf32>
    %c32 = arith.constant 32 : index
    %c0_32 = arith.constant 0 : index
    %29 = vector.load %arg8[%c32, %c0_32] : memref<96x4xf32, #tpu.memory_space<vmem>>, vector<8x4xf32>
    tpu.vector_store %arg8[%c32, %c0_32], %28 {strides = array<i32>} : memref<96x4xf32, #tpu.memory_space<vmem>>, vector<8x4xf32>,
    %c0_33 = arith.constant 0 : index
    %c3 = arith.constant 3 : index
    %c0_34 = arith.constant 0 : index
    %c0_35 = arith.constant 0 : index
    %c0_36 = arith.constant 0 : index
    %30 = vector.load %arg1[%c0_33, %c3, %c0_34, %c0_35, %c0_36] : memref<1x8x2x8x8xf32, #tpu.memory_space<vmem>>, vector<1x1x1x8x8xf32>
    %31 = vector.shape_cast %30 : vector<1x1x1x8x8xf32> to vector<8x8xf32>
    %c0_37 = arith.constant 0 : index
    %c3_38 = arith.constant 3 : index
    %c1_39 = arith.constant 1 : index
    %c0_40 = arith.constant 0 : index
    %c0_41 = arith.constant 0 : index
    %32 = vector.load %arg1[%c0_37, %c3_38, %c1_39, %c0_40, %c0_41] : memref<1x8x2x8x8xf32, #tpu.memory_space<vmem>>, vector<1x1x1x8x8xf32>
    %33 = vector.shape_cast %32 : vector<1x1x1x8x8xf32> to vector<8x8xf32>
    %34 = arith.maximumf %31, %33 : vector<8x8xf32>
    %35 = vector.extract_strided_slice %34 {offsets = [0, 0], sizes = [8, 4], strides = [1, 1]} : vector<8x8xf32> to vector<8x4xf32>
    %36 = vector.extract_strided_slice %34 {offsets = [0, 4], sizes = [8, 4], strides = [1, 1]} : vector<8x8xf32> to vector<8x4xf32>
    %37 = arith.maximumf %35, %36 : vector<8x4xf32>
    %c40 = arith.constant 40 : index
    %c0_42 = arith.constant 0 : index
    %38 = vector.load %arg8[%c40, %c0_42] : memref<96x4xf32, #tpu.memory_space<vmem>>, vector<8x4xf32>
    tpu.vector_store %arg8[%c40, %c0_42], %37 {strides = array<i32>} : memref<96x4xf32, #tpu.memory_space<vmem>>, vector<8x4xf32>,
    %c0_43 = arith.constant 0 : index
    %c4 = arith.constant 4 : index
    %c0_44 = arith.constant 0 : index
    %c0_45 = arith.constant 0 : index
    %c0_46 = arith.constant 0 : index
    %39 = vector.load %arg1[%c0_43, %c4, %c0_44, %c0_45, %c0_46] : memref<1x8x2x8x8xf32, #tpu.memory_space<vmem>>, vector<1x1x1x8x8xf32>
    %40 = vector.shape_cast %39 : vector<1x1x1x8x8xf32> to vector<8x8xf32>
    %c0_47 = arith.constant 0 : index
    %c4_48 = arith.constant 4 : index
    %c1_49 = arith.constant 1 : index
    %c0_50 = arith.constant 0 : index
    %c0_51 = arith.constant 0 : index
    %41 = vector.load %arg1[%c0_47, %c4_48, %c1_49, %c0_50, %c0_51] : memref<1x8x2x8x8xf32, #tpu.memory_space<vmem>>, vector<1x1x1x8x8xf32>
    %42 = vector.shape_cast %41 : vector<1x1x1x8x8xf32> to vector<8x8xf32>
    %43 = arith.maximumf %40, %42 : vector<8x8xf32>
    %44 = vector.extract_strided_slice %43 {offsets = [0, 0], sizes = [8, 4], strides = [1, 1]} : vector<8x8xf32> to vector<8x4xf32>
    %45 = vector.extract_strided_slice %43 {offsets = [0, 4], sizes = [8, 4], strides = [1, 1]} : vector<8x8xf32> to vector<8x4xf32>
    %46 = arith.maximumf %44, %45 : vector<8x4xf32>
    %c48 = arith.constant 48 : index
    %c0_52 = arith.constant 0 : index
    %47 = vector.load %arg8[%c48, %c0_52] : memref<96x4xf32, #tpu.memory_space<vmem>>, vector<8x4xf32>
    tpu.vector_store %arg8[%c48, %c0_52], %46 {strides = array<i32>} : memref<96x4xf32, #tpu.memory_space<vmem>>, vector<8x4xf32>,
    %c0_53 = arith.constant 0 : index
    %c5 = arith.constant 5 : index
    %c0_54 = arith.constant 0 : index
    %c0_55 = arith.constant 0 : index
    %c0_56 = arith.constant 0 : index
    %48 = vector.load %arg1[%c0_53, %c5, %c0_54, %c0_55, %c0_56] : memref<1x8x2x8x8xf32, #tpu.memory_space<vmem>>, vector<1x1x1x8x8xf32>
    %49 = vector.shape_cast %48 : vector<1x1x1x8x8xf32> to vector<8x8xf32>
    %c0_57 = arith.constant 0 : index
    %c5_58 = arith.constant 5 : index
    %c1_59 = arith.constant 1 : index
    %c0_60 = arith.constant 0 : index
    %c0_61 = arith.constant 0 : index
    %50 = vector.load %arg1[%c0_57, %c5_58, %c1_59, %c0_60, %c0_61] : memref<1x8x2x8x8xf32, #tpu.memory_space<vmem>>, vector<1x1x1x8x8xf32>
    %51 = vector.shape_cast %50 : vector<1x1x1x8x8xf32> to vector<8x8xf32>
    %52 = arith.maximumf %49, %51 : vector<8x8xf32>
    %53 = vector.extract_strided_slice %52 {offsets = [0, 0], sizes = [8, 4], strides = [1, 1]} : vector<8x8xf32> to vector<8x4xf32>
    %54 = vector.extract_strided_slice %52 {offsets = [0, 4], sizes = [8, 4], strides = [1, 1]} : vector<8x8xf32> to vector<8x4xf32>
    %55 = arith.maximumf %53, %54 : vector<8x4xf32>
    %c56 = arith.constant 56 : index
    %c0_62 = arith.constant 0 : index
    %56 = vector.load %arg8[%c56, %c0_62] : memref<96x4xf32, #tpu.memory_space<vmem>>, vector<8x4xf32>
    tpu.vector_store %arg8[%c56, %c0_62], %55 {strides = array<i32>} : memref<96x4xf32, #tpu.memory_space<vmem>>, vector<8x4xf32>,
    %c0_63 = arith.constant 0 : index
    %c6 = arith.constant 6 : index
    %c0_64 = arith.constant 0 : index
    %c0_65 = arith.constant 0 : index
    %c0_66 = arith.constant 0 : index
    %57 = vector.load %arg1[%c0_63, %c6, %c0_64, %c0_65, %c0_66] : memref<1x8x2x8x8xf32, #tpu.memory_space<vmem>>, vector<1x1x1x8x8xf32>
    %58 = vector.shape_cast %57 : vector<1x1x1x8x8xf32> to vector<8x8xf32>
    %c0_67 = arith.constant 0 : index
    %c6_68 = arith.constant 6 : index
    %c1_69 = arith.constant 1 : index
    %c0_70 = arith.constant 0 : index
    %c0_71 = arith.constant 0 : index
    %59 = vector.load %arg1[%c0_67, %c6_68, %c1_69, %c0_70, %c0_71] : memref<1x8x2x8x8xf32, #tpu.memory_space<vmem>>, vector<1x1x1x8x8xf32>
    %60 = vector.shape_cast %59 : vector<1x1x1x8x8xf32> to vector<8x8xf32>
    %61 = arith.maximumf %58, %60 : vector<8x8xf32>
    %62 = vector.extract_strided_slice %61 {offsets = [0, 0], sizes = [8, 4], strides = [1, 1]} : vector<8x8xf32> to vector<8x4xf32>
    %63 = vector.extract_strided_slice %61 {offsets = [0, 4], sizes = [8, 4], strides = [1, 1]} : vector<8x8xf32> to vector<8x4xf32>
    %64 = arith.maximumf %62, %63 : vector<8x4xf32>
    %c64 = arith.constant 64 : index
    %c0_72 = arith.constant 0 : index
    %65 = vector.load %arg8[%c64, %c0_72] : memref<96x4xf32, #tpu.memory_space<vmem>>, vector<8x4xf32>
    tpu.vector_store %arg8[%c64, %c0_72], %64 {strides = array<i32>} : memref<96x4xf32, #tpu.memory_space<vmem>>, vector<8x4xf32>,
    %c0_73 = arith.constant 0 : index
    %c7 = arith.constant 7 : index
    %c0_74 = arith.constant 0 : index
    %c0_75 = arith.constant 0 : index
    %c0_76 = arith.constant 0 : index
    %66 = vector.load %arg1[%c0_73, %c7, %c0_74, %c0_75, %c0_76] : memref<1x8x2x8x8xf32, #tpu.memory_space<vmem>>, vector<1x1x1x8x8xf32>
    %67 = vector.shape_cast %66 : vector<1x1x1x8x8xf32> to vector<8x8xf32>
    %c0_77 = arith.constant 0 : index
    %c7_78 = arith.constant 7 : index
    %c1_79 = arith.constant 1 : index
    %c0_80 = arith.constant 0 : index
    %c0_81 = arith.constant 0 : index
    %68 = vector.load %arg1[%c0_77, %c7_78, %c1_79, %c0_80, %c0_81] : memref<1x8x2x8x8xf32, #tpu.memory_space<vmem>>, vector<1x1x1x8x8xf32>
    %69 = vector.shape_cast %68 : vector<1x1x1x8x8xf32> to vector<8x8xf32>
    %70 = arith.maximumf %67, %69 : vector<8x8xf32>
    %71 = vector.extract_strided_slice %70 {offsets = [0, 0], sizes = [8, 4], strides = [1, 1]} : vector<8x8xf32> to vector<8x4xf32>
    %72 = vector.extract_strided_slice %70 {offsets = [0, 4], sizes = [8, 4], strides = [1, 1]} : vector<8x8xf32> to vector<8x4xf32>
    %73 = arith.maximumf %71, %72 : vector<8x4xf32>
    %c72 = arith.constant 72 : index
    %c0_82 = arith.constant 0 : index
    %74 = vector.load %arg8[%c72, %c0_82] : memref<96x4xf32, #tpu.memory_space<vmem>>, vector<8x4xf32>
    tpu.vector_store %arg8[%c72, %c0_82], %73 {strides = array<i32>} : memref<96x4xf32, #tpu.memory_space<vmem>>, vector<8x4xf32>,
    %c80 = arith.constant 80 : index
    %c0_83 = arith.constant 0 : index
    %75 = vector.load %arg8[%c80, %c0_83] : memref<96x4xf32, #tpu.memory_space<vmem>>, vector<8x4xf32>
    tpu.vector_store %arg8[%c80, %c0_83], %73 {strides = array<i32>} : memref<96x4xf32, #tpu.memory_space<vmem>>, vector<8x4xf32>,
    %c0_84 = arith.constant 0 : index
    %c0_85 = arith.constant 0 : index
    %76 = vector.load %arg2[%c0_84, %c0_85] : memref<64x1xi32, #tpu.memory_space<vmem>>, vector<64x1xi32>
    %77 = vector.shape_cast %76 : vector<64x1xi32> to vector<64x1xi32>
    %78 = vector.broadcast %77 : vector<64x1xi32> to vector<64x4xi32>
    %c0_i32 = arith.constant 0 : i32
    %79 = vector.broadcast %c0_i32 : i32 to vector<64x4xi32>
    %80 = arith.cmpi eq, %78, %79 : vector<64x4xi32>
    %c7_i32 = arith.constant 7 : i32
    %81 = vector.broadcast %c7_i32 : i32 to vector<64x4xi32>
    %82 = arith.cmpi eq, %78, %81 : vector<64x4xi32>
    %cst_86 = arith.constant 0.000000e+00 : f32
    %83 = vector.broadcast %cst_86 : f32 to vector<64x8xf32>
    %c0_87 = arith.constant 0 : index
    %c0_88 = arith.constant 0 : index
    %84 = vector.load %arg4[%c0_87, %c0_88] : memref<1x8xf32, #tpu.memory_space<vmem>>, vector<1x8xf32>
    %85 = vector.broadcast %84 : vector<1x8xf32> to vector<64x8xf32>
    %86 = arith.addf %83, %85 : vector<64x8xf32>
    %c8_89 = arith.constant 8 : index
    %c0_90 = arith.constant 0 : index
    %87 = vector.load %arg8[%c8_89, %c0_90] : memref<96x4xf32, #tpu.memory_space<vmem>>, vector<64x4xf32>
    %c7_91 = arith.constant 7 : index
    %c0_92 = arith.constant 0 : index
    %88 = vector.load %arg8[%c7_91, %c0_92] : memref<96x4xf32, #tpu.memory_space<vmem>>, vector<64x4xf32>
    %c9 = arith.constant 9 : index
    %c0_93 = arith.constant 0 : index
    %89 = vector.load %arg8[%c9, %c0_93] : memref<96x4xf32, #tpu.memory_space<vmem>>, vector<64x4xf32>
    %90 = arith.select %80, %87, %88 : vector<64x4xi1>, vector<64x4xf32>
    %91 = arith.select %82, %87, %89 : vector<64x4xi1>, vector<64x4xf32>
    %c0_94 = arith.constant 0 : index
    %c0_95 = arith.constant 0 : index
    %c0_96 = arith.constant 0 : index
    %92 = vector.load %arg3[%c0_94, %c0_95, %c0_96] : memref<9x4x8xf32, #tpu.memory_space<vmem>>, vector<1x4x8xf32>
    %93 = vector.shape_cast %92 : vector<1x4x8xf32> to vector<4x8xf32>
    %cst_97 = arith.constant dense<0.000000e+00> : vector<64x8xf32>
    %94 = tpu.matmul %90, %93, %cst_97 {dimension_numbers = #tpu.dot_dimension_numbers<[1], [0], [0], [1], [0, 0, 1, 1], [], []>} : vector<64x4xf32>, vector<4x8xf32>, vector<64x8xf32> -> vector<64x8xf32>
    %95 = arith.addf %86, %94 : vector<64x8xf32>
    %c1_98 = arith.constant 1 : index
    %c0_99 = arith.constant 0 : index
    %c0_100 = arith.constant 0 : index
    %96 = vector.load %arg3[%c1_98, %c0_99, %c0_100] : memref<9x4x8xf32, #tpu.memory_space<vmem>>, vector<1x4x8xf32>
    %97 = vector.shape_cast %96 : vector<1x4x8xf32> to vector<4x8xf32>
    %cst_101 = arith.constant dense<0.000000e+00> : vector<64x8xf32>
    %98 = tpu.matmul %87, %97, %cst_101 {dimension_numbers = #tpu.dot_dimension_numbers<[1], [0], [0], [1], [0, 0, 1, 1], [], []>} : vector<64x4xf32>, vector<4x8xf32>, vector<64x8xf32> -> vector<64x8xf32>
    %99 = arith.addf %95, %98 : vector<64x8xf32>
    %c2_102 = arith.constant 2 : index
    %c0_103 = arith.constant 0 : index
    %c0_104 = arith.constant 0 : index
    %100 = vector.load %arg3[%c2_102, %c0_103, %c0_104] : memref<9x4x8xf32, #tpu.memory_space<vmem>>, vector<1x4x8xf32>
    %101 = vector.shape_cast %100 : vector<1x4x8xf32> to vector<4x8xf32>
    %cst_105 = arith.constant dense<0.000000e+00> : vector<64x8xf32>
    %102 = tpu.matmul %91, %101, %cst_105 {dimension_numbers = #tpu.dot_dimension_numbers<[1], [0], [0], [1], [0, 0, 1, 1], [], []>} : vector<64x4xf32>, vector<4x8xf32>, vector<64x8xf32> -> vector<64x8xf32>
    %103 = arith.addf %99, %102 : vector<64x8xf32>
    %c16_106 = arith.constant 16 : index
    %c0_107 = arith.constant 0 : index
    %104 = vector.load %arg8[%c16_106, %c0_107] : memref<96x4xf32, #tpu.memory_space<vmem>>, vector<64x4xf32>
    %c15 = arith.constant 15 : index
    %c0_108 = arith.constant 0 : index
    %105 = vector.load %arg8[%c15, %c0_108] : memref<96x4xf32, #tpu.memory_space<vmem>>, vector<64x4xf32>
    %c17 = arith.constant 17 : index
    %c0_109 = arith.constant 0 : index
    %106 = vector.load %arg8[%c17, %c0_109] : memref<96x4xf32, #tpu.memory_space<vmem>>, vector<64x4xf32>
    %107 = arith.select %80, %104, %105 : vector<64x4xi1>, vector<64x4xf32>
    %108 = arith.select %82, %104, %106 : vector<64x4xi1>, vector<64x4xf32>
    %c3_110 = arith.constant 3 : index
    %c0_111 = arith.constant 0 : index
    %c0_112 = arith.constant 0 : index
    %109 = vector.load %arg3[%c3_110, %c0_111, %c0_112] : memref<9x4x8xf32, #tpu.memory_space<vmem>>, vector<1x4x8xf32>
    %110 = vector.shape_cast %109 : vector<1x4x8xf32> to vector<4x8xf32>
    %cst_113 = arith.constant dense<0.000000e+00> : vector<64x8xf32>
    %111 = tpu.matmul %107, %110, %cst_113 {dimension_numbers = #tpu.dot_dimension_numbers<[1], [0], [0], [1], [0, 0, 1, 1], [], []>} : vector<64x4xf32>, vector<4x8xf32>, vector<64x8xf32> -> vector<64x8xf32>
    %112 = arith.addf %103, %111 : vector<64x8xf32>
    %c4_114 = arith.constant 4 : index
    %c0_115 = arith.constant 0 : index
    %c0_116 = arith.constant 0 : index
    %113 = vector.load %arg3[%c4_114, %c0_115, %c0_116] : memref<9x4x8xf32, #tpu.memory_space<vmem>>, vector<1x4x8xf32>
    %114 = vector.shape_cast %113 : vector<1x4x8xf32> to vector<4x8xf32>
    %cst_117 = arith.constant dense<0.000000e+00> : vector<64x8xf32>
    %115 = tpu.matmul %104, %114, %cst_117 {dimension_numbers = #tpu.dot_dimension_numbers<[1], [0], [0], [1], [0, 0, 1, 1], [], []>} : vector<64x4xf32>, vector<4x8xf32>, vector<64x8xf32> -> vector<64x8xf32>
    %116 = arith.addf %112, %115 : vector<64x8xf32>
    %c5_118 = arith.constant 5 : index
    %c0_119 = arith.constant 0 : index
    %c0_120 = arith.constant 0 : index
    %117 = vector.load %arg3[%c5_118, %c0_119, %c0_120] : memref<9x4x8xf32, #tpu.memory_space<vmem>>, vector<1x4x8xf32>
    %118 = vector.shape_cast %117 : vector<1x4x8xf32> to vector<4x8xf32>
    %cst_121 = arith.constant dense<0.000000e+00> : vector<64x8xf32>
    %119 = tpu.matmul %108, %118, %cst_121 {dimension_numbers = #tpu.dot_dimension_numbers<[1], [0], [0], [1], [0, 0, 1, 1], [], []>} : vector<64x4xf32>, vector<4x8xf32>, vector<64x8xf32> -> vector<64x8xf32>
    %120 = arith.addf %116, %119 : vector<64x8xf32>
    %c24_122 = arith.constant 24 : index
    %c0_123 = arith.constant 0 : index
    %121 = vector.load %arg8[%c24_122, %c0_123] : memref<96x4xf32, #tpu.memory_space<vmem>>, vector<64x4xf32>
    %c23 = arith.constant 23 : index
    %c0_124 = arith.constant 0 : index
    %122 = vector.load %arg8[%c23, %c0_124] : memref<96x4xf32, #tpu.memory_space<vmem>>, vector<64x4xf32>
    %c25 = arith.constant 25 : index
    %c0_125 = arith.constant 0 : index
    %123 = vector.load %arg8[%c25, %c0_125] : memref<96x4xf32, #tpu.memory_space<vmem>>, vector<64x4xf32>
    %124 = arith.select %80, %121, %122 : vector<64x4xi1>, vector<64x4xf32>
    %125 = arith.select %82, %121, %123 : vector<64x4xi1>, vector<64x4xf32>
    %c6_126 = arith.constant 6 : index
    %c0_127 = arith.constant 0 : index
    %c0_128 = arith.constant 0 : index
    %126 = vector.load %arg3[%c6_126, %c0_127, %c0_128] : memref<9x4x8xf32, #tpu.memory_space<vmem>>, vector<1x4x8xf32>
    %127 = vector.shape_cast %126 : vector<1x4x8xf32> to vector<4x8xf32>
    %cst_129 = arith.constant dense<0.000000e+00> : vector<64x8xf32>
    %128 = tpu.matmul %124, %127, %cst_129 {dimension_numbers = #tpu.dot_dimension_numbers<[1], [0], [0], [1], [0, 0, 1, 1], [], []>} : vector<64x4xf32>, vector<4x8xf32>, vector<64x8xf32> -> vector<64x8xf32>
    %129 = arith.addf %120, %128 : vector<64x8xf32>
    %c7_130 = arith.constant 7 : index
    %c0_131 = arith.constant 0 : index
    %c0_132 = arith.constant 0 : index
    %130 = vector.load %arg3[%c7_130, %c0_131, %c0_132] : memref<9x4x8xf32, #tpu.memory_space<vmem>>, vector<1x4x8xf32>
    %131 = vector.shape_cast %130 : vector<1x4x8xf32> to vector<4x8xf32>
    %cst_133 = arith.constant dense<0.000000e+00> : vector<64x8xf32>
    %132 = tpu.matmul %121, %131, %cst_133 {dimension_numbers = #tpu.dot_dimension_numbers<[1], [0], [0], [1], [0, 0, 1, 1], [], []>} : vector<64x4xf32>, vector<4x8xf32>, vector<64x8xf32> -> vector<64x8xf32>
    %133 = arith.addf %129, %132 : vector<64x8xf32>
    %c8_134 = arith.constant 8 : index
    %c0_135 = arith.constant 0 : index
    %c0_136 = arith.constant 0 : index
    %134 = vector.load %arg3[%c8_134, %c0_135, %c0_136] : memref<9x4x8xf32, #tpu.memory_space<vmem>>, vector<1x4x8xf32>
    %135 = vector.shape_cast %134 : vector<1x4x8xf32> to vector<4x8xf32>
    %cst_137 = arith.constant dense<0.000000e+00> : vector<64x8xf32>
    %136 = tpu.matmul %125, %135, %cst_137 {dimension_numbers = #tpu.dot_dimension_numbers<[1], [0], [0], [1], [0, 0, 1, 1], [], []>} : vector<64x4xf32>, vector<4x8xf32>, vector<64x8xf32> -> vector<64x8xf32>
    %137 = arith.addf %133, %136 : vector<64x8xf32>
    %cst_138 = arith.constant 0.000000e+00 : f32
    %138 = vector.broadcast %cst_138 : f32 to vector<64x8xf32>
    %139 = arith.maximumf %137, %138 : vector<64x8xf32>
    %cst_139 = arith.constant 0.000000e+00 : f32
    %140 = vector.broadcast %cst_139 : f32 to vector<96x8xf32>
    %c0_140 = arith.constant 0 : index
    %c0_141 = arith.constant 0 : index
    %141 = vector.load %arg9[%c0_140, %c0_141] : memref<96x8xf32, #tpu.memory_space<vmem>>, vector<96x8xf32>
    tpu.vector_store %arg9[%c0_140, %c0_141], %140 {strides = array<i32>} : memref<96x8xf32, #tpu.memory_space<vmem>>, vector<96x8xf32>,
    %142 = vector.extract_strided_slice %139 {offsets = [0, 0], sizes = [8, 8], strides = [1, 1]} : vector<64x8xf32> to vector<8x8xf32>
    %c16_142 = arith.constant 16 : index
    %c0_143 = arith.constant 0 : index
    %143 = vector.load %arg9[%c16_142, %c0_143] : memref<96x8xf32, #tpu.memory_space<vmem>>, vector<8x8xf32>
    tpu.vector_store %arg9[%c16_142, %c0_143], %142 {strides = array<i32>} : memref<96x8xf32, #tpu.memory_space<vmem>>, vector<8x8xf32>,
    %c8_144 = arith.constant 8 : index
    %c0_145 = arith.constant 0 : index
    %144 = vector.load %arg9[%c8_144, %c0_145] : memref<96x8xf32, #tpu.memory_space<vmem>>, vector<8x8xf32>
    tpu.vector_store %arg9[%c8_144, %c0_145], %142 {strides = array<i32>} : memref<96x8xf32, #tpu.memory_space<vmem>>, vector<8x8xf32>,
    %145 = vector.extract_strided_slice %139 {offsets = [8, 0], sizes = [8, 8], strides = [1, 1]} : vector<64x8xf32> to vector<8x8xf32>
    %c24_146 = arith.constant 24 : index
    %c0_147 = arith.constant 0 : index
    %146 = vector.load %arg9[%c24_146, %c0_147] : memref<96x8xf32, #tpu.memory_space<vmem>>, vector<8x8xf32>
    tpu.vector_store %arg9[%c24_146, %c0_147], %145 {strides = array<i32>} : memref<96x8xf32, #tpu.memory_space<vmem>>, vector<8x8xf32>,
    %147 = vector.extract_strided_slice %139 {offsets = [16, 0], sizes = [8, 8], strides = [1, 1]} : vector<64x8xf32> to vector<8x8xf32>
    %c32_148 = arith.constant 32 : index
    %c0_149 = arith.constant 0 : index
    %148 = vector.load %arg9[%c32_148, %c0_149] : memref<96x8xf32, #tpu.memory_space<vmem>>, vector<8x8xf32>
    tpu.vector_store %arg9[%c32_148, %c0_149], %147 {strides = array<i32>} : memref<96x8xf32, #tpu.memory_space<vmem>>, vector<8x8xf32>,
    %149 = vector.extract_strided_slice %139 {offsets = [24, 0], sizes = [8, 8], strides = [1, 1]} : vector<64x8xf32> to vector<8x8xf32>
    %c40_150 = arith.constant 40 : index
    %c0_151 = arith.constant 0 : index
    %150 = vector.load %arg9[%c40_150, %c0_151] : memref<96x8xf32, #tpu.memory_space<vmem>>, vector<8x8xf32>
    tpu.vector_store %arg9[%c40_150, %c0_151], %149 {strides = array<i32>} : memref<96x8xf32, #tpu.memory_space<vmem>>, vector<8x8xf32>,
    %151 = vector.extract_strided_slice %139 {offsets = [32, 0], sizes = [8, 8], strides = [1, 1]} : vector<64x8xf32> to vector<8x8xf32>
    %c48_152 = arith.constant 48 : index
    %c0_153 = arith.constant 0 : index
    %152 = vector.load %arg9[%c48_152, %c0_153] : memref<96x8xf32, #tpu.memory_space<vmem>>, vector<8x8xf32>
    tpu.vector_store %arg9[%c48_152, %c0_153], %151 {strides = array<i32>} : memref<96x8xf32, #tpu.memory_space<vmem>>, vector<8x8xf32>,
    %153 = vector.extract_strided_slice %139 {offsets = [40, 0], sizes = [8, 8], strides = [1, 1]} : vector<64x8xf32> to vector<8x8xf32>
    %c56_154 = arith.constant 56 : index
    %c0_155 = arith.constant 0 : index
    %154 = vector.load %arg9[%c56_154, %c0_155] : memref<96x8xf32, #tpu.memory_space<vmem>>, vector<8x8xf32>
    tpu.vector_store %arg9[%c56_154, %c0_155], %153 {strides = array<i32>} : memref<96x8xf32, #tpu.memory_space<vmem>>, vector<8x8xf32>,
    %155 = vector.extract_strided_slice %139 {offsets = [48, 0], sizes = [8, 8], strides = [1, 1]} : vector<64x8xf32> to vector<8x8xf32>
    %c64_156 = arith.constant 64 : index
    %c0_157 = arith.constant 0 : index
    %156 = vector.load %arg9[%c64_156, %c0_157] : memref<96x8xf32, #tpu.memory_space<vmem>>, vector<8x8xf32>
    tpu.vector_store %arg9[%c64_156, %c0_157], %155 {strides = array<i32>} : memref<96x8xf32, #tpu.memory_space<vmem>>, vector<8x8xf32>,
    %157 = vector.extract_strided_slice %139 {offsets = [56, 0], sizes = [8, 8], strides = [1, 1]} : vector<64x8xf32> to vector<8x8xf32>
    %c72_158 = arith.constant 72 : index
    %c0_159 = arith.constant 0 : index
    %158 = vector.load %arg9[%c72_158, %c0_159] : memref<96x8xf32, #tpu.memory_space<vmem>>, vector<8x8xf32>
    tpu.vector_store %arg9[%c72_158, %c0_159], %157 {strides = array<i32>} : memref<96x8xf32, #tpu.memory_space<vmem>>, vector<8x8xf32>,
    %c80_160 = arith.constant 80 : index
    %c0_161 = arith.constant 0 : index
    %159 = vector.load %arg9[%c80_160, %c0_161] : memref<96x8xf32, #tpu.memory_space<vmem>>, vector<8x8xf32>
    tpu.vector_store %arg9[%c80_160, %c0_161], %157 {strides = array<i32>} : memref<96x8xf32, #tpu.memory_space<vmem>>, vector<8x8xf32>,
    %c0_162 = arith.constant 0 : index
    %c0_163 = arith.constant 0 : index
    %160 = vector.load %arg2[%c0_162, %c0_163] : memref<64x1xi32, #tpu.memory_space<vmem>>, vector<64x1xi32>
    %161 = vector.shape_cast %160 : vector<64x1xi32> to vector<64x1xi32>
    %162 = vector.broadcast %161 : vector<64x1xi32> to vector<64x8xi32>
    %c0_i32_164 = arith.constant 0 : i32
    %163 = vector.broadcast %c0_i32_164 : i32 to vector<64x8xi32>
    %164 = arith.cmpi eq, %162, %163 : vector<64x8xi32>
    %c7_i32_165 = arith.constant 7 : i32
    %165 = vector.broadcast %c7_i32_165 : i32 to vector<64x8xi32>
    %166 = arith.cmpi eq, %162, %165 : vector<64x8xi32>
    %cst_166 = arith.constant 0.000000e+00 : f32
    %167 = vector.broadcast %cst_166 : f32 to vector<64x8xf32>
    %c0_167 = arith.constant 0 : index
    %c0_168 = arith.constant 0 : index
    %168 = vector.load %arg6[%c0_167, %c0_168] : memref<1x8xf32, #tpu.memory_space<vmem>>, vector<1x8xf32>
    %169 = vector.broadcast %168 : vector<1x8xf32> to vector<64x8xf32>
    %170 = arith.addf %167, %169 : vector<64x8xf32>
    %c8_169 = arith.constant 8 : index
    %c0_170 = arith.constant 0 : index
    %171 = vector.load %arg9[%c8_169, %c0_170] : memref<96x8xf32, #tpu.memory_space<vmem>>, vector<64x8xf32>
    %c7_171 = arith.constant 7 : index
    %c0_172 = arith.constant 0 : index
    %172 = vector.load %arg9[%c7_171, %c0_172] : memref<96x8xf32, #tpu.memory_space<vmem>>, vector<64x8xf32>
    %c9_173 = arith.constant 9 : index
    %c0_174 = arith.constant 0 : index
    %173 = vector.load %arg9[%c9_173, %c0_174] : memref<96x8xf32, #tpu.memory_space<vmem>>, vector<64x8xf32>
    %174 = arith.select %164, %171, %172 : vector<64x8xi1>, vector<64x8xf32>
    %175 = arith.select %166, %171, %173 : vector<64x8xi1>, vector<64x8xf32>
    %c0_175 = arith.constant 0 : index
    %c0_176 = arith.constant 0 : index
    %c0_177 = arith.constant 0 : index
    %176 = vector.load %arg5[%c0_175, %c0_176, %c0_177] : memref<9x8x8xf32, #tpu.memory_space<vmem>>, vector<1x8x8xf32>
    %177 = vector.shape_cast %176 : vector<1x8x8xf32> to vector<8x8xf32>
    %cst_178 = arith.constant dense<0.000000e+00> : vector<64x8xf32>
    %178 = tpu.matmul %174, %177, %cst_178 {dimension_numbers = #tpu.dot_dimension_numbers<[1], [0], [0], [1], [0, 0, 1, 1], [], []>} : vector<64x8xf32>, vector<8x8xf32>, vector<64x8xf32> -> vector<64x8xf32>
    %179 = arith.addf %170, %178 : vector<64x8xf32>
    %c1_179 = arith.constant 1 : index
    %c0_180 = arith.constant 0 : index
    %c0_181 = arith.constant 0 : index
    %180 = vector.load %arg5[%c1_179, %c0_180, %c0_181] : memref<9x8x8xf32, #tpu.memory_space<vmem>>, vector<1x8x8xf32>
    %181 = vector.shape_cast %180 : vector<1x8x8xf32> to vector<8x8xf32>
    %cst_182 = arith.constant dense<0.000000e+00> : vector<64x8xf32>
    %182 = tpu.matmul %171, %181, %cst_182 {dimension_numbers = #tpu.dot_dimension_numbers<[1], [0], [0], [1], [0, 0, 1, 1], [], []>} : vector<64x8xf32>, vector<8x8xf32>, vector<64x8xf32> -> vector<64x8xf32>
    %183 = arith.addf %179, %182 : vector<64x8xf32>
    %c2_183 = arith.constant 2 : index
    %c0_184 = arith.constant 0 : index
    %c0_185 = arith.constant 0 : index
    %184 = vector.load %arg5[%c2_183, %c0_184, %c0_185] : memref<9x8x8xf32, #tpu.memory_space<vmem>>, vector<1x8x8xf32>
    %185 = vector.shape_cast %184 : vector<1x8x8xf32> to vector<8x8xf32>
    %cst_186 = arith.constant dense<0.000000e+00> : vector<64x8xf32>
    %186 = tpu.matmul %175, %185, %cst_186 {dimension_numbers = #tpu.dot_dimension_numbers<[1], [0], [0], [1], [0, 0, 1, 1], [], []>} : vector<64x8xf32>, vector<8x8xf32>, vector<64x8xf32> -> vector<64x8xf32>
    %187 = arith.addf %183, %186 : vector<64x8xf32>
    %c16_187 = arith.constant 16 : index
    %c0_188 = arith.constant 0 : index
    %188 = vector.load %arg9[%c16_187, %c0_188] : memref<96x8xf32, #tpu.memory_space<vmem>>, vector<64x8xf32>
    %c15_189 = arith.constant 15 : index
    %c0_190 = arith.constant 0 : index
    %189 = vector.load %arg9[%c15_189, %c0_190] : memref<96x8xf32, #tpu.memory_space<vmem>>, vector<64x8xf32>
    %c17_191 = arith.constant 17 : index
    %c0_192 = arith.constant 0 : index
    %190 = vector.load %arg9[%c17_191, %c0_192] : memref<96x8xf32, #tpu.memory_space<vmem>>, vector<64x8xf32>
    %191 = arith.select %164, %188, %189 : vector<64x8xi1>, vector<64x8xf32>
    %192 = arith.select %166, %188, %190 : vector<64x8xi1>, vector<64x8xf32>
    %c3_193 = arith.constant 3 : index
    %c0_194 = arith.constant 0 : index
    %c0_195 = arith.constant 0 : index
    %193 = vector.load %arg5[%c3_193, %c0_194, %c0_195] : memref<9x8x8xf32, #tpu.memory_space<vmem>>, vector<1x8x8xf32>
    %194 = vector.shape_cast %193 : vector<1x8x8xf32> to vector<8x8xf32>
    %cst_196 = arith.constant dense<0.000000e+00> : vector<64x8xf32>
    %195 = tpu.matmul %191, %194, %cst_196 {dimension_numbers = #tpu.dot_dimension_numbers<[1], [0], [0], [1], [0, 0, 1, 1], [], []>} : vector<64x8xf32>, vector<8x8xf32>, vector<64x8xf32> -> vector<64x8xf32>
    %196 = arith.addf %187, %195 : vector<64x8xf32>
    %c4_197 = arith.constant 4 : index
    %c0_198 = arith.constant 0 : index
    %c0_199 = arith.constant 0 : index
    %197 = vector.load %arg5[%c4_197, %c0_198, %c0_199] : memref<9x8x8xf32, #tpu.memory_space<vmem>>, vector<1x8x8xf32>
    %198 = vector.shape_cast %197 : vector<1x8x8xf32> to vector<8x8xf32>
    %cst_200 = arith.constant dense<0.000000e+00> : vector<64x8xf32>
    %199 = tpu.matmul %188, %198, %cst_200 {dimension_numbers = #tpu.dot_dimension_numbers<[1], [0], [0], [1], [0, 0, 1, 1], [], []>} : vector<64x8xf32>, vector<8x8xf32>, vector<64x8xf32> -> vector<64x8xf32>
    %200 = arith.addf %196, %199 : vector<64x8xf32>
    %c5_201 = arith.constant 5 : index
    %c0_202 = arith.constant 0 : index
    %c0_203 = arith.constant 0 : index
    %201 = vector.load %arg5[%c5_201, %c0_202, %c0_203] : memref<9x8x8xf32, #tpu.memory_space<vmem>>, vector<1x8x8xf32>
    %202 = vector.shape_cast %201 : vector<1x8x8xf32> to vector<8x8xf32>
    %cst_204 = arith.constant dense<0.000000e+00> : vector<64x8xf32>
    %203 = tpu.matmul %192, %202, %cst_204 {dimension_numbers = #tpu.dot_dimension_numbers<[1], [0], [0], [1], [0, 0, 1, 1], [], []>} : vector<64x8xf32>, vector<8x8xf32>, vector<64x8xf32> -> vector<64x8xf32>
    %204 = arith.addf %200, %203 : vector<64x8xf32>
    %c24_205 = arith.constant 24 : index
    %c0_206 = arith.constant 0 : index
    %205 = vector.load %arg9[%c24_205, %c0_206] : memref<96x8xf32, #tpu.memory_space<vmem>>, vector<64x8xf32>
    %c23_207 = arith.constant 23 : index
    %c0_208 = arith.constant 0 : index
    %206 = vector.load %arg9[%c23_207, %c0_208] : memref<96x8xf32, #tpu.memory_space<vmem>>, vector<64x8xf32>
    %c25_209 = arith.constant 25 : index
    %c0_210 = arith.constant 0 : index
    %207 = vector.load %arg9[%c25_209, %c0_210] : memref<96x8xf32, #tpu.memory_space<vmem>>, vector<64x8xf32>
    %208 = arith.select %164, %205, %206 : vector<64x8xi1>, vector<64x8xf32>
    %209 = arith.select %166, %205, %207 : vector<64x8xi1>, vector<64x8xf32>
    %c6_211 = arith.constant 6 : index
    %c0_212 = arith.constant 0 : index
    %c0_213 = arith.constant 0 : index
    %210 = vector.load %arg5[%c6_211, %c0_212, %c0_213] : memref<9x8x8xf32, #tpu.memory_space<vmem>>, vector<1x8x8xf32>
    %211 = vector.shape_cast %210 : vector<1x8x8xf32> to vector<8x8xf32>
    %cst_214 = arith.constant dense<0.000000e+00> : vector<64x8xf32>
    %212 = tpu.matmul %208, %211, %cst_214 {dimension_numbers = #tpu.dot_dimension_numbers<[1], [0], [0], [1], [0, 0, 1, 1], [], []>} : vector<64x8xf32>, vector<8x8xf32>, vector<64x8xf32> -> vector<64x8xf32>
    %213 = arith.addf %204, %212 : vector<64x8xf32>
    %c7_215 = arith.constant 7 : index
    %c0_216 = arith.constant 0 : index
    %c0_217 = arith.constant 0 : index
    %214 = vector.load %arg5[%c7_215, %c0_216, %c0_217] : memref<9x8x8xf32, #tpu.memory_space<vmem>>, vector<1x8x8xf32>
    %215 = vector.shape_cast %214 : vector<1x8x8xf32> to vector<8x8xf32>
    %cst_218 = arith.constant dense<0.000000e+00> : vector<64x8xf32>
    %216 = tpu.matmul %205, %215, %cst_218 {dimension_numbers = #tpu.dot_dimension_numbers<[1], [0], [0], [1], [0, 0, 1, 1], [], []>} : vector<64x8xf32>, vector<8x8xf32>, vector<64x8xf32> -> vector<64x8xf32>
    %217 = arith.addf %213, %216 : vector<64x8xf32>
    %c8_219 = arith.constant 8 : index
    %c0_220 = arith.constant 0 : index
    %c0_221 = arith.constant 0 : index
    %218 = vector.load %arg5[%c8_219, %c0_220, %c0_221] : memref<9x8x8xf32, #tpu.memory_space<vmem>>, vector<1x8x8xf32>
    %219 = vector.shape_cast %218 : vector<1x8x8xf32> to vector<8x8xf32>
    %cst_222 = arith.constant dense<0.000000e+00> : vector<64x8xf32>
    %220 = tpu.matmul %209, %219, %cst_222 {dimension_numbers = #tpu.dot_dimension_numbers<[1], [0], [0], [1], [0, 0, 1, 1], [], []>} : vector<64x8xf32>, vector<8x8xf32>, vector<64x8xf32> -> vector<64x8xf32>
    %221 = arith.addf %217, %220 : vector<64x8xf32>
    %cst_223 = arith.constant 0.000000e+00 : f32
    %222 = vector.broadcast %cst_223 : f32 to vector<64x8xf32>
    %223 = arith.maximumf %221, %222 : vector<64x8xf32>
    %c0_224 = arith.constant 0 : index
    %c0_225 = arith.constant 0 : index
    %c0_226 = arith.constant 0 : index
    %224 = vector.load %arg7[%c0_224, %c0_225, %c0_226] : memref<1x64x8xf32, #tpu.memory_space<vmem>>, vector<1x64x8xf32>
    %225 = vector.shape_cast %224 : vector<1x64x8xf32> to vector<64x8xf32>
    %226 = vector.shape_cast %223 : vector<64x8xf32> to vector<1x64x8xf32>
    tpu.vector_store %arg7[%c0_224, %c0_225, %c0_226], %226 {strides = array<i32>} : memref<1x64x8xf32, #tpu.memory_space<vmem>>, vector<1x64x8xf32>,
    return
  }
  func.func @transform_0(%arg0: i32) -> (i32, i32, i32, i32, i32) {
    %c0_i32 = arith.constant 0 : i32
    %c0_i32_0 = arith.constant 0 : i32
    %c0_i32_1 = arith.constant 0 : i32
    %c0_i32_2 = arith.constant 0 : i32
    %c0_i32_3 = arith.constant 0 : i32
    return %arg0, %c0_i32, %c0_i32_0, %c0_i32_1, %c0_i32_2 : i32, i32, i32, i32, i32
  }
  func.func @transform_1(%arg0: i32) -> (i32, i32) {
    %c0_i32 = arith.constant 0 : i32
    %c0_i32_0 = arith.constant 0 : i32
    %c0_i32_1 = arith.constant 0 : i32
    return %c0_i32, %c0_i32_0 : i32, i32
  }
  func.func @transform_2(%arg0: i32) -> (i32, i32, i32) {
    %c0_i32 = arith.constant 0 : i32
    %c0_i32_0 = arith.constant 0 : i32
    %c0_i32_1 = arith.constant 0 : i32
    %c0_i32_2 = arith.constant 0 : i32
    return %c0_i32, %c0_i32_0, %c0_i32_1 : i32, i32, i32
  }
  func.func @transform_3(%arg0: i32) -> (i32, i32) {
    %c0_i32 = arith.constant 0 : i32
    %c0_i32_0 = arith.constant 0 : i32
    %c0_i32_1 = arith.constant 0 : i32
    return %c0_i32, %c0_i32_0 : i32, i32
  }
  func.func @transform_4(%arg0: i32) -> (i32, i32, i32) {
    %c0_i32 = arith.constant 0 : i32
    %c0_i32_0 = arith.constant 0 : i32
    %c0_i32_1 = arith.constant 0 : i32
    %c0_i32_2 = arith.constant 0 : i32
    return %c0_i32, %c0_i32_0, %c0_i32_1 : i32, i32, i32
  }
  func.func @transform_5(%arg0: i32) -> (i32, i32) {
    %c0_i32 = arith.constant 0 : i32
    %c0_i32_0 = arith.constant 0 : i32
    %c0_i32_1 = arith.constant 0 : i32
    return %c0_i32, %c0_i32_0 : i32, i32
  }
  func.func @transform_6(%arg0: i32) -> (i32, i32, i32) {
    %c0_i32 = arith.constant 0 : i32
    %c0_i32_0 = arith.constant 0 : i32
    %c0_i32_1 = arith.constant 0 : i32
    return %arg0, %c0_i32, %c0_i32_0 : i32, i32, i32
  }
}

</mosaic_0001>

<llo_original>
// kernel: tpu_custom_call.1
$region0: #{tpu_custom_call.1}
  #allocation0 [shape = 'u32[]', space=smem, size = 0x4, offset = 0x4, fixed_abs, tag = 'smem constant byte address 0x4 - core index']
  #allocation1 [shape = 'u32[144,128]{1,0:T(1,128)}', space=vmem, size = 0x12000, scoped, tag = 'internal scratch']
  #allocation2 [shape = 'f32[96,4]{1,0:T(8,128)}', space=vmem, size = 0xc000, scoped, tag = 'scratch operand']
  #allocation3 [shape = 'f32[96,8]{1,0:T(8,128)}', space=vmem, size = 0xc000, scoped, tag = 'scratch operand']
  %s0 = inlined_call_operand.vmem [shape: f32[2,8,2,8,8], index: 0, kind: input, shape index: {}]
  %s1 = inlined_call_operand.vmem [shape: s32[64,1], index: 1, kind: input, shape index: {}]
  %s2 = inlined_call_operand.vmem [shape: f32[9,4,8], index: 2, kind: input, shape index: {}]
  %s3 = inlined_call_operand.vmem [shape: f32[1,8], index: 3, kind: input, shape index: {}]
  %s4 = inlined_call_operand.vmem [shape: f32[9,8,8], index: 4, kind: input, shape index: {}]
  %s5 = inlined_call_operand.vmem [shape: f32[1,8], index: 5, kind: input, shape index: {}]
  %s6 = inlined_call_operand.vmem [shape: f32[2,64,8], index: 6, kind: output, shape index: {}]
  %s7 = sld [smem:[#allocation0]]
  $region57: #{tpu_custom_call.1} parent=0
    _
  %s9 = ssub.s32 1, %s7
  %s10 = scalar_select 0, %s9, %s7
  loop: start=0, step=1, limit=4
  $region2: #{tpu_custom_call.1} parent=0 // loop_pre_header
    _
  $region3: #{tpu_custom_call.1} parent=0 // loop_header
    %s12 = sphi 0, %s16
    %p13 = scmp.ge.s32.totalorder %s12, 4
    %s22 = sphi 0, %s24
    %s25 = sphi 0, %s22
    %s26 = sphi 0, %s25
    %s42 = sphi 0, %s26
    %s46 = sphi 0, %s46
    %s48 = sphi 0, %s46
    %s49 = sphi 0, %s48
    %s63 = sphi 0, %s49
    %s67 = sphi 0, %s67
    %s69 = sphi 0, %s67
    %s70 = sphi 0, %s69
    %s84 = sphi 0, %s70
    %s88 = sphi 0, %s88
    %s90 = sphi 0, %s88
    %s91 = sphi 0, %s90
    %s105 = sphi 0, %s91
    %s109 = sphi 0, %s109
    %s111 = sphi 0, %s109
    %s112 = sphi 0, %s111
    %s126 = sphi 0, %s112
    %s130 = sphi 0, %s130
    %s132 = sphi 0, %s130
    %s133 = sphi 0, %s132
    %s147 = sphi 0, %s133
    %s153 = sphi 0, %s155
    %s156 = sphi 0, %s153
    %s157 = sphi 0, %s156
    %s173 = sphi 0, %s157
  $region4: #{tpu_custom_call.1} parent=0 // loop_header_branch
    %15 = sbr.rel (%p13) target = $region8
  $region5: #{tpu_custom_call.1} parent=0 // loop_body
    %s17 = ssub.s32 %s12, 1
    %s18 = ssub.s32 %s12, 2
    %s19 = sadd.s32 %s12, 1
    %s20 = ssub.s32 %s12, %s19
    %p21 = scmp.eq.s32.totalorder %s20, 0
    %s23 = sadd.s32 %s22, 1
    %s24 = scalar_select %p21, %s22, %s23
    %p27 = pneg %p21
    %p28 = scmp.eq.s32.totalorder %s12, 1
    %p29 = por %p27, %p28
    %p30 = scmp.ne.s32.totalorder %s22, %s25
    %p31 = scmp.eq.s32.totalorder %s12, 0
    %p32 = por %p30, %p31
    %p33 = scmp.ne.s32.totalorder %s22, %s25
    %p34 = scmp.eq.s32.totalorder %s17, 1
    %p35 = por %p33, %p34
    %p36 = scmp.ne.s32.totalorder %s25, %s26
    %p37 = scmp.eq.s32.totalorder %s17, 0
    %p38 = por %p36, %p37
    %p39 = scmp.ne.s32.totalorder %s25, %s26
    %p40 = scmp.eq.s32.totalorder %s18, 1
    %p41 = por %p39, %p40
    %p43 = scmp.ne.s32.totalorder %s26, %s42
    %p44 = scmp.eq.s32.totalorder %s18, 0
    %p45 = por %p43, %p44
    %s47 = sadd.s32 %s46, 1
    %p50 = scmp.eq.s32.totalorder %s12, 1
    %p51 = scmp.ne.s32.totalorder %s46, %s48
    %p52 = scmp.eq.s32.totalorder %s12, 0
    %p53 = por %p51, %p52
    %p54 = scmp.ne.s32.totalorder %s46, %s48
    %p55 = scmp.eq.s32.totalorder %s17, 1
    %p56 = por %p54, %p55
    %p57 = scmp.ne.s32.totalorder %s48, %s49
    %p58 = scmp.eq.s32.totalorder %s17, 0
    %p59 = por %p57, %p58
    %p60 = scmp.ne.s32.totalorder %s48, %s49
    %p61 = scmp.eq.s32.totalorder %s18, 1
    %p62 = por %p60, %p61
    %p64 = scmp.ne.s32.totalorder %s49, %s63
    %p65 = scmp.eq.s32.totalorder %s18, 0
    %p66 = por %p64, %p65
    %s68 = sadd.s32 %s67, 1
    %p71 = scmp.eq.s32.totalorder %s12, 1
    %p72 = scmp.ne.s32.totalorder %s67, %s69
    %p73 = scmp.eq.s32.totalorder %s12, 0
    %p74 = por %p72, %p73
    %p75 = scmp.ne.s32.totalorder %s67, %s69
    %p76 = scmp.eq.s32.totalorder %s17, 1
    %p77 = por %p75, %p76
    %p78 = scmp.ne.s32.totalorder %s69, %s70
    %p79 = scmp.eq.s32.totalorder %s17, 0
    %p80 = por %p78, %p79
    %p81 = scmp.ne.s32.totalorder %s69, %s70
    %p82 = scmp.eq.s32.totalorder %s18, 1
    %p83 = por %p81, %p82
    %p85 = scmp.ne.s32.totalorder %s70, %s84
    %p86 = scmp.eq.s32.totalorder %s18, 0
    %p87 = por %p85, %p86
    %s89 = sadd.s32 %s88, 1
    %p92 = scmp.eq.s32.totalorder %s12, 1
    %p93 = scmp.ne.s32.totalorder %s88, %s90
    %p94 = scmp.eq.s32.totalorder %s12, 0
    %p95 = por %p93, %p94
    %p96 = scmp.ne.s32.totalorder %s88, %s90
    %p97 = scmp.eq.s32.totalorder %s17, 1
    %p98 = por %p96, %p97
    %p99 = scmp.ne.s32.totalorder %s90, %s91
    %p100 = scmp.eq.s32.totalorder %s17, 0
    %p101 = por %p99, %p100
    %p102 = scmp.ne.s32.totalorder %s90, %s91
    %p103 = scmp.eq.s32.totalorder %s18, 1
    %p104 = por %p102, %p103
    %p106 = scmp.ne.s32.totalorder %s91, %s105
    %p107 = scmp.eq.s32.totalorder %s18, 0
    %p108 = por %p106, %p107
    %s110 = sadd.s32 %s109, 1
    %p113 = scmp.eq.s32.totalorder %s12, 1
    %p114 = scmp.ne.s32.totalorder %s109, %s111
    %p115 = scmp.eq.s32.totalorder %s12, 0
    %p116 = por %p114, %p115
    %p117 = scmp.ne.s32.totalorder %s109, %s111
    %p118 = scmp.eq.s32.totalorder %s17, 1
    %p119 = por %p117, %p118
    %p120 = scmp.ne.s32.totalorder %s111, %s112
    %p121 = scmp.eq.s32.totalorder %s17, 0
    %p122 = por %p120, %p121
    %p123 = scmp.ne.s32.totalorder %s111, %s112
    %p124 = scmp.eq.s32.totalorder %s18, 1
    %p125 = por %p123, %p124
    %p127 = scmp.ne.s32.totalorder %s112, %s126
    %p128 = scmp.eq.s32.totalorder %s18, 0
    %p129 = por %p127, %p128
    %s131 = sadd.s32 %s130, 1
    %p134 = scmp.eq.s32.totalorder %s12, 1
    %p135 = scmp.ne.s32.totalorder %s130, %s132
    %p136 = scmp.eq.s32.totalorder %s12, 0
    %p137 = por %p135, %p136
    %p138 = scmp.ne.s32.totalorder %s130, %s132
    %p139 = scmp.eq.s32.totalorder %s17, 1
    %p140 = por %p138, %p139
    %p141 = scmp.ne.s32.totalorder %s132, %s133
    %p142 = scmp.eq.s32.totalorder %s17, 0
    %p143 = por %p141, %p142
    %p144 = scmp.ne.s32.totalorder %s132, %s133
    %p145 = scmp.eq.s32.totalorder %s18, 1
    %p146 = por %p144, %p145
    %p148 = scmp.ne.s32.totalorder %s133, %s147
    %p149 = scmp.eq.s32.totalorder %s18, 0
    %p150 = por %p148, %p149
    %s151 = ssub.s32 %s12, %s19
    %p152 = scmp.eq.s32.totalorder %s151, 0
    %s154 = sadd.s32 %s153, 1
    %s155 = scalar_select %p152, %s153, %s154
    %p158 = pneg %p152
    %p159 = scmp.eq.s32.totalorder %s12, 1
    %p160 = por %p158, %p159
    %p161 = scmp.ne.s32.totalorder %s153, %s156
    %p162 = scmp.eq.s32.totalorder %s12, 0
    %p163 = por %p161, %p162
    %p164 = scmp.ne.s32.totalorder %s153, %s156
    %p165 = scmp.eq.s32.totalorder %s17, 1
    %p166 = por %p164, %p165
    %p167 = scmp.ne.s32.totalorder %s156, %s157
    %p168 = scmp.eq.s32.totalorder %s17, 0
    %p169 = por %p167, %p168
    %p170 = scmp.ne.s32.totalorder %s156, %s157
    %p171 = scmp.eq.s32.totalorder %s18, 1
    %p172 = por %p170, %p171
    %p174 = scmp.ne.s32.totalorder %s157, %s173
    %p175 = scmp.eq.s32.totalorder %s18, 0
    %p176 = por %p174, %p175
    %p177 = scmp.le.s32.totalorder 1, %s12
    %p178 = scmp.lt.s32.totalorder %s12, 3
    %p179 = pnand %p177, %p178
    %p180 = pneg %p179
    // Predicated region
    $region9: #{tpu_custom_call.1} parent=5 // pred_check
      _
    $region10: #{tpu_custom_call.1} parent=5 // pred_check_branch
      %182 = sbr.rel (%p179) target = $region12
    $region11: #{tpu_custom_call.1} parent=5 // pred_region
      %s183 = ssub.s32 %s12, 1
      // Predicated region
      $region13: #{tpu_custom_call.1} parent=11 // pred_check
        %p184 = pneg %p59
      $region14: #{tpu_custom_call.1} parent=11 // pred_check_branch
        %186 = sbr.rel (%p184) target = $region16
      $region15: #{tpu_custom_call.1} parent=11 // pred_region
        _
      $region16: #{tpu_custom_call.1} parent=11 // pred_fallthru
        _
      // Predicated region
      $region17: #{tpu_custom_call.1} parent=11 // pred_check
        %p187 = pneg %p80
      $region18: #{tpu_custom_call.1} parent=11 // pred_check_branch
        %189 = sbr.rel (%p187) target = $region20
      $region19: #{tpu_custom_call.1} parent=11 // pred_region
        _
      $region20: #{tpu_custom_call.1} parent=11 // pred_fallthru
        _
      // Predicated region
      $region21: #{tpu_custom_call.1} parent=11 // pred_check
        %p190 = pneg %p101
      $region22: #{tpu_custom_call.1} parent=11 // pred_check_branch
        %192 = sbr.rel (%p190) target = $region24
      $region23: #{tpu_custom_call.1} parent=11 // pred_region
        _
      $region24: #{tpu_custom_call.1} parent=11 // pred_fallthru
        _
      // Predicated region
      $region25: #{tpu_custom_call.1} parent=11 // pred_check
        %p193 = pneg %p122
      $region26: #{tpu_custom_call.1} parent=11 // pred_check_branch
        %195 = sbr.rel (%p193) target = $region28
      $region27: #{tpu_custom_call.1} parent=11 // pred_region
        _
      $region28: #{tpu_custom_call.1} parent=11 // pred_fallthru
        _
      // Predicated region
      $region29: #{tpu_custom_call.1} parent=11 // pred_check
        %p196 = pneg %p143
      $region30: #{tpu_custom_call.1} parent=11 // pred_check_branch
        %198 = sbr.rel (%p196) target = $region32
      $region31: #{tpu_custom_call.1} parent=11 // pred_region
        _
      $region32: #{tpu_custom_call.1} parent=11 // pred_fallthru
        _
    $region12: #{tpu_custom_call.1} parent=5 // pred_fallthru
      _
    %p199 = scmp.lt.s32.totalorder %s12, 2
    // Predicated region
    $region33: #{tpu_custom_call.1} parent=5 // pred_check
      %p200 = pneg %p199
    $region34: #{tpu_custom_call.1} parent=5 // pred_check_branch
      %202 = sbr.rel (%p200) target = $region36
    $region35: #{tpu_custom_call.1} parent=5 // pred_region
      // Predicated region
      $region37: #{tpu_custom_call.1} parent=35 // pred_check
        %p203 = pneg %p32
      $region38: #{tpu_custom_call.1} parent=35 // pred_check_branch
        %205 = sbr.rel (%p203) target = $region40
      $region39: #{tpu_custom_call.1} parent=35 // pred_region
        %p206 = scmp.lt.s32.totalorder %s12, 1
        %s207 = scalar_select %p206, %s12, 1
        %s208 = smul.addr %s207, 16
        %s209 = smul.addr %s208, 8
        %s210 = scalar_lea.vmem %s0, %s209
      $region40: #{tpu_custom_call.1} parent=35 // pred_fallthru
        _
    $region36: #{tpu_custom_call.1} parent=5 // pred_fallthru
      _
    %p211 = scmp.le.s32.totalorder 1, %s12
    %p212 = scmp.lt.s32.totalorder %s12, 3
    %p213 = pnand %p211, %p212
    %p214 = pneg %p213
    // Predicated region
    $region41: #{tpu_custom_call.1} parent=5 // pred_check
      _
    $region42: #{tpu_custom_call.1} parent=5 // pred_check_branch
      %216 = sbr.rel (%p213) target = $region44
    $region43: #{tpu_custom_call.1} parent=5 // pred_region
      %s217 = ssub.s32 %s12, 1
      %p218 = scmp.lt.s32.totalorder %s17, 1
      %s219 = scalar_select %p218, %s17, 1
      %s220 = smul.addr %s219, 16
      %s221 = smul.addr %s220, 8
      %s222 = scalar_lea.vmem %s0, %s221
      %p223 = pneg %p38
      %p224 = pneg %p35
      %p225 = pneg %p59
      %p226 = pneg %p56
      %p227 = pneg %p80
      %p228 = pneg %p77
      %p229 = pneg %p101
      %p230 = pneg %p98
      %p231 = pneg %p122
      %p232 = pneg %p119
      %p233 = pneg %p143
      %p234 = pneg %p140
      %p235 = pneg %p169
      %p236 = pneg %p166
      %p237 = scmp.lt.s32.totalorder %s17, 1
      %s238 = scalar_select %p237, %s17, 1
      %s239 = smul.addr %s238, 8
      %s240 = smul.addr %s239, 8
      %s241 = scalar_lea.vmem %s6, %s240
      %p242 = scmp.lt.s32.totalorder %s17, 1
      %s243 = scalar_select %p242, %s17, 1
      %s244 = smul.addr %s243, 16
      %s245 = smul.addr %s244, 8
      %s246 = scalar_lea.vmem %s0, %s245
      %p247 = scmp.lt.s32.totalorder %s17, 1
      %s248 = scalar_select %p247, %s17, 1
      %s249 = smul.addr %s248, 8
      %s250 = smul.addr %s249, 8
      %s251 = scalar_lea.vmem %s6, %s250
      %vm252 = vcmask 31744
      %253 = vst.msk [vmem:[#allocation2] sm:$0xff] %vm252, 0.0
      %254 = vst.msk [vmem:[#allocation2 + $0x8] sm:$0xff] %vm252, 0.0
      %255 = vst.msk [vmem:[#allocation2 + $0x10] sm:$0xff] %vm252, 0.0
      %256 = vst.msk [vmem:[#allocation2 + $0x18] sm:$0xff] %vm252, 0.0
      %257 = vst.msk [vmem:[#allocation2 + $0x20] sm:$0xff] %vm252, 0.0
      %258 = vst.msk [vmem:[#allocation2 + $0x28] sm:$0xff] %vm252, 0.0
      %259 = vst.msk [vmem:[#allocation2 + $0x30] sm:$0xff] %vm252, 0.0
      %260 = vst.msk [vmem:[#allocation2 + $0x38] sm:$0xff] %vm252, 0.0
      %261 = vst.msk [vmem:[#allocation2 + $0x40] sm:$0xff] %vm252, 0.0
      %262 = vst.msk [vmem:[#allocation2 + $0x48] sm:$0xff] %vm252, 0.0
      %263 = vst.msk [vmem:[#allocation2 + $0x50] sm:$0xff] %vm252, 0.0
      %264 = vst.msk [vmem:[#allocation2 + $0x58] sm:$0xff] %vm252, 0.0
      %v265 = vld [vmem:[%s246] sm:$0xff]
      %s266 = scalar_lea.vmem %s246, 8
      %v267 = vld [vmem:[%s266] sm:$0xff]
      %v268 = vmax.f32 %v265, %v267
      %270 = vrot.lane.b32.xlu0 %v268, 124
      %v271 = vpop.permute.xlu0 %270
      %v273 = vmax.f32 %v268, %v271
      %274 = vst.msk [vmem:[#allocation2 + $0x10] sm:$0xff] %vm252, %v273
      %275 = vst.msk [vmem:[#allocation2 + $0x8] sm:$0xff] %vm252, %v273
      %s276 = scalar_lea.vmem %s246, 16
      %v277 = vld [vmem:[%s276] sm:$0xff]
      %s278 = scalar_lea.vmem %s246, 24
      %v279 = vld [vmem:[%s278] sm:$0xff]
      %v280 = vmax.f32 %v277, %v279
      %282 = vrot.lane.b32.xlu0 %v280, 124
      %v283 = vpop.permute.xlu0 %282
      %v285 = vmax.f32 %v280, %v283
      %286 = vst.msk [vmem:[#allocation2 + $0x18] sm:$0xff] %vm252, %v285
      %s287 = scalar_lea.vmem %s246, 32
      %v288 = vld [vmem:[%s287] sm:$0xff]
      %s289 = scalar_lea.vmem %s246, 40
      %v290 = vld [vmem:[%s289] sm:$0xff]
      %v291 = vmax.f32 %v288, %v290
      %293 = vrot.lane.b32.xlu0 %v291, 124
      %v294 = vpop.permute.xlu0 %293
      %v296 = vmax.f32 %v291, %v294
      %297 = vst.msk [vmem:[#allocation2 + $0x20] sm:$0xff] %vm252, %v296
      %s298 = scalar_lea.vmem %s246, 48
      %v299 = vld [vmem:[%s298] sm:$0xff]
      %s300 = scalar_lea.vmem %s246, 56
      %v301 = vld [vmem:[%s300] sm:$0xff]
      %v302 = vmax.f32 %v299, %v301
      %304 = vrot.lane.b32.xlu0 %v302, 124
      %v305 = vpop.permute.xlu0 %304
      %v307 = vmax.f32 %v302, %v305
      %308 = vst.msk [vmem:[#allocation2 + $0x28] sm:$0xff] %vm252, %v307
      %s309 = scalar_lea.vmem %s246, 64
      %v310 = vld [vmem:[%s309] sm:$0xff]
      %s311 = scalar_lea.vmem %s246, 72
      %v312 = vld [vmem:[%s311] sm:$0xff]
      %v313 = vmax.f32 %v310, %v312
      %315 = vrot.lane.b32.xlu0 %v313, 124
      %v316 = vpop.permute.xlu0 %315
      %v318 = vmax.f32 %v313, %v316
      %319 = vst.msk [vmem:[#allocation2 + $0x30] sm:$0xff] %vm252, %v318
      %s320 = scalar_lea.vmem %s246, 80
      %v321 = vld [vmem:[%s320] sm:$0xff]
      %s322 = scalar_lea.vmem %s246, 88
      %v323 = vld [vmem:[%s322] sm:$0xff]
      %v324 = vmax.f32 %v321, %v323
      %326 = vrot.lane.b32.xlu0 %v324, 124
      %v327 = vpop.permute.xlu0 %326
      %v329 = vmax.f32 %v324, %v327
      %330 = vst.msk [vmem:[#allocation2 + $0x38] sm:$0xff] %vm252, %v329
      %s331 = scalar_lea.vmem %s246, 96
      %v332 = vld [vmem:[%s331] sm:$0xff]
      %s333 = scalar_lea.vmem %s246, 104
      %v334 = vld [vmem:[%s333] sm:$0xff]
      %v335 = vmax.f32 %v332, %v334
      %337 = vrot.lane.b32.xlu0 %v335, 124
      %v338 = vpop.permute.xlu0 %337
      %v340 = vmax.f32 %v335, %v338
      %341 = vst.msk [vmem:[#allocation2 + $0x40] sm:$0xff] %vm252, %v340
      %s342 = scalar_lea.vmem %s246, 112
      %v343 = vld [vmem:[%s342] sm:$0xff]
      %s344 = scalar_lea.vmem %s246, 120
      %v345 = vld [vmem:[%s344] sm:$0xff]
      %v346 = vmax.f32 %v343, %v345
      %348 = vrot.lane.b32.xlu0 %v346, 124
      %v349 = vpop.permute.xlu0 %348
      %v351 = vmax.f32 %v346, %v349
      %352 = vst.msk [vmem:[#allocation2 + $0x48] sm:$0xff] %vm252, %v351
      %353 = vst.msk [vmem:[#allocation2 + $0x50] sm:$0xff] %vm252, %v351
      %v354 = vld [vmem:[%s1] sm:$0xff]
      %v355 = vld [vmem:[%s1 + $0x8] sm:$0xff]
      %v356 = vld [vmem:[%s1 + $0x10] sm:$0xff]
      %v357 = vld [vmem:[%s1 + $0x18] sm:$0xff]
      %v358 = vld [vmem:[%s1 + $0x20] sm:$0xff]
      %v359 = vld [vmem:[%s1 + $0x28] sm:$0xff]
      %v360 = vld [vmem:[%s1 + $0x30] sm:$0xff]
      %v361 = vld [vmem:[%s1 + $0x38] sm:$0xff]
      %362 = vset.pattern.permute.xlu0 0
      %363 = vperm.xlu0 %362, %v354
      %v364 = vpop.permute.xlu0 %363
      %365 = vset.pattern.permute.xlu0 0
      %366 = vperm.xlu0 %365, %v355
      %v367 = vpop.permute.xlu0 %366
      %368 = vset.pattern.permute.xlu0 0
      %369 = vperm.xlu0 %368, %v356
      %v370 = vpop.permute.xlu0 %369
      %371 = vset.pattern.permute.xlu0 0
      %372 = vperm.xlu0 %371, %v357
      %v373 = vpop.permute.xlu0 %372
      %374 = vset.pattern.permute.xlu0 0
      %375 = vperm.xlu0 %374, %v358
      %v376 = vpop.permute.xlu0 %375
      %377 = vset.pattern.permute.xlu0 0
      %378 = vperm.xlu0 %377, %v359
      %v379 = vpop.permute.xlu0 %378
      %380 = vset.pattern.permute.xlu0 0
      %381 = vperm.xlu0 %380, %v360
      %v382 = vpop.permute.xlu0 %381
      %383 = vset.pattern.permute.xlu0 0
      %384 = vperm.xlu0 %383, %v361
      %v385 = vpop.permute.xlu0 %384
      %vm386 = vcmp.eq.s32.totalorder %v364, 0
      %vm387 = vcmp.eq.s32.totalorder %v367, 0
      %vm388 = vcmp.eq.s32.totalorder %v370, 0
      %vm389 = vcmp.eq.s32.totalorder %v373, 0
      %vm390 = vcmp.eq.s32.totalorder %v376, 0
      %vm391 = vcmp.eq.s32.totalorder %v379, 0
      %vm392 = vcmp.eq.s32.totalorder %v382, 0
      %vm393 = vcmp.eq.s32.totalorder %v385, 0
      %vm394 = vcmp.eq.s32.totalorder %v364, 7
      %vm395 = vcmp.eq.s32.totalorder %v367, 7
      %vm396 = vcmp.eq.s32.totalorder %v370, 7
      %vm397 = vcmp.eq.s32.totalorder %v373, 7
      %vm398 = vcmp.eq.s32.totalorder %v376, 7
      %vm399 = vcmp.eq.s32.totalorder %v379, 7
      %vm400 = vcmp.eq.s32.totalorder %v382, 7
      %vm401 = vcmp.eq.s32.totalorder %v385, 7
      %v402 = vld [vmem:[%s3] sm:$0x1]
      %v404 = vlaneseq
      %v405 = vshrl.u32 %v404, 7
      %v406 = vsub.s32 0, %v405
      %v407 = vrot.slane %v402, %v406
      %v409 = vadd.f32 %v407, 0.0
      %v410 = vld [vmem:[#allocation2 + $0x8] sm:$0xff]
      %v411 = vld [vmem:[#allocation2 + $0x10] sm:$0xff]
      %v412 = vld [vmem:[#allocation2 + $0x18] sm:$0xff]
      %v413 = vld [vmem:[#allocation2 + $0x20] sm:$0xff]
      %v414 = vld [vmem:[#allocation2 + $0x28] sm:$0xff]
      %v415 = vld [vmem:[#allocation2 + $0x30] sm:$0xff]
      %v416 = vld [vmem:[#allocation2 + $0x38] sm:$0xff]
      %v417 = vld [vmem:[#allocation2 + $0x40] sm:$0xff]
      %v418 = vld [vmem:[#allocation2 + $0x7] sm:$0xff]
      %v419 = vld [vmem:[#allocation2 + $0xf] sm:$0xff]
      %v420 = vld [vmem:[#allocation2 + $0x17] sm:$0xff]
      %v421 = vld [vmem:[#allocation2 + $0x1f] sm:$0xff]
      %v422 = vld [vmem:[#allocation2 + $0x27] sm:$0xff]
      %v423 = vld [vmem:[#allocation2 + $0x2f] sm:$0xff]
      %v424 = vld [vmem:[#allocation2 + $0x37] sm:$0xff]
      %v425 = vld [vmem:[#allocation2 + $0x3f] sm:$0xff]
      %v426 = vld [vmem:[#allocation2 + $0x9] sm:$0xff]
      %v427 = vld [vmem:[#allocation2 + $0x11] sm:$0xff]
      %v428 = vld [vmem:[#allocation2 + $0x19] sm:$0xff]
      %v429 = vld [vmem:[#allocation2 + $0x21] sm:$0xff]
      %v430 = vld [vmem:[#allocation2 + $0x29] sm:$0xff]
      %v431 = vld [vmem:[#allocation2 + $0x31] sm:$0xff]
      %v432 = vld [vmem:[#allocation2 + $0x39] sm:$0xff]
      %v433 = vld [vmem:[#allocation2 + $0x41] sm:$0xff]
      %v434 = vsel %vm386, %v410, %v418
      %v435 = vsel %vm387, %v411, %v419
      %v436 = vsel %vm388, %v412, %v420
      %v437 = vsel %vm389, %v413, %v421
      %v438 = vsel %vm390, %v414, %v422
      %v439 = vsel %vm391, %v415, %v423
      %v440 = vsel %vm392, %v416, %v424
      %v441 = vsel %vm393, %v417, %v425
      %v442 = vsel %vm394, %v410, %v426
      %v443 = vsel %vm395, %v411, %v427
      %v444 = vsel %vm396, %v412, %v428
      %v445 = vsel %vm397, %v413, %v429
      %v446 = vsel %vm398, %v414, %v430
      %v447 = vsel %vm399, %v415, %v431
      %v448 = vsel %vm400, %v416, %v432
      %v449 = vsel %vm401, %v417, %v433
      %v450 = vld [vmem:[%s2] sm:$0xf]
      %v452 = vsel %vm252, %v434, 0
      %v455 = vsel %vm252, %v435, 0
      %v458 = vsel %vm252, %v436, 0
      %v461 = vsel %vm252, %v437, 0
      %v464 = vsel %vm252, %v438, 0
      %v467 = vsel %vm252, %v439, 0
      %v470 = vsel %vm252, %v440, 0
      %v473 = vsel %vm252, %v441, 0
      %vm475 = vcmask 1043456
      %v477 = vsel %vm475, %v450, 0
      %479 = vmatprep.subr.mxu0 0.0
      %480 = vmatpush1.msra.mxu0 %v477
      %481 = vmatprep.subr.mxu0 0.0
      %482 = vmatpush1.msra.mxu0 0.0
      %483 = vmatprep.subr.mxu0 0.0
      %484 = vmatpush1.msra.mxu0 0.0
      %485 = vmatprep.subr.mxu0 0.0
      %486 = vmatpush1.msra.mxu0 0.0
      %487 = vmatprep.subr.mxu0 0.0
      %488 = vmatpush1.msra.mxu0 0.0
      %489 = vmatprep.subr.mxu0 0.0
      %490 = vmatpush1.msra.mxu0 0.0
      %491 = vmatprep.subr.mxu0 0.0
      %492 = vmatpush1.msra.mxu0 0.0
      %493 = vmatprep.subr.mxu0 0.0
      %494 = vmatpush1.msra.mxu0 0.0
      %495 = vmatprep.subr.mxu0 0.0
      %496 = vmatpush1.msra.mxu0 0.0
      %497 = vmatprep.subr.mxu0 0.0
      %498 = vmatpush1.msra.mxu0 0.0
      %499 = vmatprep.subr.mxu0 0.0
      %500 = vmatpush1.msra.mxu0 0.0
      %501 = vmatprep.subr.mxu0 0.0
      %502 = vmatpush1.msra.mxu0 0.0
      %503 = vmatprep.subr.mxu0 0.0
      %504 = vmatpush1.msra.mxu0 0.0
      %505 = vmatprep.subr.mxu0 0.0
      %506 = vmatpush1.msra.mxu0 0.0
      %507 = vmatprep.subr.mxu0 0.0
      %508 = vmatpush1.msra.mxu0 0.0
      %509 = vmatprep.subr.mxu0 0.0
      %510 = vmatpush1.msra.mxu0 0.0
      %511 = vmatprep.subr.mxu0 0.0
      %512 = vmatpush1.msra.mxu0 0.0
      %513 = vmatprep.subr.mxu0 0.0
      %514 = vmatpush1.msra.mxu0 0.0
      %515 = vmatprep.subr.mxu0 0.0
      %516 = vmatpush1.msra.mxu0 0.0
      %517 = vmatprep.subr.mxu0 0.0
      %518 = vmatpush1.msra.mxu0 0.0
      %519 = vmatprep.subr.mxu0 0.0
      %520 = vmatpush1.msra.mxu0 0.0
      %521 = vmatprep.subr.mxu0 0.0
      %522 = vmatpush1.msra.mxu0 0.0
      %523 = vmatprep.subr.mxu0 0.0
      %524 = vmatpush1.msra.mxu0 0.0
      %525 = vmatprep.subr.mxu0 0.0
      %526 = vmatpush1.msra.mxu0 0.0
      %527 = vmatprep.subr.mxu0 0.0
      %528 = vmatpush1.msra.mxu0 0.0
      %529 = vmatprep.subr.mxu0 0.0
      %530 = vmatpush1.msra.mxu0 0.0
      %531 = vmatprep.subr.mxu0 0.0
      %532 = vmatpush1.msra.mxu0 0.0
      %533 = vmatprep.subr.mxu0 0.0
      %534 = vmatpush1.msra.mxu0 0.0
      %535 = vmatprep.subr.mxu0 0.0
      %536 = vmatpush1.msra.mxu0 0.0
      %537 = vmatprep.subr.mxu0 0.0
      %538 = vmatpush1.msra.mxu0 0.0
      %539 = vmatprep.subr.mxu0 0.0
      %540 = vmatpush1.msra.mxu0 0.0
      %541 = vmatprep.subr.mxu0 0.0
      %542 = vmatpush1.msra.mxu0 0.0
      %543 = vmatprep.mubr.f32.mxu0 0.0
      %544 = vmatmul.mubr.f32.gmra.mrb[0].mxu0 %v452
      %v545 = vpop.f32.mrb[0].mxu0
      %v546 = vadd.f32 0.0, %v545
      %v547 = vpop.f32.mrb[0].mxu0
      %548 = vmatprep.mubr.f32.mxu0 0.0
      %549 = vmatmul.mubr.f32.gmra.mrb[0].mxu0 %v455
      %v550 = vpop.f32.mrb[0].mxu0
      %v551 = vadd.f32 0.0, %v550
      %v552 = vpop.f32.mrb[0].mxu0
      %553 = vmatprep.mubr.f32.mxu0 0.0
      %554 = vmatmul.mubr.f32.gmra.mrb[0].mxu0 %v458
      %v555 = vpop.f32.mrb[0].mxu0
      %v556 = vadd.f32 0.0, %v555
      %v557 = vpop.f32.mrb[0].mxu0
      %558 = vmatprep.mubr.f32.mxu0 0.0
      %559 = vmatmul.mubr.f32.gmra.mrb[0].mxu0 %v461
      %v560 = vpop.f32.mrb[0].mxu0
      %v561 = vadd.f32 0.0, %v560
      %v562 = vpop.f32.mrb[0].mxu0
      %563 = vmatprep.mubr.f32.mxu0 0.0
      %564 = vmatmul.mubr.f32.gmra.mrb[0].mxu0 %v464
      %v565 = vpop.f32.mrb[0].mxu0
      %v566 = vadd.f32 0.0, %v565
      %v567 = vpop.f32.mrb[0].mxu0
      %568 = vmatprep.mubr.f32.mxu0 0.0
      %569 = vmatmul.mubr.f32.gmra.mrb[0].mxu0 %v467
      %v570 = vpop.f32.mrb[0].mxu0
      %v571 = vadd.f32 0.0, %v570
      %v572 = vpop.f32.mrb[0].mxu0
      %573 = vmatprep.mubr.f32.mxu0 0.0
      %574 = vmatmul.mubr.f32.gmra.mrb[0].mxu0 %v470
      %v575 = vpop.f32.mrb[0].mxu0
      %v576 = vadd.f32 0.0, %v575
      %v577 = vpop.f32.mrb[0].mxu0
      %578 = vmatprep.mubr.f32.mxu0 0.0
      %579 = vmatmul.mubr.f32.gmra.mrb[0].mxu0 %v473
      %v580 = vpop.f32.mrb[0].mxu0
      %v581 = vadd.f32 0.0, %v580
      %v582 = vpop.f32.mrb[0].mxu0
      %583 = vdwg.mxu0
      %v584 = vadd.f32 %v409, %v546
      %v585 = vadd.f32 %v409, %v551
      %v586 = vadd.f32 %v409, %v556
      %v587 = vadd.f32 %v409, %v561
      %v588 = vadd.f32 %v409, %v566
      %v589 = vadd.f32 %v409, %v571
      %v590 = vadd.f32 %v409, %v576
      %v591 = vadd.f32 %v409, %v581
      %s592 = scalar_lea.vmem %s2, 4
      %v593 = vld [vmem:[%s592] sm:$0xf]
      %v595 = vsel %vm252, %v410, 0
      %v598 = vsel %vm252, %v411, 0
      %v601 = vsel %vm252, %v412, 0
      %v604 = vsel %vm252, %v413, 0
      %v607 = vsel %vm252, %v414, 0
      %v610 = vsel %vm252, %v415, 0
      %v613 = vsel %vm252, %v416, 0
      %v616 = vsel %vm252, %v417, 0
      %v619 = vsel %vm475, %v593, 0
      %621 = vmatprep.subr.mxu0 0.0
      %622 = vmatpush1.msra.mxu0 %v619
      %623 = vmatprep.subr.mxu0 0.0
      %624 = vmatpush1.msra.mxu0 0.0
      %625 = vmatprep.subr.mxu0 0.0
      %626 = vmatpush1.msra.mxu0 0.0
      %627 = vmatprep.subr.mxu0 0.0
      %628 = vmatpush1.msra.mxu0 0.0
      %629 = vmatprep.subr.mxu0 0.0
      %630 = vmatpush1.msra.mxu0 0.0
      %631 = vmatprep.subr.mxu0 0.0
      %632 = vmatpush1.msra.mxu0 0.0
      %633 = vmatprep.subr.mxu0 0.0
      %634 = vmatpush1.msra.mxu0 0.0
      %635 = vmatprep.subr.mxu0 0.0
      %636 = vmatpush1.msra.mxu0 0.0
      %637 = vmatprep.subr.mxu0 0.0
      %638 = vmatpush1.msra.mxu0 0.0
      %639 = vmatprep.subr.mxu0 0.0
      %640 = vmatpush1.msra.mxu0 0.0
      %641 = vmatprep.subr.mxu0 0.0
      %642 = vmatpush1.msra.mxu0 0.0
      %643 = vmatprep.subr.mxu0 0.0
      %644 = vmatpush1.msra.mxu0 0.0
      %645 = vmatprep.subr.mxu0 0.0
      %646 = vmatpush1.msra.mxu0 0.0
      %647 = vmatprep.subr.mxu0 0.0
      %648 = vmatpush1.msra.mxu0 0.0
      %649 = vmatprep.subr.mxu0 0.0
      %650 = vmatpush1.msra.mxu0 0.0
      %651 = vmatprep.subr.mxu0 0.0
      %652 = vmatpush1.msra.mxu0 0.0
      %653 = vmatprep.subr.mxu0 0.0
      %654 = vmatpush1.msra.mxu0 0.0
      %655 = vmatprep.subr.mxu0 0.0
      %656 = vmatpush1.msra.mxu0 0.0
      %657 = vmatprep.subr.mxu0 0.0
      %658 = vmatpush1.msra.mxu0 0.0
      %659 = vmatprep.subr.mxu0 0.0
      %660 = vmatpush1.msra.mxu0 0.0
      %661 = vmatprep.subr.mxu0 0.0
      %662 = vmatpush1.msra.mxu0 0.0
      %663 = vmatprep.subr.mxu0 0.0
      %664 = vmatpush1.msra.mxu0 0.0
      %665 = vmatprep.subr.mxu0 0.0
      %666 = vmatpush1.msra.mxu0 0.0
      %667 = vmatprep.subr.mxu0 0.0
      %668 = vmatpush1.msra.mxu0 0.0
      %669 = vmatprep.subr.mxu0 0.0
      %670 = vmatpush1.msra.mxu0 0.0
      %671 = vmatprep.subr.mxu0 0.0
      %672 = vmatpush1.msra.mxu0 0.0
      %673 = vmatprep.subr.mxu0 0.0
      %674 = vmatpush1.msra.mxu0 0.0
      %675 = vmatprep.subr.mxu0 0.0
      %676 = vmatpush1.msra.mxu0 0.0
      %677 = vmatprep.subr.mxu0 0.0
      %678 = vmatpush1.msra.mxu0 0.0
      %679 = vmatprep.subr.mxu0 0.0
      %680 = vmatpush1.msra.mxu0 0.0
      %681 = vmatprep.subr.mxu0 0.0
      %682 = vmatpush1.msra.mxu0 0.0
      %683 = vmatprep.subr.mxu0 0.0
      %684 = vmatpush1.msra.mxu0 0.0
      %685 = vmatprep.mubr.f32.mxu0 0.0
      %686 = vmatmul.mubr.f32.gmra.mrb[0].mxu0 %v595
      %v687 = vpop.f32.mrb[0].mxu0
      %v688 = vadd.f32 0.0, %v687
      %v689 = vpop.f32.mrb[0].mxu0
      %690 = vmatprep.mubr.f32.mxu0 0.0
      %691 = vmatmul.mubr.f32.gmra.mrb[0].mxu0 %v598
      %v692 = vpop.f32.mrb[0].mxu0
      %v693 = vadd.f32 0.0, %v692
      %v694 = vpop.f32.mrb[0].mxu0
      %695 = vmatprep.mubr.f32.mxu0 0.0
      %696 = vmatmul.mubr.f32.gmra.mrb[0].mxu0 %v601
      %v697 = vpop.f32.mrb[0].mxu0
      %v698 = vadd.f32 0.0, %v697
      %v699 = vpop.f32.mrb[0].mxu0
      %700 = vmatprep.mubr.f32.mxu0 0.0
      %701 = vmatmul.mubr.f32.gmra.mrb[0].mxu0 %v604
      %v702 = vpop.f32.mrb[0].mxu0
      %v703 = vadd.f32 0.0, %v702
      %v704 = vpop.f32.mrb[0].mxu0
      %705 = vmatprep.mubr.f32.mxu0 0.0
      %706 = vmatmul.mubr.f32.gmra.mrb[0].mxu0 %v607
      %v707 = vpop.f32.mrb[0].mxu0
      %v708 = vadd.f32 0.0, %v707
      %v709 = vpop.f32.mrb[0].mxu0
      %710 = vmatprep.mubr.f32.mxu0 0.0
      %711 = vmatmul.mubr.f32.gmra.mrb[0].mxu0 %v610
      %v712 = vpop.f32.mrb[0].mxu0
      %v713 = vadd.f32 0.0, %v712
      %v714 = vpop.f32.mrb[0].mxu0
      %715 = vmatprep.mubr.f32.mxu0 0.0
      %716 = vmatmul.mubr.f32.gmra.mrb[0].mxu0 %v613
      %v717 = vpop.f32.mrb[0].mxu0
      %v718 = vadd.f32 0.0, %v717
      %v719 = vpop.f32.mrb[0].mxu0
      %720 = vmatprep.mubr.f32.mxu0 0.0
      %721 = vmatmul.mubr.f32.gmra.mrb[0].mxu0 %v616
      %v722 = vpop.f32.mrb[0].mxu0
      %v723 = vadd.f32 0.0, %v722
      %v724 = vpop.f32.mrb[0].mxu0
      %725 = vdwg.mxu0
      %v726 = vadd.f32 %v584, %v688
      %v727 = vadd.f32 %v585, %v693
      %v728 = vadd.f32 %v586, %v698
      %v729 = vadd.f32 %v587, %v703
      %v730 = vadd.f32 %v588, %v708
      %v731 = vadd.f32 %v589, %v713
      %v732 = vadd.f32 %v590, %v718
      %v733 = vadd.f32 %v591, %v723
      %s734 = scalar_lea.vmem %s2, 8
      %v735 = vld [vmem:[%s734] sm:$0xf]
      %v737 = vsel %vm252, %v442, 0
      %v740 = vsel %vm252, %v443, 0
      %v743 = vsel %vm252, %v444, 0
      %v746 = vsel %vm252, %v445, 0
      %v749 = vsel %vm252, %v446, 0
      %v752 = vsel %vm252, %v447, 0
      %v755 = vsel %vm252, %v448, 0
      %v758 = vsel %vm252, %v449, 0
      %v761 = vsel %vm475, %v735, 0
      %763 = vmatprep.subr.mxu0 0.0
      %764 = vmatpush1.msra.mxu0 %v761
      %765 = vmatprep.subr.mxu0 0.0
      %766 = vmatpush1.msra.mxu0 0.0
      %767 = vmatprep.subr.mxu0 0.0
      %768 = vmatpush1.msra.mxu0 0.0
      %769 = vmatprep.subr.mxu0 0.0
      %770 = vmatpush1.msra.mxu0 0.0
      %771 = vmatprep.subr.mxu0 0.0
      %772 = vmatpush1.msra.mxu0 0.0
      %773 = vmatprep.subr.mxu0 0.0
      %774 = vmatpush1.msra.mxu0 0.0
      %775 = vmatprep.subr.mxu0 0.0
      %776 = vmatpush1.msra.mxu0 0.0
      %777 = vmatprep.subr.mxu0 0.0
      %778 = vmatpush1.msra.mxu0 0.0
      %779 = vmatprep.subr.mxu0 0.0
      %780 = vmatpush1.msra.mxu0 0.0
      %781 = vmatprep.subr.mxu0 0.0
      %782 = vmatpush1.msra.mxu0 0.0
      %783 = vmatprep.subr.mxu0 0.0
      %784 = vmatpush1.msra.mxu0 0.0
      %785 = vmatprep.subr.mxu0 0.0
      %786 = vmatpush1.msra.mxu0 0.0
      %787 = vmatprep.subr.mxu0 0.0
      %788 = vmatpush1.msra.mxu0 0.0
      %789 = vmatprep.subr.mxu0 0.0
      %790 = vmatpush1.msra.mxu0 0.0
      %791 = vmatprep.subr.mxu0 0.0
      %792 = vmatpush1.msra.mxu0 0.0
      %793 = vmatprep.subr.mxu0 0.0
      %794 = vmatpush1.msra.mxu0 0.0
      %795 = vmatprep.subr.mxu0 0.0
      %796 = vmatpush1.msra.mxu0 0.0
      %797 = vmatprep.subr.mxu0 0.0
      %798 = vmatpush1.msra.mxu0 0.0
      %799 = vmatprep.subr.mxu0 0.0
      %800 = vmatpush1.msra.mxu0 0.0
      %801 = vmatprep.subr.mxu0 0.0
      %802 = vmatpush1.msra.mxu0 0.0
      %803 = vmatprep.subr.mxu0 0.0
      %804 = vmatpush1.msra.mxu0 0.0
      %805 = vmatprep.subr.mxu0 0.0
      %806 = vmatpush1.msra.mxu0 0.0
      %807 = vmatprep.subr.mxu0 0.0
      %808 = vmatpush1.msra.mxu0 0.0
      %809 = vmatprep.subr.mxu0 0.0
      %810 = vmatpush1.msra.mxu0 0.0
      %811 = vmatprep.subr.mxu0 0.0
      %812 = vmatpush1.msra.mxu0 0.0
      %813 = vmatprep.subr.mxu0 0.0
      %814 = vmatpush1.msra.mxu0 0.0
      %815 = vmatprep.subr.mxu0 0.0
      %816 = vmatpush1.msra.mxu0 0.0
      %817 = vmatprep.subr.mxu0 0.0
      %818 = vmatpush1.msra.mxu0 0.0
      %819 = vmatprep.subr.mxu0 0.0
      %820 = vmatpush1.msra.mxu0 0.0
      %821 = vmatprep.subr.mxu0 0.0
      %822 = vmatpush1.msra.mxu0 0.0
      %823 = vmatprep.subr.mxu0 0.0
      %824 = vmatpush1.msra.mxu0 0.0
      %825 = vmatprep.subr.mxu0 0.0
      %826 = vmatpush1.msra.mxu0 0.0
      %827 = vmatprep.mubr.f32.mxu0 0.0
      %828 = vmatmul.mubr.f32.gmra.mrb[0].mxu0 %v737
      %v829 = vpop.f32.mrb[0].mxu0
      %v830 = vadd.f32 0.0, %v829
      %v831 = vpop.f32.mrb[0].mxu0
      %832 = vmatprep.mubr.f32.mxu0 0.0
      %833 = vmatmul.mubr.f32.gmra.mrb[0].mxu0 %v740
      %v834 = vpop.f32.mrb[0].mxu0
      %v835 = vadd.f32 0.0, %v834
      %v836 = vpop.f32.mrb[0].mxu0
      %837 = vmatprep.mubr.f32.mxu0 0.0
      %838 = vmatmul.mubr.f32.gmra.mrb[0].mxu0 %v743
      %v839 = vpop.f32.mrb[0].mxu0
      %v840 = vadd.f32 0.0, %v839
      %v841 = vpop.f32.mrb[0].mxu0
      %842 = vmatprep.mubr.f32.mxu0 0.0
      %843 = vmatmul.mubr.f32.gmra.mrb[0].mxu0 %v746
      %v844 = vpop.f32.mrb[0].mxu0
      %v845 = vadd.f32 0.0, %v844
      %v846 = vpop.f32.mrb[0].mxu0
      %847 = vmatprep.mubr.f32.mxu0 0.0
      %848 = vmatmul.mubr.f32.gmra.mrb[0].mxu0 %v749
      %v849 = vpop.f32.mrb[0].mxu0
      %v850 = vadd.f32 0.0, %v849
      %v851 = vpop.f32.mrb[0].mxu0
      %852 = vmatprep.mubr.f32.mxu0 0.0
      %853 = vmatmul.mubr.f32.gmra.mrb[0].mxu0 %v752
      %v854 = vpop.f32.mrb[0].mxu0
      %v855 = vadd.f32 0.0, %v854
      %v856 = vpop.f32.mrb[0].mxu0
      %857 = vmatprep.mubr.f32.mxu0 0.0
      %858 = vmatmul.mubr.f32.gmra.mrb[0].mxu0 %v755
      %v859 = vpop.f32.mrb[0].mxu0
      %v860 = vadd.f32 0.0, %v859
      %v861 = vpop.f32.mrb[0].mxu0
      %862 = vmatprep.mubr.f32.mxu0 0.0
      %863 = vmatmul.mubr.f32.gmra.mrb[0].mxu0 %v758
      %v864 = vpop.f32.mrb[0].mxu0
      %v865 = vadd.f32 0.0, %v864
      %v866 = vpop.f32.mrb[0].mxu0
      %867 = vdwg.mxu0
      %v868 = vadd.f32 %v726, %v830
      %v869 = vadd.f32 %v727, %v835
      %v870 = vadd.f32 %v728, %v840
      %v871 = vadd.f32 %v729, %v845
      %v872 = vadd.f32 %v730, %v850
      %v873 = vadd.f32 %v731, %v855
      %v874 = vadd.f32 %v732, %v860
      %v875 = vadd.f32 %v733, %v865
      %v876 = vld [vmem:[#allocation2 + $0x10] sm:$0xff]
      %v877 = vld [vmem:[#allocation2 + $0x18] sm:$0xff]
      %v878 = vld [vmem:[#allocation2 + $0x20] sm:$0xff]
      %v879 = vld [vmem:[#allocation2 + $0x28] sm:$0xff]
      %v880 = vld [vmem:[#allocation2 + $0x30] sm:$0xff]
      %v881 = vld [vmem:[#allocation2 + $0x38] sm:$0xff]
      %v882 = vld [vmem:[#allocation2 + $0x40] sm:$0xff]
      %v883 = vld [vmem:[#allocation2 + $0x48] sm:$0xff]
      %v884 = vld [vmem:[#allocation2 + $0xf] sm:$0xff]
      %v885 = vld [vmem:[#allocation2 + $0x17] sm:$0xff]
      %v886 = vld [vmem:[#allocation2 + $0x1f] sm:$0xff]
      %v887 = vld [vmem:[#allocation2 + $0x27] sm:$0xff]
      %v888 = vld [vmem:[#allocation2 + $0x2f] sm:$0xff]
      %v889 = vld [vmem:[#allocation2 + $0x37] sm:$0xff]
      %v890 = vld [vmem:[#allocation2 + $0x3f] sm:$0xff]
      %v891 = vld [vmem:[#allocation2 + $0x47] sm:$0xff]
      %v892 = vld [vmem:[#allocation2 + $0x11] sm:$0xff]
      %v893 = vld [vmem:[#allocation2 + $0x19] sm:$0xff]
      %v894 = vld [vmem:[#allocation2 + $0x21] sm:$0xff]
      %v895 = vld [vmem:[#allocation2 + $0x29] sm:$0xff]
      %v896 = vld [vmem:[#allocation2 + $0x31] sm:$0xff]
      %v897 = vld [vmem:[#allocation2 + $0x39] sm:$0xff]
      %v898 = vld [vmem:[#allocation2 + $0x41] sm:$0xff]
      %v899 = vld [vmem:[#allocation2 + $0x49] sm:$0xff]
      %v900 = vsel %vm386, %v876, %v884
      %v901 = vsel %vm387, %v877, %v885
      %v902 = vsel %vm388, %v878, %v886
      %v903 = vsel %vm389, %v879, %v887
      %v904 = vsel %vm390, %v880, %v888
      %v905 = vsel %vm391, %v881, %v889
      %v906 = vsel %vm392, %v882, %v890
      %v907 = vsel %vm393, %v883, %v891
      %v908 = vsel %vm394, %v876, %v892
      %v909 = vsel %vm395, %v877, %v893
      %v910 = vsel %vm396, %v878, %v894
      %v911 = vsel %vm397, %v879, %v895
      %v912 = vsel %vm398, %v880, %v896
      %v913 = vsel %vm399, %v881, %v897
      %v914 = vsel %vm400, %v882, %v898
      %v915 = vsel %vm401, %v883, %v899
      %s916 = scalar_lea.vmem %s2, 12
      %v917 = vld [vmem:[%s916] sm:$0xf]
      %v919 = vsel %vm252, %v900, 0
      %v922 = vsel %vm252, %v901, 0
      %v925 = vsel %vm252, %v902, 0
      %v928 = vsel %vm252, %v903, 0
      %v931 = vsel %vm252, %v904, 0
      %v934 = vsel %vm252, %v905, 0
      %v937 = vsel %vm252, %v906, 0
      %v940 = vsel %vm252, %v907, 0
      %v943 = vsel %vm475, %v917, 0
      %945 = vmatprep.subr.mxu0 0.0
      %946 = vmatpush1.msra.mxu0 %v943
      %947 = vmatprep.subr.mxu0 0.0
      %948 = vmatpush1.msra.mxu0 0.0
      %949 = vmatprep.subr.mxu0 0.0
      %950 = vmatpush1.msra.mxu0 0.0
      %951 = vmatprep.subr.mxu0 0.0
      %952 = vmatpush1.msra.mxu0 0.0
      %953 = vmatprep.subr.mxu0 0.0
      %954 = vmatpush1.msra.mxu0 0.0
      %955 = vmatprep.subr.mxu0 0.0
      %956 = vmatpush1.msra.mxu0 0.0
      %957 = vmatprep.subr.mxu0 0.0
      %958 = vmatpush1.msra.mxu0 0.0
      %959 = vmatprep.subr.mxu0 0.0
      %960 = vmatpush1.msra.mxu0 0.0
      %961 = vmatprep.subr.mxu0 0.0
      %962 = vmatpush1.msra.mxu0 0.0
      %963 = vmatprep.subr.mxu0 0.0
      %964 = vmatpush1.msra.mxu0 0.0
      %965 = vmatprep.subr.mxu0 0.0
      %966 = vmatpush1.msra.mxu0 0.0
      %967 = vmatprep.subr.mxu0 0.0
      %968 = vmatpush1.msra.mxu0 0.0
      %969 = vmatprep.subr.mxu0 0.0
      %970 = vmatpush1.msra.mxu0 0.0
      %971 = vmatprep.subr.mxu0 0.0
      %972 = vmatpush1.msra.mxu0 0.0
      %973 = vmatprep.subr.mxu0 0.0
      %974 = vmatpush1.msra.mxu0 0.0
      %975 = vmatprep.subr.mxu0 0.0
      %976 = vmatpush1.msra.mxu0 0.0
      %977 = vmatprep.subr.mxu0 0.0
      %978 = vmatpush1.msra.mxu0 0.0
      %979 = vmatprep.subr.mxu0 0.0
      %980 = vmatpush1.msra.mxu0 0.0
      %981 = vmatprep.subr.mxu0 0.0
      %982 = vmatpush1.msra.mxu0 0.0
      %983 = vmatprep.subr.mxu0 0.0
      %984 = vmatpush1.msra.mxu0 0.0
      %985 = vmatprep.subr.mxu0 0.0
      %986 = vmatpush1.msra.mxu0 0.0
      %987 = vmatprep.subr.mxu0 0.0
      %988 = vmatpush1.msra.mxu0 0.0
      %989 = vmatprep.subr.mxu0 0.0
      %990 = vmatpush1.msra.mxu0 0.0
      %991 = vmatprep.subr.mxu0 0.0
      %992 = vmatpush1.msra.mxu0 0.0
      %993 = vmatprep.subr.mxu0 0.0
      %994 = vmatpush1.msra.mxu0 0.0
      %995 = vmatprep.subr.mxu0 0.0
      %996 = vmatpush1.msra.mxu0 0.0
      %997 = vmatprep.subr.mxu0 0.0
      %998 = vmatpush1.msra.mxu0 0.0
      %999 = vmatprep.subr.mxu0 0.0
      %1000 = vmatpush1.msra.mxu0 0.0
      %1001 = vmatprep.subr.mxu0 0.0
      %1002 = vmatpush1.msra.mxu0 0.0
      %1003 = vmatprep.subr.mxu0 0.0
      %1004 = vmatpush1.msra.mxu0 0.0
      %1005 = vmatprep.subr.mxu0 0.0
      %1006 = vmatpush1.msra.mxu0 0.0
      %1007 = vmatprep.subr.mxu0 0.0
      %1008 = vmatpush1.msra.mxu0 0.0
      %1009 = vmatprep.mubr.f32.mxu0 0.0
      %1010 = vmatmul.mubr.f32.gmra.mrb[0].mxu0 %v919
      %v1011 = vpop.f32.mrb[0].mxu0
      %v1012 = vadd.f32 0.0, %v1011
      %v1013 = vpop.f32.mrb[0].mxu0
      %1014 = vmatprep.mubr.f32.mxu0 0.0
      %1015 = vmatmul.mubr.f32.gmra.mrb[0].mxu0 %v922
      %v1016 = vpop.f32.mrb[0].mxu0
      %v1017 = vadd.f32 0.0, %v1016
      %v1018 = vpop.f32.mrb[0].mxu0
      %1019 = vmatprep.mubr.f32.mxu0 0.0
      %1020 = vmatmul.mubr.f32.gmra.mrb[0].mxu0 %v925
      %v1021 = vpop.f32.mrb[0].mxu0
      %v1022 = vadd.f32 0.0, %v1021
      %v1023 = vpop.f32.mrb[0].mxu0
      %1024 = vmatprep.mubr.f32.mxu0 0.0
      %1025 = vmatmul.mubr.f32.gmra.mrb[0].mxu0 %v928
      %v1026 = vpop.f32.mrb[0].mxu0
      %v1027 = vadd.f32 0.0, %v1026
      %v1028 = vpop.f32.mrb[0].mxu0
      %1029 = vmatprep.mubr.f32.mxu0 0.0
      %1030 = vmatmul.mubr.f32.gmra.mrb[0].mxu0 %v931
      %v1031 = vpop.f32.mrb[0].mxu0
      %v1032 = vadd.f32 0.0, %v1031
      %v1033 = vpop.f32.mrb[0].mxu0
      %1034 = vmatprep.mubr.f32.mxu0 0.0
      %1035 = vmatmul.mubr.f32.gmra.mrb[0].mxu0 %v934
      %v1036 = vpop.f32.mrb[0].mxu0
      %v1037 = vadd.f32 0.0, %v1036
      %v1038 = vpop.f32.mrb[0].mxu0
      %1039 = vmatprep.mubr.f32.mxu0 0.0
      %1040 = vmatmul.mubr.f32.gmra.mrb[0].mxu0 %v937
      %v1041 = vpop.f32.mrb[0].mxu0
      %v1042 = vadd.f32 0.0, %v1041
      %v1043 = vpop.f32.mrb[0].mxu0
      %1044 = vmatprep.mubr.f32.mxu0 0.0
      %1045 = vmatmul.mubr.f32.gmra.mrb[0].mxu0 %v940
      %v1046 = vpop.f32.mrb[0].mxu0
      %v1047 = vadd.f32 0.0, %v1046
      %v1048 = vpop.f32.mrb[0].mxu0
      %1049 = vdwg.mxu0
      %v1050 = vadd.f32 %v868, %v1012
      %v1051 = vadd.f32 %v869, %v1017
      %v1052 = vadd.f32 %v870, %v1022
      %v1053 = vadd.f32 %v871, %v1027
      %v1054 = vadd.f32 %v872, %v1032
      %v1055 = vadd.f32 %v873, %v1037
      %v1056 = vadd.f32 %v874, %v1042
      %v1057 = vadd.f32 %v875, %v1047
      %s1058 = scalar_lea.vmem %s2, 16
      %v1059 = vld [vmem:[%s1058] sm:$0xf]
      %v1061 = vsel %vm252, %v876, 0
      %v1064 = vsel %vm252, %v877, 0
      %v1067 = vsel %vm252, %v878, 0
      %v1070 = vsel %vm252, %v879, 0
      %v1073 = vsel %vm252, %v880, 0
      %v1076 = vsel %vm252, %v881, 0
      %v1079 = vsel %vm252, %v882, 0
      %v1082 = vsel %vm252, %v883, 0
      %v1085 = vsel %vm475, %v1059, 0
      %1087 = vmatprep.subr.mxu0 0.0
      %1088 = vmatpush1.msra.mxu0 %v1085
      %1089 = vmatprep.subr.mxu0 0.0
      %1090 = vmatpush1.msra.mxu0 0.0
      %1091 = vmatprep.subr.mxu0 0.0
      %1092 = vmatpush1.msra.mxu0 0.0
      %1093 = vmatprep.subr.mxu0 0.0
      %1094 = vmatpush1.msra.mxu0 0.0
      %1095 = vmatprep.subr.mxu0 0.0
      %1096 = vmatpush1.msra.mxu0 0.0
      %1097 = vmatprep.subr.mxu0 0.0
      %1098 = vmatpush1.msra.mxu0 0.0
      %1099 = vmatprep.subr.mxu0 0.0
      %1100 = vmatpush1.msra.mxu0 0.0
      %1101 = vmatprep.subr.mxu0 0.0
      %1102 = vmatpush1.msra.mxu0 0.0
      %1103 = vmatprep.subr.mxu0 0.0
      %1104 = vmatpush1.msra.mxu0 0.0
      %1105 = vmatprep.subr.mxu0 0.0
      %1106 = vmatpush1.msra.mxu0 0.0
      %1107 = vmatprep.subr.mxu0 0.0
      %1108 = vmatpush1.msra.mxu0 0.0
      %1109 = vmatprep.subr.mxu0 0.0
      %1110 = vmatpush1.msra.mxu0 0.0
      %1111 = vmatprep.subr.mxu0 0.0
      %1112 = vmatpush1.msra.mxu0 0.0
      %1113 = vmatprep.subr.mxu0 0.0
      %1114 = vmatpush1.msra.mxu0 0.0
      %1115 = vmatprep.subr.mxu0 0.0
      %1116 = vmatpush1.msra.mxu0 0.0
      %1117 = vmatprep.subr.mxu0 0.0
      %1118 = vmatpush1.msra.mxu0 0.0
      %1119 = vmatprep.subr.mxu0 0.0
      %1120 = vmatpush1.msra.mxu0 0.0
      %1121 = vmatprep.subr.mxu0 0.0
      %1122 = vmatpush1.msra.mxu0 0.0
      %1123 = vmatprep.subr.mxu0 0.0
      %1124 = vmatpush1.msra.mxu0 0.0
      %1125 = vmatprep.subr.mxu0 0.0
      %1126 = vmatpush1.msra.mxu0 0.0
      %1127 = vmatprep.subr.mxu0 0.0
      %1128 = vmatpush1.msra.mxu0 0.0
      %1129 = vmatprep.subr.mxu0 0.0
      %1130 = vmatpush1.msra.mxu0 0.0
      %1131 = vmatprep.subr.mxu0 0.0
      %1132 = vmatpush1.msra.mxu0 0.0
      %1133 = vmatprep.subr.mxu0 0.0
      %1134 = vmatpush1.msra.mxu0 0.0
      %1135 = vmatprep.subr.mxu0 0.0
      %1136 = vmatpush1.msra.mxu0 0.0
      %1137 = vmatprep.subr.mxu0 0.0
      %1138 = vmatpush1.msra.mxu0 0.0
      %1139 = vmatprep.subr.mxu0 0.0
      %1140 = vmatpush1.msra.mxu0 0.0
      %1141 = vmatprep.subr.mxu0 0.0
      %1142 = vmatpush1.msra.mxu0 0.0
      %1143 = vmatprep.subr.mxu0 0.0
      %1144 = vmatpush1.msra.mxu0 0.0
      %1145 = vmatprep.subr.mxu0 0.0
      %1146 = vmatpush1.msra.mxu0 0.0
      %1147 = vmatprep.subr.mxu0 0.0
      %1148 = vmatpush1.msra.mxu0 0.0
      %1149 = vmatprep.subr.mxu0 0.0
      %1150 = vmatpush1.msra.mxu0 0.0
      %1151 = vmatprep.mubr.f32.mxu0 0.0
      %1152 = vmatmul.mubr.f32.gmra.mrb[0].mxu0 %v1061
      %v1153 = vpop.f32.mrb[0].mxu0
      %v1154 = vadd.f32 0.0, %v1153
      %v1155 = vpop.f32.mrb[0].mxu0
      %1156 = vmatprep.mubr.f32.mxu0 0.0
      %1157 = vmatmul.mubr.f32.gmra.mrb[0].mxu0 %v1064
      %v1158 = vpop.f32.mrb[0].mxu0
      %v1159 = vadd.f32 0.0, %v1158
      %v1160 = vpop.f32.mrb[0].mxu0
      %1161 = vmatprep.mubr.f32.mxu0 0.0
      %1162 = vmatmul.mubr.f32.gmra.mrb[0].mxu0 %v1067
      %v1163 = vpop.f32.mrb[0].mxu0
      %v1164 = vadd.f32 0.0, %v1163
      %v1165 = vpop.f32.mrb[0].mxu0
      %1166 = vmatprep.mubr.f32.mxu0 0.0
      %1167 = vmatmul.mubr.f32.gmra.mrb[0].mxu0 %v1070
      %v1168 = vpop.f32.mrb[0].mxu0
      %v1169 = vadd.f32 0.0, %v1168
      %v1170 = vpop.f32.mrb[0].mxu0
      %1171 = vmatprep.mubr.f32.mxu0 0.0
      %1172 = vmatmul.mubr.f32.gmra.mrb[0].mxu0 %v1073
      %v1173 = vpop.f32.mrb[0].mxu0
      %v1174 = vadd.f32 0.0, %v1173
      %v1175 = vpop.f32.mrb[0].mxu0
      %1176 = vmatprep.mubr.f32.mxu0 0.0
      %1177 = vmatmul.mubr.f32.gmra.mrb[0].mxu0 %v1076
      %v1178 = vpop.f32.mrb[0].mxu0
      %v1179 = vadd.f32 0.0, %v1178
      %v1180 = vpop.f32.mrb[0].mxu0
      %1181 = vmatprep.mubr.f32.mxu0 0.0
      %1182 = vmatmul.mubr.f32.gmra.mrb[0].mxu0 %v1079
      %v1183 = vpop.f32.mrb[0].mxu0
      %v1184 = vadd.f32 0.0, %v1183
      %v1185 = vpop.f32.mrb[0].mxu0
      %1186 = vmatprep.mubr.f32.mxu0 0.0
      %1187 = vmatmul.mubr.f32.gmra.mrb[0].mxu0 %v1082
      %v1188 = vpop.f32.mrb[0].mxu0
      %v1189 = vadd.f32 0.0, %v1188
      %v1190 = vpop.f32.mrb[0].mxu0
      %1191 = vdwg.mxu0
      %v1192 = vadd.f32 %v1050, %v1154
      %v1193 = vadd.f32 %v1051, %v1159
      %v1194 = vadd.f32 %v1052, %v1164
      %v1195 = vadd.f32 %v1053, %v1169
      %v1196 = vadd.f32 %v1054, %v1174
      %v1197 = vadd.f32 %v1055, %v1179
      %v1198 = vadd.f32 %v1056, %v1184
      %v1199 = vadd.f32 %v1057, %v1189
      %s1200 = scalar_lea.vmem %s2, 20
      %v1201 = vld [vmem:[%s1200] sm:$0xf]
      %v1203 = vsel %vm252, %v908, 0
      %v1206 = vsel %vm252, %v909, 0
      %v1209 = vsel %vm252, %v910, 0
      %v1212 = vsel %vm252, %v911, 0
      %v1215 = vsel %vm252, %v912, 0
      %v1218 = vsel %vm252, %v913, 0
      %v1221 = vsel %vm252, %v914, 0
      %v1224 = vsel %vm252, %v915, 0
      %v1227 = vsel %vm475, %v1201, 0
      %1229 = vmatprep.subr.mxu0 0.0
      %1230 = vmatpush1.msra.mxu0 %v1227
      %1231 = vmatprep.subr.mxu0 0.0
      %1232 = vmatpush1.msra.mxu0 0.0
      %1233 = vmatprep.subr.mxu0 0.0
      %1234 = vmatpush1.msra.mxu0 0.0
      %1235 = vmatprep.subr.mxu0 0.0
      %1236 = vmatpush1.msra.mxu0 0.0
      %1237 = vmatprep.subr.mxu0 0.0
      %1238 = vmatpush1.msra.mxu0 0.0
      %1239 = vmatprep.subr.mxu0 0.0
      %1240 = vmatpush1.msra.mxu0 0.0
      %1241 = vmatprep.subr.mxu0 0.0
      %1242 = vmatpush1.msra.mxu0 0.0
      %1243 = vmatprep.subr.mxu0 0.0
      %1244 = vmatpush1.msra.mxu0 0.0
      %1245 = vmatprep.subr.mxu0 0.0
      %1246 = vmatpush1.msra.mxu0 0.0
      %1247 = vmatprep.subr.mxu0 0.0
      %1248 = vmatpush1.msra.mxu0 0.0
      %1249 = vmatprep.subr.mxu0 0.0
      %1250 = vmatpush1.msra.mxu0 0.0
      %1251 = vmatprep.subr.mxu0 0.0
      %1252 = vmatpush1.msra.mxu0 0.0
      %1253 = vmatprep.subr.mxu0 0.0
      %1254 = vmatpush1.msra.mxu0 0.0
      %1255 = vmatprep.subr.mxu0 0.0
      %1256 = vmatpush1.msra.mxu0 0.0
      %1257 = vmatprep.subr.mxu0 0.0
      %1258 = vmatpush1.msra.mxu0 0.0
      %1259 = vmatprep.subr.mxu0 0.0
      %1260 = vmatpush1.msra.mxu0 0.0
      %1261 = vmatprep.subr.mxu0 0.0
      %1262 = vmatpush1.msra.mxu0 0.0
      %1263 = vmatprep.subr.mxu0 0.0
      %1264 = vmatpush1.msra.mxu0 0.0
      %1265 = vmatprep.subr.mxu0 0.0
      %1266 = vmatpush1.msra.mxu0 0.0
      %1267 = vmatprep.subr.mxu0 0.0
      %1268 = vmatpush1.msra.mxu0 0.0
      %1269 = vmatprep.subr.mxu0 0.0
      %1270 = vmatpush1.msra.mxu0 0.0
      %1271 = vmatprep.subr.mxu0 0.0
      %1272 = vmatpush1.msra.mxu0 0.0
      %1273 = vmatprep.subr.mxu0 0.0
      %1274 = vmatpush1.msra.mxu0 0.0
      %1275 = vmatprep.subr.mxu0 0.0
      %1276 = vmatpush1.msra.mxu0 0.0
      %1277 = vmatprep.subr.mxu0 0.0
      %1278 = vmatpush1.msra.mxu0 0.0
      %1279 = vmatprep.subr.mxu0 0.0
      %1280 = vmatpush1.msra.mxu0 0.0
      %1281 = vmatprep.subr.mxu0 0.0
      %1282 = vmatpush1.msra.mxu0 0.0
      %1283 = vmatprep.subr.mxu0 0.0
      %1284 = vmatpush1.msra.mxu0 0.0
      %1285 = vmatprep.subr.mxu0 0.0
      %1286 = vmatpush1.msra.mxu0 0.0
      %1287 = vmatprep.subr.mxu0 0.0
      %1288 = vmatpush1.msra.mxu0 0.0
      %1289 = vmatprep.subr.mxu0 0.0
      %1290 = vmatpush1.msra.mxu0 0.0
      %1291 = vmatprep.subr.mxu0 0.0
      %1292 = vmatpush1.msra.mxu0 0.0
      %1293 = vmatprep.mubr.f32.mxu0 0.0
      %1294 = vmatmul.mubr.f32.gmra.mrb[0].mxu0 %v1203
      %v1295 = vpop.f32.mrb[0].mxu0
      %v1296 = vadd.f32 0.0, %v1295
      %v1297 = vpop.f32.mrb[0].mxu0
      %1298 = vmatprep.mubr.f32.mxu0 0.0
      %1299 = vmatmul.mubr.f32.gmra.mrb[0].mxu0 %v1206
      %v1300 = vpop.f32.mrb[0].mxu0
      %v1301 = vadd.f32 0.0, %v1300
      %v1302 = vpop.f32.mrb[0].mxu0
      %1303 = vmatprep.mubr.f32.mxu0 0.0
      %1304 = vmatmul.mubr.f32.gmra.mrb[0].mxu0 %v1209
      %v1305 = vpop.f32.mrb[0].mxu0
      %v1306 = vadd.f32 0.0, %v1305
      %v1307 = vpop.f32.mrb[0].mxu0
      %1308 = vmatprep.mubr.f32.mxu0 0.0
      %1309 = vmatmul.mubr.f32.gmra.mrb[0].mxu0 %v1212
      %v1310 = vpop.f32.mrb[0].mxu0
      %v1311 = vadd.f32 0.0, %v1310
      %v1312 = vpop.f32.mrb[0].mxu0
      %1313 = vmatprep.mubr.f32.mxu0 0.0
      %1314 = vmatmul.mubr.f32.gmra.mrb[0].mxu0 %v1215
      %v1315 = vpop.f32.mrb[0].mxu0
      %v1316 = vadd.f32 0.0, %v1315
      %v1317 = vpop.f32.mrb[0].mxu0
      %1318 = vmatprep.mubr.f32.mxu0 0.0
      %1319 = vmatmul.mubr.f32.gmra.mrb[0].mxu0 %v1218
      %v1320 = vpop.f32.mrb[0].mxu0
      %v1321 = vadd.f32 0.0, %v1320
      %v1322 = vpop.f32.mrb[0].mxu0
      %1323 = vmatprep.mubr.f32.mxu0 0.0
      %1324 = vmatmul.mubr.f32.gmra.mrb[0].mxu0 %v1221
      %v1325 = vpop.f32.mrb[0].mxu0
      %v1326 = vadd.f32 0.0, %v1325
      %v1327 = vpop.f32.mrb[0].mxu0
      %1328 = vmatprep.mubr.f32.mxu0 0.0
      %1329 = vmatmul.mubr.f32.gmra.mrb[0].mxu0 %v1224
      %v1330 = vpop.f32.mrb[0].mxu0
      %v1331 = vadd.f32 0.0, %v1330
      %v1332 = vpop.f32.mrb[0].mxu0
      %1333 = vdwg.mxu0
      %v1334 = vadd.f32 %v1192, %v1296
      %v1335 = vadd.f32 %v1193, %v1301
      %v1336 = vadd.f32 %v1194, %v1306
      %v1337 = vadd.f32 %v1195, %v1311
      %v1338 = vadd.f32 %v1196, %v1316
      %v1339 = vadd.f32 %v1197, %v1321
      %v1340 = vadd.f32 %v1198, %v1326
      %v1341 = vadd.f32 %v1199, %v1331
      %v1342 = vld [vmem:[#allocation2 + $0x18] sm:$0xff]
      %v1343 = vld [vmem:[#allocation2 + $0x20] sm:$0xff]
      %v1344 = vld [vmem:[#allocation2 + $0x28] sm:$0xff]
      %v1345 = vld [vmem:[#allocation2 + $0x30] sm:$0xff]
      %v1346 = vld [vmem:[#allocation2 + $0x38] sm:$0xff]
      %v1347 = vld [vmem:[#allocation2 + $0x40] sm:$0xff]
      %v1348 = vld [vmem:[#allocation2 + $0x48] sm:$0xff]
      %v1349 = vld [vmem:[#allocation2 + $0x50] sm:$0xff]
      %v1350 = vld [vmem:[#allocation2 + $0x17] sm:$0xff]
      %v1351 = vld [vmem:[#allocation2 + $0x1f] sm:$0xff]
      %v1352 = vld [vmem:[#allocation2 + $0x27] sm:$0xff]
      %v1353 = vld [vmem:[#allocation2 + $0x2f] sm:$0xff]
      %v1354 = vld [vmem:[#allocation2 + $0x37] sm:$0xff]
      %v1355 = vld [vmem:[#allocation2 + $0x3f] sm:$0xff]
      %v1356 = vld [vmem:[#allocation2 + $0x47] sm:$0xff]
      %v1357 = vld [vmem:[#allocation2 + $0x4f] sm:$0xff]
      %v1358 = vld [vmem:[#allocation2 + $0x19] sm:$0xff]
      %v1359 = vld [vmem:[#allocation2 + $0x21] sm:$0xff]
      %v1360 = vld [vmem:[#allocation2 + $0x29] sm:$0xff]
      %v1361 = vld [vmem:[#allocation2 + $0x31] sm:$0xff]
      %v1362 = vld [vmem:[#allocation2 + $0x39] sm:$0xff]
      %v1363 = vld [vmem:[#allocation2 + $0x41] sm:$0xff]
      %v1364 = vld [vmem:[#allocation2 + $0x49] sm:$0xff]
      %v1365 = vld [vmem:[#allocation2 + $0x51] sm:$0xff]
      %v1366 = vsel %vm386, %v1342, %v1350
      %v1367 = vsel %vm387, %v1343, %v1351
      %v1368 = vsel %vm388, %v1344, %v1352
      %v1369 = vsel %vm389, %v1345, %v1353
      %v1370 = vsel %vm390, %v1346, %v1354
      %v1371 = vsel %vm391, %v1347, %v1355
      %v1372 = vsel %vm392, %v1348, %v1356
      %v1373 = vsel %vm393, %v1349, %v1357
      %v1374 = vsel %vm394, %v1342, %v1358
      %v1375 = vsel %vm395, %v1343, %v1359
      %v1376 = vsel %vm396, %v1344, %v1360
      %v1377 = vsel %vm397, %v1345, %v1361
      %v1378 = vsel %vm398, %v1346, %v1362
      %v1379 = vsel %vm399, %v1347, %v1363
      %v1380 = vsel %vm400, %v1348, %v1364
      %v1381 = vsel %vm401, %v1349, %v1365
      %s1382 = scalar_lea.vmem %s2, 24
      %v1383 = vld [vmem:[%s1382] sm:$0xf]
      %v1385 = vsel %vm252, %v1366, 0
      %v1388 = vsel %vm252, %v1367, 0
      %v1391 = vsel %vm252, %v1368, 0
      %v1394 = vsel %vm252, %v1369, 0
      %v1397 = vsel %vm252, %v1370, 0
      %v1400 = vsel %vm252, %v1371, 0
      %v1403 = vsel %vm252, %v1372, 0
      %v1406 = vsel %vm252, %v1373, 0
      %v1409 = vsel %vm475, %v1383, 0
      %1411 = vmatprep.subr.mxu0 0.0
      %1412 = vmatpush1.msra.mxu0 %v1409
      %1413 = vmatprep.subr.mxu0 0.0
      %1414 = vmatpush1.msra.mxu0 0.0
      %1415 = vmatprep.subr.mxu0 0.0
      %1416 = vmatpush1.msra.mxu0 0.0
      %1417 = vmatprep.subr.mxu0 0.0
      %1418 = vmatpush1.msra.mxu0 0.0
      %1419 = vmatprep.subr.mxu0 0.0
      %1420 = vmatpush1.msra.mxu0 0.0
      %1421 = vmatprep.subr.mxu0 0.0
      %1422 = vmatpush1.msra.mxu0 0.0
      %1423 = vmatprep.subr.mxu0 0.0
      %1424 = vmatpush1.msra.mxu0 0.0
      %1425 = vmatprep.subr.mxu0 0.0
      %1426 = vmatpush1.msra.mxu0 0.0
      %1427 = vmatprep.subr.mxu0 0.0
      %1428 = vmatpush1.msra.mxu0 0.0
      %1429 = vmatprep.subr.mxu0 0.0
      %1430 = vmatpush1.msra.mxu0 0.0
      %1431 = vmatprep.subr.mxu0 0.0
      %1432 = vmatpush1.msra.mxu0 0.0
      %1433 = vmatprep.subr.mxu0 0.0
      %1434 = vmatpush1.msra.mxu0 0.0
      %1435 = vmatprep.subr.mxu0 0.0
      %1436 = vmatpush1.msra.mxu0 0.0
      %1437 = vmatprep.subr.mxu0 0.0
      %1438 = vmatpush1.msra.mxu0 0.0
      %1439 = vmatprep.subr.mxu0 0.0
      %1440 = vmatpush1.msra.mxu0 0.0
      %1441 = vmatprep.subr.mxu0 0.0
      %1442 = vmatpush1.msra.mxu0 0.0
      %1443 = vmatprep.subr.mxu0 0.0
      %1444 = vmatpush1.msra.mxu0 0.0
      %1445 = vmatprep.subr.mxu0 0.0
      %1446 = vmatpush1.msra.mxu0 0.0
      %1447 = vmatprep.subr.mxu0 0.0
      %1448 = vmatpush1.msra.mxu0 0.0
      %1449 = vmatprep.subr.mxu0 0.0
      %1450 = vmatpush1.msra.mxu0 0.0
      %1451 = vmatprep.subr.mxu0 0.0
      %1452 = vmatpush1.msra.mxu0 0.0
      %1453 = vmatprep.subr.mxu0 0.0
      %1454 = vmatpush1.msra.mxu0 0.0
      %1455 = vmatprep.subr.mxu0 0.0
      %1456 = vmatpush1.msra.mxu0 0.0
      %1457 = vmatprep.subr.mxu0 0.0
      %1458 = vmatpush1.msra.mxu0 0.0
      %1459 = vmatprep.subr.mxu0 0.0
      %1460 = vmatpush1.msra.mxu0 0.0
      %1461 = vmatprep.subr.mxu0 0.0
      %1462 = vmatpush1.msra.mxu0 0.0
      %1463 = vmatprep.subr.mxu0 0.0
      %1464 = vmatpush1.msra.mxu0 0.0
      %1465 = vmatprep.subr.mxu0 0.0
      %1466 = vmatpush1.msra.mxu0 0.0
      %1467 = vmatprep.subr.mxu0 0.0
      %1468 = vmatpush1.msra.mxu0 0.0
      %1469 = vmatprep.subr.mxu0 0.0
      %1470 = vmatpush1.msra.mxu0 0.0
      %1471 = vmatprep.subr.mxu0 0.0
      %1472 = vmatpush1.msra.mxu0 0.0
      %1473 = vmatprep.subr.mxu0 0.0
      %1474 = vmatpush1.msra.mxu0 0.0
      %1475 = vmatprep.mubr.f32.mxu0 0.0
      %1476 = vmatmul.mubr.f32.gmra.mrb[0].mxu0 %v1385
      %v1477 = vpop.f32.mrb[0].mxu0
      %v1478 = vadd.f32 0.0, %v1477
      %v1479 = vpop.f32.mrb[0].mxu0
      %1480 = vmatprep.mubr.f32.mxu0 0.0
      %1481 = vmatmul.mubr.f32.gmra.mrb[0].mxu0 %v1388
      %v1482 = vpop.f32.mrb[0].mxu0
      %v1483 = vadd.f32 0.0, %v1482
      %v1484 = vpop.f32.mrb[0].mxu0
      %1485 = vmatprep.mubr.f32.mxu0 0.0
      %1486 = vmatmul.mubr.f32.gmra.mrb[0].mxu0 %v1391
      %v1487 = vpop.f32.mrb[0].mxu0
      %v1488 = vadd.f32 0.0, %v1487
      %v1489 = vpop.f32.mrb[0].mxu0
      %1490 = vmatprep.mubr.f32.mxu0 0.0
      %1491 = vmatmul.mubr.f32.gmra.mrb[0].mxu0 %v1394
      %v1492 = vpop.f32.mrb[0].mxu0
      %v1493 = vadd.f32 0.0, %v1492
      %v1494 = vpop.f32.mrb[0].mxu0
      %1495 = vmatprep.mubr.f32.mxu0 0.0
      %1496 = vmatmul.mubr.f32.gmra.mrb[0].mxu0 %v1397
      %v1497 = vpop.f32.mrb[0].mxu0
      %v1498 = vadd.f32 0.0, %v1497
      %v1499 = vpop.f32.mrb[0].mxu0
      %1500 = vmatprep.mubr.f32.mxu0 0.0
      %1501 = vmatmul.mubr.f32.gmra.mrb[0].mxu0 %v1400
      %v1502 = vpop.f32.mrb[0].mxu0
      %v1503 = vadd.f32 0.0, %v1502
      %v1504 = vpop.f32.mrb[0].mxu0
      %1505 = vmatprep.mubr.f32.mxu0 0.0
      %1506 = vmatmul.mubr.f32.gmra.mrb[0].mxu0 %v1403
      %v1507 = vpop.f32.mrb[0].mxu0
      %v1508 = vadd.f32 0.0, %v1507
      %v1509 = vpop.f32.mrb[0].mxu0
      %1510 = vmatprep.mubr.f32.mxu0 0.0
      %1511 = vmatmul.mubr.f32.gmra.mrb[0].mxu0 %v1406
      %v1512 = vpop.f32.mrb[0].mxu0
      %v1513 = vadd.f32 0.0, %v1512
      %v1514 = vpop.f32.mrb[0].mxu0
      %1515 = vdwg.mxu0
      %v1516 = vadd.f32 %v1334, %v1478
      %v1517 = vadd.f32 %v1335, %v1483
      %v1518 = vadd.f32 %v1336, %v1488
      %v1519 = vadd.f32 %v1337, %v1493
      %v1520 = vadd.f32 %v1338, %v1498
      %v1521 = vadd.f32 %v1339, %v1503
      %v1522 = vadd.f32 %v1340, %v1508
      %v1523 = vadd.f32 %v1341, %v1513
      %s1524 = scalar_lea.vmem %s2, 28
      %v1525 = vld [vmem:[%s1524] sm:$0xf]
      %v1527 = vsel %vm252, %v1342, 0
      %v1530 = vsel %vm252, %v1343, 0
      %v1533 = vsel %vm252, %v1344, 0
      %v1536 = vsel %vm252, %v1345, 0
      %v1539 = vsel %vm252, %v1346, 0
      %v1542 = vsel %vm252, %v1347, 0
      %v1545 = vsel %vm252, %v1348, 0
      %v1548 = vsel %vm252, %v1349, 0
      %v1551 = vsel %vm475, %v1525, 0
      %1553 = vmatprep.subr.mxu0 0.0
      %1554 = vmatpush1.msra.mxu0 %v1551
      %1555 = vmatprep.subr.mxu0 0.0
      %1556 = vmatpush1.msra.mxu0 0.0
      %1557 = vmatprep.subr.mxu0 0.0
      %1558 = vmatpush1.msra.mxu0 0.0
      %1559 = vmatprep.subr.mxu0 0.0
      %1560 = vmatpush1.msra.mxu0 0.0
      %1561 = vmatprep.subr.mxu0 0.0
      %1562 = vmatpush1.msra.mxu0 0.0
      %1563 = vmatprep.subr.mxu0 0.0
      %1564 = vmatpush1.msra.mxu0 0.0
      %1565 = vmatprep.subr.mxu0 0.0
      %1566 = vmatpush1.msra.mxu0 0.0
      %1567 = vmatprep.subr.mxu0 0.0
      %1568 = vmatpush1.msra.mxu0 0.0
      %1569 = vmatprep.subr.mxu0 0.0
      %1570 = vmatpush1.msra.mxu0 0.0
      %1571 = vmatprep.subr.mxu0 0.0
      %1572 = vmatpush1.msra.mxu0 0.0
      %1573 = vmatprep.subr.mxu0 0.0
      %1574 = vmatpush1.msra.mxu0 0.0
      %1575 = vmatprep.subr.mxu0 0.0
      %1576 = vmatpush1.msra.mxu0 0.0
      %1577 = vmatprep.subr.mxu0 0.0
      %1578 = vmatpush1.msra.mxu0 0.0
      %1579 = vmatprep.subr.mxu0 0.0
      %1580 = vmatpush1.msra.mxu0 0.0
      %1581 = vmatprep.subr.mxu0 0.0
      %1582 = vmatpush1.msra.mxu0 0.0
      %1583 = vmatprep.subr.mxu0 0.0
      %1584 = vmatpush1.msra.mxu0 0.0
      %1585 = vmatprep.subr.mxu0 0.0
      %1586 = vmatpush1.msra.mxu0 0.0
      %1587 = vmatprep.subr.mxu0 0.0
      %1588 = vmatpush1.msra.mxu0 0.0
      %1589 = vmatprep.subr.mxu0 0.0
      %1590 = vmatpush1.msra.mxu0 0.0
      %1591 = vmatprep.subr.mxu0 0.0
      %1592 = vmatpush1.msra.mxu0 0.0
      %1593 = vmatprep.subr.mxu0 0.0
      %1594 = vmatpush1.msra.mxu0 0.0
      %1595 = vmatprep.subr.mxu0 0.0
      %1596 = vmatpush1.msra.mxu0 0.0
      %1597 = vmatprep.subr.mxu0 0.0
      %1598 = vmatpush1.msra.mxu0 0.0
      %1599 = vmatprep.subr.mxu0 0.0
      %1600 = vmatpush1.msra.mxu0 0.0
      %1601 = vmatprep.subr.mxu0 0.0
      %1602 = vmatpush1.msra.mxu0 0.0
      %1603 = vmatprep.subr.mxu0 0.0
      %1604 = vmatpush1.msra.mxu0 0.0
      %1605 = vmatprep.subr.mxu0 0.0
      %1606 = vmatpush1.msra.mxu0 0.0
      %1607 = vmatprep.subr.mxu0 0.0
      %1608 = vmatpush1.msra.mxu0 0.0
      %1609 = vmatprep.subr.mxu0 0.0
      %1610 = vmatpush1.msra.mxu0 0.0
      %1611 = vmatprep.subr.mxu0 0.0
      %1612 = vmatpush1.msra.mxu0 0.0
      %1613 = vmatprep.subr.mxu0 0.0
      %1614 = vmatpush1.msra.mxu0 0.0
      %1615 = vmatprep.subr.mxu0 0.0
      %1616 = vmatpush1.msra.mxu0 0.0
      %1617 = vmatprep.mubr.f32.mxu0 0.0
      %1618 = vmatmul.mubr.f32.gmra.mrb[0].mxu0 %v1527
      %v1619 = vpop.f32.mrb[0].mxu0
      %v1620 = vadd.f32 0.0, %v1619
      %v1621 = vpop.f32.mrb[0].mxu0
      %1622 = vmatprep.mubr.f32.mxu0 0.0
      %1623 = vmatmul.mubr.f32.gmra.mrb[0].mxu0 %v1530
      %v1624 = vpop.f32.mrb[0].mxu0
      %v1625 = vadd.f32 0.0, %v1624
      %v1626 = vpop.f32.mrb[0].mxu0
      %1627 = vmatprep.mubr.f32.mxu0 0.0
      %1628 = vmatmul.mubr.f32.gmra.mrb[0].mxu0 %v1533
      %v1629 = vpop.f32.mrb[0].mxu0
      %v1630 = vadd.f32 0.0, %v1629
      %v1631 = vpop.f32.mrb[0].mxu0
      %1632 = vmatprep.mubr.f32.mxu0 0.0
      %1633 = vmatmul.mubr.f32.gmra.mrb[0].mxu0 %v1536
      %v1634 = vpop.f32.mrb[0].mxu0
      %v1635 = vadd.f32 0.0, %v1634
      %v1636 = vpop.f32.mrb[0].mxu0
      %1637 = vmatprep.mubr.f32.mxu0 0.0
      %1638 = vmatmul.mubr.f32.gmra.mrb[0].mxu0 %v1539
      %v1639 = vpop.f32.mrb[0].mxu0
      %v1640 = vadd.f32 0.0, %v1639
      %v1641 = vpop.f32.mrb[0].mxu0
      %1642 = vmatprep.mubr.f32.mxu0 0.0
      %1643 = vmatmul.mubr.f32.gmra.mrb[0].mxu0 %v1542
      %v1644 = vpop.f32.mrb[0].mxu0
      %v1645 = vadd.f32 0.0, %v1644
      %v1646 = vpop.f32.mrb[0].mxu0
      %1647 = vmatprep.mubr.f32.mxu0 0.0
      %1648 = vmatmul.mubr.f32.gmra.mrb[0].mxu0 %v1545
      %v1649 = vpop.f32.mrb[0].mxu0
      %v1650 = vadd.f32 0.0, %v1649
      %v1651 = vpop.f32.mrb[0].mxu0
      %1652 = vmatprep.mubr.f32.mxu0 0.0
      %1653 = vmatmul.mubr.f32.gmra.mrb[0].mxu0 %v1548
      %v1654 = vpop.f32.mrb[0].mxu0
      %v1655 = vadd.f32 0.0, %v1654
      %v1656 = vpop.f32.mrb[0].mxu0
      %1657 = vdwg.mxu0
      %v1658 = vadd.f32 %v1516, %v1620
      %v1659 = vadd.f32 %v1517, %v1625
      %v1660 = vadd.f32 %v1518, %v1630
      %v1661 = vadd.f32 %v1519, %v1635
      %v1662 = vadd.f32 %v1520, %v1640
      %v1663 = vadd.f32 %v1521, %v1645
      %v1664 = vadd.f32 %v1522, %v1650
      %v1665 = vadd.f32 %v1523, %v1655
      %s1666 = scalar_lea.vmem %s2, 32
      %v1667 = vld [vmem:[%s1666] sm:$0xf]
      %v1669 = vsel %vm252, %v1374, 0
      %v1672 = vsel %vm252, %v1375, 0
      %v1675 = vsel %vm252, %v1376, 0
      %v1678 = vsel %vm252, %v1377, 0
      %v1681 = vsel %vm252, %v1378, 0
      %v1684 = vsel %vm252, %v1379, 0
      %v1687 = vsel %vm252, %v1380, 0
      %v1690 = vsel %vm252, %v1381, 0
      %v1693 = vsel %vm475, %v1667, 0
      %1695 = vmatprep.subr.mxu0 0.0
      %1696 = vmatpush1.msra.mxu0 %v1693
      %1697 = vmatprep.subr.mxu0 0.0
      %1698 = vmatpush1.msra.mxu0 0.0
      %1699 = vmatprep.subr.mxu0 0.0
      %1700 = vmatpush1.msra.mxu0 0.0
      %1701 = vmatprep.subr.mxu0 0.0
      %1702 = vmatpush1.msra.mxu0 0.0
      %1703 = vmatprep.subr.mxu0 0.0
      %1704 = vmatpush1.msra.mxu0 0.0
      %1705 = vmatprep.subr.mxu0 0.0
      %1706 = vmatpush1.msra.mxu0 0.0
      %1707 = vmatprep.subr.mxu0 0.0
      %1708 = vmatpush1.msra.mxu0 0.0
      %1709 = vmatprep.subr.mxu0 0.0
      %1710 = vmatpush1.msra.mxu0 0.0
      %1711 = vmatprep.subr.mxu0 0.0
      %1712 = vmatpush1.msra.mxu0 0.0
      %1713 = vmatprep.subr.mxu0 0.0
      %1714 = vmatpush1.msra.mxu0 0.0
      %1715 = vmatprep.subr.mxu0 0.0
      %1716 = vmatpush1.msra.mxu0 0.0
      %1717 = vmatprep.subr.mxu0 0.0
      %1718 = vmatpush1.msra.mxu0 0.0
      %1719 = vmatprep.subr.mxu0 0.0
      %1720 = vmatpush1.msra.mxu0 0.0
      %1721 = vmatprep.subr.mxu0 0.0
      %1722 = vmatpush1.msra.mxu0 0.0
      %1723 = vmatprep.subr.mxu0 0.0
      %1724 = vmatpush1.msra.mxu0 0.0
      %1725 = vmatprep.subr.mxu0 0.0
      %1726 = vmatpush1.msra.mxu0 0.0
      %1727 = vmatprep.subr.mxu0 0.0
      %1728 = vmatpush1.msra.mxu0 0.0
      %1729 = vmatprep.subr.mxu0 0.0
      %1730 = vmatpush1.msra.mxu0 0.0
      %1731 = vmatprep.subr.mxu0 0.0
      %1732 = vmatpush1.msra.mxu0 0.0
      %1733 = vmatprep.subr.mxu0 0.0
      %1734 = vmatpush1.msra.mxu0 0.0
      %1735 = vmatprep.subr.mxu0 0.0
      %1736 = vmatpush1.msra.mxu0 0.0
      %1737 = vmatprep.subr.mxu0 0.0
      %1738 = vmatpush1.msra.mxu0 0.0
      %1739 = vmatprep.subr.mxu0 0.0
      %1740 = vmatpush1.msra.mxu0 0.0
      %1741 = vmatprep.subr.mxu0 0.0
      %1742 = vmatpush1.msra.mxu0 0.0
      %1743 = vmatprep.subr.mxu0 0.0
      %1744 = vmatpush1.msra.mxu0 0.0
      %1745 = vmatprep.subr.mxu0 0.0
      %1746 = vmatpush1.msra.mxu0 0.0
      %1747 = vmatprep.subr.mxu0 0.0
      %1748 = vmatpush1.msra.mxu0 0.0
      %1749 = vmatprep.subr.mxu0 0.0
      %1750 = vmatpush1.msra.mxu0 0.0
      %1751 = vmatprep.subr.mxu0 0.0
      %1752 = vmatpush1.msra.mxu0 0.0
      %1753 = vmatprep.subr.mxu0 0.0
      %1754 = vmatpush1.msra.mxu0 0.0
      %1755 = vmatprep.subr.mxu0 0.0
      %1756 = vmatpush1.msra.mxu0 0.0
      %1757 = vmatprep.subr.mxu0 0.0
      %1758 = vmatpush1.msra.mxu0 0.0
      %1759 = vmatprep.mubr.f32.mxu0 0.0
      %1760 = vmatmul.mubr.f32.gmra.mrb[0].mxu0 %v1669
      %v1761 = vpop.f32.mrb[0].mxu0
      %v1762 = vadd.f32 0.0, %v1761
      %v1763 = vpop.f32.mrb[0].mxu0
      %1764 = vmatprep.mubr.f32.mxu0 0.0
      %1765 = vmatmul.mubr.f32.gmra.mrb[0].mxu0 %v1672
      %v1766 = vpop.f32.mrb[0].mxu0
      %v1767 = vadd.f32 0.0, %v1766
      %v1768 = vpop.f32.mrb[0].mxu0
      %1769 = vmatprep.mubr.f32.mxu0 0.0
      %1770 = vmatmul.mubr.f32.gmra.mrb[0].mxu0 %v1675
      %v1771 = vpop.f32.mrb[0].mxu0
      %v1772 = vadd.f32 0.0, %v1771
      %v1773 = vpop.f32.mrb[0].mxu0
      %1774 = vmatprep.mubr.f32.mxu0 0.0
      %1775 = vmatmul.mubr.f32.gmra.mrb[0].mxu0 %v1678
      %v1776 = vpop.f32.mrb[0].mxu0
      %v1777 = vadd.f32 0.0, %v1776
      %v1778 = vpop.f32.mrb[0].mxu0
      %1779 = vmatprep.mubr.f32.mxu0 0.0
      %1780 = vmatmul.mubr.f32.gmra.mrb[0].mxu0 %v1681
      %v1781 = vpop.f32.mrb[0].mxu0
      %v1782 = vadd.f32 0.0, %v1781
      %v1783 = vpop.f32.mrb[0].mxu0
      %1784 = vmatprep.mubr.f32.mxu0 0.0
      %1785 = vmatmul.mubr.f32.gmra.mrb[0].mxu0 %v1684
      %v1786 = vpop.f32.mrb[0].mxu0
      %v1787 = vadd.f32 0.0, %v1786
      %v1788 = vpop.f32.mrb[0].mxu0
      %1789 = vmatprep.mubr.f32.mxu0 0.0
      %1790 = vmatmul.mubr.f32.gmra.mrb[0].mxu0 %v1687
      %v1791 = vpop.f32.mrb[0].mxu0
      %v1792 = vadd.f32 0.0, %v1791
      %v1793 = vpop.f32.mrb[0].mxu0
      %1794 = vmatprep.mubr.f32.mxu0 0.0
      %1795 = vmatmul.mubr.f32.gmra.mrb[0].mxu0 %v1690
      %v1796 = vpop.f32.mrb[0].mxu0
      %v1797 = vadd.f32 0.0, %v1796
      %v1798 = vpop.f32.mrb[0].mxu0
      %1799 = vdwg.mxu0
      %v1800 = vadd.f32 %v1658, %v1762
      %v1801 = vadd.f32 %v1659, %v1767
      %v1802 = vadd.f32 %v1660, %v1772
      %v1803 = vadd.f32 %v1661, %v1777
      %v1804 = vadd.f32 %v1662, %v1782
      %v1805 = vadd.f32 %v1663, %v1787
      %v1806 = vadd.f32 %v1664, %v1792
      %v1807 = vadd.f32 %v1665, %v1797
      %v1808 = vmax.f32 %v1800, 0.0
      %v1809 = vmax.f32 %v1801, 0.0
      %v1810 = vmax.f32 %v1802, 0.0
      %v1811 = vmax.f32 %v1803, 0.0
      %v1812 = vmax.f32 %v1804, 0.0
      %v1813 = vmax.f32 %v1805, 0.0
      %v1814 = vmax.f32 %v1806, 0.0
      %v1815 = vmax.f32 %v1807, 0.0
      %vm1816 = vcmask 64512
      %1817 = vst.msk [vmem:[#allocation3] sm:$0xff] %vm1816, 0.0
      %1818 = vst.msk [vmem:[#allocation3 + $0x8] sm:$0xff] %vm1816, 0.0
      %1819 = vst.msk [vmem:[#allocation3 + $0x10] sm:$0xff] %vm1816, 0.0
      %1820 = vst.msk [vmem:[#allocation3 + $0x18] sm:$0xff] %vm1816, 0.0
      %1821 = vst.msk [vmem:[#allocation3 + $0x20] sm:$0xff] %vm1816, 0.0
      %1822 = vst.msk [vmem:[#allocation3 + $0x28] sm:$0xff] %vm1816, 0.0
      %1823 = vst.msk [vmem:[#allocation3 + $0x30] sm:$0xff] %vm1816, 0.0
      %1824 = vst.msk [vmem:[#allocation3 + $0x38] sm:$0xff] %vm1816, 0.0
      %1825 = vst.msk [vmem:[#allocation3 + $0x40] sm:$0xff] %vm1816, 0.0
      %1826 = vst.msk [vmem:[#allocation3 + $0x48] sm:$0xff] %vm1816, 0.0
      %1827 = vst.msk [vmem:[#allocation3 + $0x50] sm:$0xff] %vm1816, 0.0
      %1828 = vst.msk [vmem:[#allocation3 + $0x58] sm:$0xff] %vm1816, 0.0
      %1829 = vst.msk [vmem:[#allocation3 + $0x10] sm:$0xff] %vm1816, %v1808
      %1830 = vst.msk [vmem:[#allocation3 + $0x8] sm:$0xff] %vm1816, %v1808
      %1831 = vst.msk [vmem:[#allocation3 + $0x18] sm:$0xff] %vm1816, %v1809
      %1832 = vst.msk [vmem:[#allocation3 + $0x20] sm:$0xff] %vm1816, %v1810
      %1833 = vst.msk [vmem:[#allocation3 + $0x28] sm:$0xff] %vm1816, %v1811
      %1834 = vst.msk [vmem:[#allocation3 + $0x30] sm:$0xff] %vm1816, %v1812
      %1835 = vst.msk [vmem:[#allocation3 + $0x38] sm:$0xff] %vm1816, %v1813
      %1836 = vst.msk [vmem:[#allocation3 + $0x40] sm:$0xff] %vm1816, %v1814
      %1837 = vst.msk [vmem:[#allocation3 + $0x48] sm:$0xff] %vm1816, %v1815
      %1838 = vst.msk [vmem:[#allocation3 + $0x50] sm:$0xff] %vm1816, %v1815
      %v1839 = vld [vmem:[%s1] sm:$0xff]
      %v1840 = vld [vmem:[%s1 + $0x8] sm:$0xff]
      %v1841 = vld [vmem:[%s1 + $0x10] sm:$0xff]
      %v1842 = vld [vmem:[%s1 + $0x18] sm:$0xff]
      %v1843 = vld [vmem:[%s1 + $0x20] sm:$0xff]
      %v1844 = vld [vmem:[%s1 + $0x28] sm:$0xff]
      %v1845 = vld [vmem:[%s1 + $0x30] sm:$0xff]
      %v1846 = vld [vmem:[%s1 + $0x38] sm:$0xff]
      %1847 = vset.pattern.permute.xlu0 0
      %1848 = vperm.xlu0 %1847, %v1839
      %v1849 = vpop.permute.xlu0 %1848
      %1850 = vset.pattern.permute.xlu0 0
      %1851 = vperm.xlu0 %1850, %v1840
      %v1852 = vpop.permute.xlu0 %1851
      %1853 = vset.pattern.permute.xlu0 0
      %1854 = vperm.xlu0 %1853, %v1841
      %v1855 = vpop.permute.xlu0 %1854
      %1856 = vset.pattern.permute.xlu0 0
      %1857 = vperm.xlu0 %1856, %v1842
      %v1858 = vpop.permute.xlu0 %1857
      %1859 = vset.pattern.permute.xlu0 0
      %1860 = vperm.xlu0 %1859, %v1843
      %v1861 = vpop.permute.xlu0 %1860
      %1862 = vset.pattern.permute.xlu0 0
      %1863 = vperm.xlu0 %1862, %v1844
      %v1864 = vpop.permute.xlu0 %1863
      %1865 = vset.pattern.permute.xlu0 0
      %1866 = vperm.xlu0 %1865, %v1845
      %v1867 = vpop.permute.xlu0 %1866
      %1868 = vset.pattern.permute.xlu0 0
      %1869 = vperm.xlu0 %1868, %v1846
      %v1870 = vpop.permute.xlu0 %1869
      %vm1871 = vcmp.eq.s32.totalorder %v1849, 0
      %vm1872 = vcmp.eq.s32.totalorder %v1852, 0
      %vm1873 = vcmp.eq.s32.totalorder %v1855, 0
      %vm1874 = vcmp.eq.s32.totalorder %v1858, 0
      %vm1875 = vcmp.eq.s32.totalorder %v1861, 0
      %vm1876 = vcmp.eq.s32.totalorder %v1864, 0
      %vm1877 = vcmp.eq.s32.totalorder %v1867, 0
      %vm1878 = vcmp.eq.s32.totalorder %v1870, 0
      %vm1879 = vcmp.eq.s32.totalorder %v1849, 7
      %vm1880 = vcmp.eq.s32.totalorder %v1852, 7
      %vm1881 = vcmp.eq.s32.totalorder %v1855, 7
      %vm1882 = vcmp.eq.s32.totalorder %v1858, 7
      %vm1883 = vcmp.eq.s32.totalorder %v1861, 7
      %vm1884 = vcmp.eq.s32.totalorder %v1864, 7
      %vm1885 = vcmp.eq.s32.totalorder %v1867, 7
      %vm1886 = vcmp.eq.s32.totalorder %v1870, 7
      %v1887 = vld [vmem:[%s5] sm:$0x1]
      %v1889 = vlaneseq
      %v1890 = vshrl.u32 %v1889, 7
      %v1891 = vsub.s32 0, %v1890
      %v1892 = vrot.slane %v1887, %v1891
      %v1894 = vadd.f32 %v1892, 0.0
      %v1895 = vld [vmem:[#allocation3 + $0x8] sm:$0xff]
      %v1896 = vld [vmem:[#allocation3 + $0x10] sm:$0xff]
      %v1897 = vld [vmem:[#allocation3 + $0x18] sm:$0xff]
      %v1898 = vld [vmem:[#allocation3 + $0x20] sm:$0xff]
      %v1899 = vld [vmem:[#allocation3 + $0x28] sm:$0xff]
      %v1900 = vld [vmem:[#allocation3 + $0x30] sm:$0xff]
      %v1901 = vld [vmem:[#allocation3 + $0x38] sm:$0xff]
      %v1902 = vld [vmem:[#allocation3 + $0x40] sm:$0xff]
      %v1903 = vld [vmem:[#allocation3 + $0x7] sm:$0xff]
      %v1904 = vld [vmem:[#allocation3 + $0xf] sm:$0xff]
      %v1905 = vld [vmem:[#allocation3 + $0x17] sm:$0xff]
      %v1906 = vld [vmem:[#allocation3 + $0x1f] sm:$0xff]
      %v1907 = vld [vmem:[#allocation3 + $0x27] sm:$0xff]
      %v1908 = vld [vmem:[#allocation3 + $0x2f] sm:$0xff]
      %v1909 = vld [vmem:[#allocation3 + $0x37] sm:$0xff]
      %v1910 = vld [vmem:[#allocation3 + $0x3f] sm:$0xff]
      %v1911 = vld [vmem:[#allocation3 + $0x9] sm:$0xff]
      %v1912 = vld [vmem:[#allocation3 + $0x11] sm:$0xff]
      %v1913 = vld [vmem:[#allocation3 + $0x19] sm:$0xff]
      %v1914 = vld [vmem:[#allocation3 + $0x21] sm:$0xff]
      %v1915 = vld [vmem:[#allocation3 + $0x29] sm:$0xff]
      %v1916 = vld [vmem:[#allocation3 + $0x31] sm:$0xff]
      %v1917 = vld [vmem:[#allocation3 + $0x39] sm:$0xff]
      %v1918 = vld [vmem:[#allocation3 + $0x41] sm:$0xff]
      %v1919 = vsel %vm1871, %v1895, %v1903
      %v1920 = vsel %vm1872, %v1896, %v1904
      %v1921 = vsel %vm1873, %v1897, %v1905
      %v1922 = vsel %vm1874, %v1898, %v1906
      %v1923 = vsel %vm1875, %v1899, %v1907
      %v1924 = vsel %vm1876, %v1900, %v1908
      %v1925 = vsel %vm1877, %v1901, %v1909
      %v1926 = vsel %vm1878, %v1902, %v1910
      %v1927 = vsel %vm1879, %v1895, %v1911
      %v1928 = vsel %vm1880, %v1896, %v1912
      %v1929 = vsel %vm1881, %v1897, %v1913
      %v1930 = vsel %vm1882, %v1898, %v1914
      %v1931 = vsel %vm1883, %v1899, %v1915
      %v1932 = vsel %vm1884, %v1900, %v1916
      %v1933 = vsel %vm1885, %v1901, %v1917
      %v1934 = vsel %vm1886, %v1902, %v1918
      %v1935 = vld [vmem:[%s4] sm:$0xff]
      %v1937 = vsel %vm1816, %v1919, 0
      %v1940 = vsel %vm1816, %v1920, 0
      %v1943 = vsel %vm1816, %v1921, 0
      %v1946 = vsel %vm1816, %v1922, 0
      %v1949 = vsel %vm1816, %v1923, 0
      %v1952 = vsel %vm1816, %v1924, 0
      %v1955 = vsel %vm1816, %v1925, 0
      %v1958 = vsel %vm1816, %v1926, 0
      %1960 = vmatprep.subr.mxu0 0.0
      %1961 = vmatpush1.msra.mxu0 %v1935
      %1962 = vmatprep.subr.mxu0 0.0
      %1963 = vmatpush1.msra.mxu0 0.0
      %1964 = vmatprep.subr.mxu0 0.0
      %1965 = vmatpush1.msra.mxu0 0.0
      %1966 = vmatprep.subr.mxu0 0.0
      %1967 = vmatpush1.msra.mxu0 0.0
      %1968 = vmatprep.subr.mxu0 0.0
      %1969 = vmatpush1.msra.mxu0 0.0
      %1970 = vmatprep.subr.mxu0 0.0
      %1971 = vmatpush1.msra.mxu0 0.0
      %1972 = vmatprep.subr.mxu0 0.0
      %1973 = vmatpush1.msra.mxu0 0.0
      %1974 = vmatprep.subr.mxu0 0.0
      %1975 = vmatpush1.msra.mxu0 0.0
      %1976 = vmatprep.subr.mxu0 0.0
      %1977 = vmatpush1.msra.mxu0 0.0
      %1978 = vmatprep.subr.mxu0 0.0
      %1979 = vmatpush1.msra.mxu0 0.0
      %1980 = vmatprep.subr.mxu0 0.0
      %1981 = vmatpush1.msra.mxu0 0.0
      %1982 = vmatprep.subr.mxu0 0.0
      %1983 = vmatpush1.msra.mxu0 0.0
      %1984 = vmatprep.subr.mxu0 0.0
      %1985 = vmatpush1.msra.mxu0 0.0
      %1986 = vmatprep.subr.mxu0 0.0
      %1987 = vmatpush1.msra.mxu0 0.0
      %1988 = vmatprep.subr.mxu0 0.0
      %1989 = vmatpush1.msra.mxu0 0.0
      %1990 = vmatprep.subr.mxu0 0.0
      %1991 = vmatpush1.msra.mxu0 0.0
      %1992 = vmatprep.subr.mxu0 0.0
      %1993 = vmatpush1.msra.mxu0 0.0
      %1994 = vmatprep.subr.mxu0 0.0
      %1995 = vmatpush1.msra.mxu0 0.0
      %1996 = vmatprep.subr.mxu0 0.0
      %1997 = vmatpush1.msra.mxu0 0.0
      %1998 = vmatprep.subr.mxu0 0.0
      %1999 = vmatpush1.msra.mxu0 0.0
      %2000 = vmatprep.subr.mxu0 0.0
      %2001 = vmatpush1.msra.mxu0 0.0
      %2002 = vmatprep.subr.mxu0 0.0
      %2003 = vmatpush1.msra.mxu0 0.0
      %2004 = vmatprep.subr.mxu0 0.0
      %2005 = vmatpush1.msra.mxu0 0.0
      %2006 = vmatprep.subr.mxu0 0.0
      %2007 = vmatpush1.msra.mxu0 0.0
      %2008 = vmatprep.subr.mxu0 0.0
      %2009 = vmatpush1.msra.mxu0 0.0
      %2010 = vmatprep.subr.mxu0 0.0
      %2011 = vmatpush1.msra.mxu0 0.0
      %2012 = vmatprep.subr.mxu0 0.0
      %2013 = vmatpush1.msra.mxu0 0.0
      %2014 = vmatprep.subr.mxu0 0.0
      %2015 = vmatpush1.msra.mxu0 0.0
      %2016 = vmatprep.subr.mxu0 0.0
      %2017 = vmatpush1.msra.mxu0 0.0
      %2018 = vmatprep.subr.mxu0 0.0
      %2019 = vmatpush1.msra.mxu0 0.0
      %2020 = vmatprep.subr.mxu0 0.0
      %2021 = vmatpush1.msra.mxu0 0.0
      %2022 = vmatprep.subr.mxu0 0.0
      %2023 = vmatpush1.msra.mxu0 0.0
      %2024 = vmatprep.mubr.f32.mxu0 0.0
      %2025 = vmatmul.mubr.f32.gmra.mrb[0].mxu0 %v1937
      %v2026 = vpop.f32.mrb[0].mxu0
      %v2027 = vadd.f32 0.0, %v2026
      %v2028 = vpop.f32.mrb[0].mxu0
      %2029 = vmatprep.mubr.f32.mxu0 0.0
      %2030 = vmatmul.mubr.f32.gmra.mrb[0].mxu0 %v1940
      %v2031 = vpop.f32.mrb[0].mxu0
      %v2032 = vadd.f32 0.0, %v2031
      %v2033 = vpop.f32.mrb[0].mxu0
      %2034 = vmatprep.mubr.f32.mxu0 0.0
      %2035 = vmatmul.mubr.f32.gmra.mrb[0].mxu0 %v1943
      %v2036 = vpop.f32.mrb[0].mxu0
      %v2037 = vadd.f32 0.0, %v2036
      %v2038 = vpop.f32.mrb[0].mxu0
      %2039 = vmatprep.mubr.f32.mxu0 0.0
      %2040 = vmatmul.mubr.f32.gmra.mrb[0].mxu0 %v1946
      %v2041 = vpop.f32.mrb[0].mxu0
      %v2042 = vadd.f32 0.0, %v2041
      %v2043 = vpop.f32.mrb[0].mxu0
      %2044 = vmatprep.mubr.f32.mxu0 0.0
      %2045 = vmatmul.mubr.f32.gmra.mrb[0].mxu0 %v1949
      %v2046 = vpop.f32.mrb[0].mxu0
      %v2047 = vadd.f32 0.0, %v2046
      %v2048 = vpop.f32.mrb[0].mxu0
      %2049 = vmatprep.mubr.f32.mxu0 0.0
      %2050 = vmatmul.mubr.f32.gmra.mrb[0].mxu0 %v1952
      %v2051 = vpop.f32.mrb[0].mxu0
      %v2052 = vadd.f32 0.0, %v2051
      %v2053 = vpop.f32.mrb[0].mxu0
      %2054 = vmatprep.mubr.f32.mxu0 0.0
      %2055 = vmatmul.mubr.f32.gmra.mrb[0].mxu0 %v1955
      %v2056 = vpop.f32.mrb[0].mxu0
      %v2057 = vadd.f32 0.0, %v2056
      %v2058 = vpop.f32.mrb[0].mxu0
      %2059 = vmatprep.mubr.f32.mxu0 0.0
      %2060 = vmatmul.mubr.f32.gmra.mrb[0].mxu0 %v1958
      %v2061 = vpop.f32.mrb[0].mxu0
      %v2062 = vadd.f32 0.0, %v2061
      %v2063 = vpop.f32.mrb[0].mxu0
      %2064 = vdwg.mxu0
      %v2065 = vadd.f32 %v1894, %v2027
      %v2066 = vadd.f32 %v1894, %v2032
      %v2067 = vadd.f32 %v1894, %v2037
      %v2068 = vadd.f32 %v1894, %v2042
      %v2069 = vadd.f32 %v1894, %v2047
      %v2070 = vadd.f32 %v1894, %v2052
      %v2071 = vadd.f32 %v1894, %v2057
      %v2072 = vadd.f32 %v1894, %v2062
      %s2073 = scalar_lea.vmem %s4, 8
      %v2074 = vld [vmem:[%s2073] sm:$0xff]
      %v2076 = vsel %vm1816, %v1895, 0
      %v2079 = vsel %vm1816, %v1896, 0
      %v2082 = vsel %vm1816, %v1897, 0
      %v2085 = vsel %vm1816, %v1898, 0
      %v2088 = vsel %vm1816, %v1899, 0
      %v2091 = vsel %vm1816, %v1900, 0
      %v2094 = vsel %vm1816, %v1901, 0
      %v2097 = vsel %vm1816, %v1902, 0
      %2099 = vmatprep.subr.mxu0 0.0
      %2100 = vmatpush1.msra.mxu0 %v2074
      %2101 = vmatprep.subr.mxu0 0.0
      %2102 = vmatpush1.msra.mxu0 0.0
      %2103 = vmatprep.subr.mxu0 0.0
      %2104 = vmatpush1.msra.mxu0 0.0
      %2105 = vmatprep.subr.mxu0 0.0
      %2106 = vmatpush1.msra.mxu0 0.0
      %2107 = vmatprep.subr.mxu0 0.0
      %2108 = vmatpush1.msra.mxu0 0.0
      %2109 = vmatprep.subr.mxu0 0.0
      %2110 = vmatpush1.msra.mxu0 0.0
      %2111 = vmatprep.subr.mxu0 0.0
      %2112 = vmatpush1.msra.mxu0 0.0
      %2113 = vmatprep.subr.mxu0 0.0
      %2114 = vmatpush1.msra.mxu0 0.0
      %2115 = vmatprep.subr.mxu0 0.0
      %2116 = vmatpush1.msra.mxu0 0.0
      %2117 = vmatprep.subr.mxu0 0.0
      %2118 = vmatpush1.msra.mxu0 0.0
      %2119 = vmatprep.subr.mxu0 0.0
      %2120 = vmatpush1.msra.mxu0 0.0
      %2121 = vmatprep.subr.mxu0 0.0
      %2122 = vmatpush1.msra.mxu0 0.0
      %2123 = vmatprep.subr.mxu0 0.0
      %2124 = vmatpush1.msra.mxu0 0.0
      %2125 = vmatprep.subr.mxu0 0.0
      %2126 = vmatpush1.msra.mxu0 0.0
      %2127 = vmatprep.subr.mxu0 0.0
      %2128 = vmatpush1.msra.mxu0 0.0
      %2129 = vmatprep.subr.mxu0 0.0
      %2130 = vmatpush1.msra.mxu0 0.0
      %2131 = vmatprep.subr.mxu0 0.0
      %2132 = vmatpush1.msra.mxu0 0.0
      %2133 = vmatprep.subr.mxu0 0.0
      %2134 = vmatpush1.msra.mxu0 0.0
      %2135 = vmatprep.subr.mxu0 0.0
      %2136 = vmatpush1.msra.mxu0 0.0
      %2137 = vmatprep.subr.mxu0 0.0
      %2138 = vmatpush1.msra.mxu0 0.0
      %2139 = vmatprep.subr.mxu0 0.0
      %2140 = vmatpush1.msra.mxu0 0.0
      %2141 = vmatprep.subr.mxu0 0.0
      %2142 = vmatpush1.msra.mxu0 0.0
      %2143 = vmatprep.subr.mxu0 0.0
      %2144 = vmatpush1.msra.mxu0 0.0
      %2145 = vmatprep.subr.mxu0 0.0
      %2146 = vmatpush1.msra.mxu0 0.0
      %2147 = vmatprep.subr.mxu0 0.0
      %2148 = vmatpush1.msra.mxu0 0.0
      %2149 = vmatprep.subr.mxu0 0.0
      %2150 = vmatpush1.msra.mxu0 0.0
      %2151 = vmatprep.subr.mxu0 0.0
      %2152 = vmatpush1.msra.mxu0 0.0
      %2153 = vmatprep.subr.mxu0 0.0
      %2154 = vmatpush1.msra.mxu0 0.0
      %2155 = vmatprep.subr.mxu0 0.0
      %2156 = vmatpush1.msra.mxu0 0.0
      %2157 = vmatprep.subr.mxu0 0.0
      %2158 = vmatpush1.msra.mxu0 0.0
      %2159 = vmatprep.subr.mxu0 0.0
      %2160 = vmatpush1.msra.mxu0 0.0
      %2161 = vmatprep.subr.mxu0 0.0
      %2162 = vmatpush1.msra.mxu0 0.0
      %2163 = vmatprep.mubr.f32.mxu0 0.0
      %2164 = vmatmul.mubr.f32.gmra.mrb[0].mxu0 %v2076
      %v2165 = vpop.f32.mrb[0].mxu0
      %v2166 = vadd.f32 0.0, %v2165
      %v2167 = vpop.f32.mrb[0].mxu0
      %2168 = vmatprep.mubr.f32.mxu0 0.0
      %2169 = vmatmul.mubr.f32.gmra.mrb[0].mxu0 %v2079
      %v2170 = vpop.f32.mrb[0].mxu0
      %v2171 = vadd.f32 0.0, %v2170
      %v2172 = vpop.f32.mrb[0].mxu0
      %2173 = vmatprep.mubr.f32.mxu0 0.0
      %2174 = vmatmul.mubr.f32.gmra.mrb[0].mxu0 %v2082
      %v2175 = vpop.f32.mrb[0].mxu0
      %v2176 = vadd.f32 0.0, %v2175
      %v2177 = vpop.f32.mrb[0].mxu0
      %2178 = vmatprep.mubr.f32.mxu0 0.0
      %2179 = vmatmul.mubr.f32.gmra.mrb[0].mxu0 %v2085
      %v2180 = vpop.f32.mrb[0].mxu0
      %v2181 = vadd.f32 0.0, %v2180
      %v2182 = vpop.f32.mrb[0].mxu0
      %2183 = vmatprep.mubr.f32.mxu0 0.0
      %2184 = vmatmul.mubr.f32.gmra.mrb[0].mxu0 %v2088
      %v2185 = vpop.f32.mrb[0].mxu0
      %v2186 = vadd.f32 0.0, %v2185
      %v2187 = vpop.f32.mrb[0].mxu0
      %2188 = vmatprep.mubr.f32.mxu0 0.0
      %2189 = vmatmul.mubr.f32.gmra.mrb[0].mxu0 %v2091
      %v2190 = vpop.f32.mrb[0].mxu0
      %v2191 = vadd.f32 0.0, %v2190
      %v2192 = vpop.f32.mrb[0].mxu0
      %2193 = vmatprep.mubr.f32.mxu0 0.0
      %2194 = vmatmul.mubr.f32.gmra.mrb[0].mxu0 %v2094
      %v2195 = vpop.f32.mrb[0].mxu0
      %v2196 = vadd.f32 0.0, %v2195
      %v2197 = vpop.f32.mrb[0].mxu0
      %2198 = vmatprep.mubr.f32.mxu0 0.0
      %2199 = vmatmul.mubr.f32.gmra.mrb[0].mxu0 %v2097
      %v2200 = vpop.f32.mrb[0].mxu0
      %v2201 = vadd.f32 0.0, %v2200
      %v2202 = vpop.f32.mrb[0].mxu0
      %2203 = vdwg.mxu0
      %v2204 = vadd.f32 %v2065, %v2166
      %v2205 = vadd.f32 %v2066, %v2171
      %v2206 = vadd.f32 %v2067, %v2176
      %v2207 = vadd.f32 %v2068, %v2181
      %v2208 = vadd.f32 %v2069, %v2186
      %v2209 = vadd.f32 %v2070, %v2191
      %v2210 = vadd.f32 %v2071, %v2196
      %v2211 = vadd.f32 %v2072, %v2201
      %s2212 = scalar_lea.vmem %s4, 16
      %v2213 = vld [vmem:[%s2212] sm:$0xff]
      %v2215 = vsel %vm1816, %v1927, 0
      %v2218 = vsel %vm1816, %v1928, 0
      %v2221 = vsel %vm1816, %v1929, 0
      %v2224 = vsel %vm1816, %v1930, 0
      %v2227 = vsel %vm1816, %v1931, 0
      %v2230 = vsel %vm1816, %v1932, 0
      %v2233 = vsel %vm1816, %v1933, 0
      %v2236 = vsel %vm1816, %v1934, 0
      %2238 = vmatprep.subr.mxu0 0.0
      %2239 = vmatpush1.msra.mxu0 %v2213
      %2240 = vmatprep.subr.mxu0 0.0
      %2241 = vmatpush1.msra.mxu0 0.0
      %2242 = vmatprep.subr.mxu0 0.0
      %2243 = vmatpush1.msra.mxu0 0.0
      %2244 = vmatprep.subr.mxu0 0.0
      %2245 = vmatpush1.msra.mxu0 0.0
      %2246 = vmatprep.subr.mxu0 0.0
      %2247 = vmatpush1.msra.mxu0 0.0
      %2248 = vmatprep.subr.mxu0 0.0
      %2249 = vmatpush1.msra.mxu0 0.0
      %2250 = vmatprep.subr.mxu0 0.0
      %2251 = vmatpush1.msra.mxu0 0.0
      %2252 = vmatprep.subr.mxu0 0.0
      %2253 = vmatpush1.msra.mxu0 0.0
      %2254 = vmatprep.subr.mxu0 0.0
      %2255 = vmatpush1.msra.mxu0 0.0
      %2256 = vmatprep.subr.mxu0 0.0
      %2257 = vmatpush1.msra.mxu0 0.0
      %2258 = vmatprep.subr.mxu0 0.0
      %2259 = vmatpush1.msra.mxu0 0.0
      %2260 = vmatprep.subr.mxu0 0.0
      %2261 = vmatpush1.msra.mxu0 0.0
      %2262 = vmatprep.subr.mxu0 0.0
      %2263 = vmatpush1.msra.mxu0 0.0
      %2264 = vmatprep.subr.mxu0 0.0
      %2265 = vmatpush1.msra.mxu0 0.0
      %2266 = vmatprep.subr.mxu0 0.0
      %2267 = vmatpush1.msra.mxu0 0.0
      %2268 = vmatprep.subr.mxu0 0.0
      %2269 = vmatpush1.msra.mxu0 0.0
      %2270 = vmatprep.subr.mxu0 0.0
      %2271 = vmatpush1.msra.mxu0 0.0
      %2272 = vmatprep.subr.mxu0 0.0
      %2273 = vmatpush1.msra.mxu0 0.0
      %2274 = vmatprep.subr.mxu0 0.0
      %2275 = vmatpush1.msra.mxu0 0.0
      %2276 = vmatprep.subr.mxu0 0.0
      %2277 = vmatpush1.msra.mxu0 0.0
      %2278 = vmatprep.subr.mxu0 0.0
      %2279 = vmatpush1.msra.mxu0 0.0
      %2280 = vmatprep.subr.mxu0 0.0
      %2281 = vmatpush1.msra.mxu0 0.0
      %2282 = vmatprep.subr.mxu0 0.0
      %2283 = vmatpush1.msra.mxu0 0.0
      %2284 = vmatprep.subr.mxu0 0.0
      %2285 = vmatpush1.msra.mxu0 0.0
      %2286 = vmatprep.subr.mxu0 0.0
      %2287 = vmatpush1.msra.mxu0 0.0
      %2288 = vmatprep.subr.mxu0 0.0
      %2289 = vmatpush1.msra.mxu0 0.0
      %2290 = vmatprep.subr.mxu0 0.0
      %2291 = vmatpush1.msra.mxu0 0.0
      %2292 = vmatprep.subr.mxu0 0.0
      %2293 = vmatpush1.msra.mxu0 0.0
      %2294 = vmatprep.subr.mxu0 0.0
      %2295 = vmatpush1.msra.mxu0 0.0
      %2296 = vmatprep.subr.mxu0 0.0
      %2297 = vmatpush1.msra.mxu0 0.0
      %2298 = vmatprep.subr.mxu0 0.0
      %2299 = vmatpush1.msra.mxu0 0.0
      %2300 = vmatprep.subr.mxu0 0.0
      %2301 = vmatpush1.msra.mxu0 0.0
      %2302 = vmatprep.mubr.f32.mxu0 0.0
      %2303 = vmatmul.mubr.f32.gmra.mrb[0].mxu0 %v2215
      %v2304 = vpop.f32.mrb[0].mxu0
      %v2305 = vadd.f32 0.0, %v2304
      %v2306 = vpop.f32.mrb[0].mxu0
      %2307 = vmatprep.mubr.f32.mxu0 0.0
      %2308 = vmatmul.mubr.f32.gmra.mrb[0].mxu0 %v2218
      %v2309 = vpop.f32.mrb[0].mxu0
      %v2310 = vadd.f32 0.0, %v2309
      %v2311 = vpop.f32.mrb[0].mxu0
      %2312 = vmatprep.mubr.f32.mxu0 0.0
      %2313 = vmatmul.mubr.f32.gmra.mrb[0].mxu0 %v2221
      %v2314 = vpop.f32.mrb[0].mxu0
      %v2315 = vadd.f32 0.0, %v2314
      %v2316 = vpop.f32.mrb[0].mxu0
      %2317 = vmatprep.mubr.f32.mxu0 0.0
      %2318 = vmatmul.mubr.f32.gmra.mrb[0].mxu0 %v2224
      %v2319 = vpop.f32.mrb[0].mxu0
      %v2320 = vadd.f32 0.0, %v2319
      %v2321 = vpop.f32.mrb[0].mxu0
      %2322 = vmatprep.mubr.f32.mxu0 0.0
      %2323 = vmatmul.mubr.f32.gmra.mrb[0].mxu0 %v2227
      %v2324 = vpop.f32.mrb[0].mxu0
      %v2325 = vadd.f32 0.0, %v2324
      %v2326 = vpop.f32.mrb[0].mxu0
      %2327 = vmatprep.mubr.f32.mxu0 0.0
      %2328 = vmatmul.mubr.f32.gmra.mrb[0].mxu0 %v2230
      %v2329 = vpop.f32.mrb[0].mxu0
      %v2330 = vadd.f32 0.0, %v2329
      %v2331 = vpop.f32.mrb[0].mxu0
      %2332 = vmatprep.mubr.f32.mxu0 0.0
      %2333 = vmatmul.mubr.f32.gmra.mrb[0].mxu0 %v2233
      %v2334 = vpop.f32.mrb[0].mxu0
      %v2335 = vadd.f32 0.0, %v2334
      %v2336 = vpop.f32.mrb[0].mxu0
      %2337 = vmatprep.mubr.f32.mxu0 0.0
      %2338 = vmatmul.mubr.f32.gmra.mrb[0].mxu0 %v2236
      %v2339 = vpop.f32.mrb[0].mxu0
      %v2340 = vadd.f32 0.0, %v2339
      %v2341 = vpop.f32.mrb[0].mxu0
      %2342 = vdwg.mxu0
      %v2343 = vadd.f32 %v2204, %v2305
      %v2344 = vadd.f32 %v2205, %v2310
      %v2345 = vadd.f32 %v2206, %v2315
      %v2346 = vadd.f32 %v2207, %v2320
      %v2347 = vadd.f32 %v2208, %v2325
      %v2348 = vadd.f32 %v2209, %v2330
      %v2349 = vadd.f32 %v2210, %v2335
      %v2350 = vadd.f32 %v2211, %v2340
      %v2351 = vld [vmem:[#allocation3 + $0x10] sm:$0xff]
      %v2352 = vld [vmem:[#allocation3 + $0x18] sm:$0xff]
      %v2353 = vld [vmem:[#allocation3 + $0x20] sm:$0xff]
      %v2354 = vld [vmem:[#allocation3 + $0x28] sm:$0xff]
      %v2355 = vld [vmem:[#allocation3 + $0x30] sm:$0xff]
      %v2356 = vld [vmem:[#allocation3 + $0x38] sm:$0xff]
      %v2357 = vld [vmem:[#allocation3 + $0x40] sm:$0xff]
      %v2358 = vld [vmem:[#allocation3 + $0x48] sm:$0xff]
      %v2359 = vld [vmem:[#allocation3 + $0xf] sm:$0xff]
      %v2360 = vld [vmem:[#allocation3 + $0x17] sm:$0xff]
      %v2361 = vld [vmem:[#allocation3 + $0x1f] sm:$0xff]
      %v2362 = vld [vmem:[#allocation3 + $0x27] sm:$0xff]
      %v2363 = vld [vmem:[#allocation3 + $0x2f] sm:$0xff]
      %v2364 = vld [vmem:[#allocation3 + $0x37] sm:$0xff]
      %v2365 = vld [vmem:[#allocation3 + $0x3f] sm:$0xff]
      %v2366 = vld [vmem:[#allocation3 + $0x47] sm:$0xff]
      %v2367 = vld [vmem:[#allocation3 + $0x11] sm:$0xff]
      %v2368 = vld [vmem:[#allocation3 + $0x19] sm:$0xff]
      %v2369 = vld [vmem:[#allocation3 + $0x21] sm:$0xff]
      %v2370 = vld [vmem:[#allocation3 + $0x29] sm:$0xff]
      %v2371 = vld [vmem:[#allocation3 + $0x31] sm:$0xff]
      %v2372 = vld [vmem:[#allocation3 + $0x39] sm:$0xff]
      %v2373 = vld [vmem:[#allocation3 + $0x41] sm:$0xff]
      %v2374 = vld [vmem:[#allocation3 + $0x49] sm:$0xff]
      %v2375 = vsel %vm1871, %v2351, %v2359
      %v2376 = vsel %vm1872, %v2352, %v2360
      %v2377 = vsel %vm1873, %v2353, %v2361
      %v2378 = vsel %vm1874, %v2354, %v2362
      %v2379 = vsel %vm1875, %v2355, %v2363
      %v2380 = vsel %vm1876, %v2356, %v2364
      %v2381 = vsel %vm1877, %v2357, %v2365
      %v2382 = vsel %vm1878, %v2358, %v2366
      %v2383 = vsel %vm1879, %v2351, %v2367
      %v2384 = vsel %vm1880, %v2352, %v2368
      %v2385 = vsel %vm1881, %v2353, %v2369
      %v2386 = vsel %vm1882, %v2354, %v2370
      %v2387 = vsel %vm1883, %v2355, %v2371
      %v2388 = vsel %vm1884, %v2356, %v2372
      %v2389 = vsel %vm1885, %v2357, %v2373
      %v2390 = vsel %vm1886, %v2358, %v2374
      %s2391 = scalar_lea.vmem %s4, 24
      %v2392 = vld [vmem:[%s2391] sm:$0xff]
      %v2394 = vsel %vm1816, %v2375, 0
      %v2397 = vsel %vm1816, %v2376, 0
      %v2400 = vsel %vm1816, %v2377, 0
      %v2403 = vsel %vm1816, %v2378, 0
      %v2406 = vsel %vm1816, %v2379, 0
      %v2409 = vsel %vm1816, %v2380, 0
      %v2412 = vsel %vm1816, %v2381, 0
      %v2415 = vsel %vm1816, %v2382, 0
      %2417 = vmatprep.subr.mxu0 0.0
      %2418 = vmatpush1.msra.mxu0 %v2392
      %2419 = vmatprep.subr.mxu0 0.0
      %2420 = vmatpush1.msra.mxu0 0.0
      %2421 = vmatprep.subr.mxu0 0.0
      %2422 = vmatpush1.msra.mxu0 0.0
      %2423 = vmatprep.subr.mxu0 0.0
      %2424 = vmatpush1.msra.mxu0 0.0
      %2425 = vmatprep.subr.mxu0 0.0
      %2426 = vmatpush1.msra.mxu0 0.0
      %2427 = vmatprep.subr.mxu0 0.0
      %2428 = vmatpush1.msra.mxu0 0.0
      %2429 = vmatprep.subr.mxu0 0.0
      %2430 = vmatpush1.msra.mxu0 0.0
      %2431 = vmatprep.subr.mxu0 0.0
      %2432 = vmatpush1.msra.mxu0 0.0
      %2433 = vmatprep.subr.mxu0 0.0
      %2434 = vmatpush1.msra.mxu0 0.0
      %2435 = vmatprep.subr.mxu0 0.0
      %2436 = vmatpush1.msra.mxu0 0.0
      %2437 = vmatprep.subr.mxu0 0.0
      %2438 = vmatpush1.msra.mxu0 0.0
      %2439 = vmatprep.subr.mxu0 0.0
      %2440 = vmatpush1.msra.mxu0 0.0
      %2441 = vmatprep.subr.mxu0 0.0
      %2442 = vmatpush1.msra.mxu0 0.0
      %2443 = vmatprep.subr.mxu0 0.0
      %2444 = vmatpush1.msra.mxu0 0.0
      %2445 = vmatprep.subr.mxu0 0.0
      %2446 = vmatpush1.msra.mxu0 0.0
      %2447 = vmatprep.subr.mxu0 0.0
      %2448 = vmatpush1.msra.mxu0 0.0
      %2449 = vmatprep.subr.mxu0 0.0
      %2450 = vmatpush1.msra.mxu0 0.0
      %2451 = vmatprep.subr.mxu0 0.0
      %2452 = vmatpush1.msra.mxu0 0.0
      %2453 = vmatprep.subr.mxu0 0.0
      %2454 = vmatpush1.msra.mxu0 0.0
      %2455 = vmatprep.subr.mxu0 0.0
      %2456 = vmatpush1.msra.mxu0 0.0
      %2457 = vmatprep.subr.mxu0 0.0
      %2458 = vmatpush1.msra.mxu0 0.0
      %2459 = vmatprep.subr.mxu0 0.0
      %2460 = vmatpush1.msra.mxu0 0.0
      %2461 = vmatprep.subr.mxu0 0.0
      %2462 = vmatpush1.msra.mxu0 0.0
      %2463 = vmatprep.subr.mxu0 0.0
      %2464 = vmatpush1.msra.mxu0 0.0
      %2465 = vmatprep.subr.mxu0 0.0
      %2466 = vmatpush1.msra.mxu0 0.0
      %2467 = vmatprep.subr.mxu0 0.0
      %2468 = vmatpush1.msra.mxu0 0.0
      %2469 = vmatprep.subr.mxu0 0.0
      %2470 = vmatpush1.msra.mxu0 0.0
      %2471 = vmatprep.subr.mxu0 0.0
      %2472 = vmatpush1.msra.mxu0 0.0
      %2473 = vmatprep.subr.mxu0 0.0
      %2474 = vmatpush1.msra.mxu0 0.0
      %2475 = vmatprep.subr.mxu0 0.0
      %2476 = vmatpush1.msra.mxu0 0.0
      %2477 = vmatprep.subr.mxu0 0.0
      %2478 = vmatpush1.msra.mxu0 0.0
      %2479 = vmatprep.subr.mxu0 0.0
      %2480 = vmatpush1.msra.mxu0 0.0
      %2481 = vmatprep.mubr.f32.mxu0 0.0
      %2482 = vmatmul.mubr.f32.gmra.mrb[0].mxu0 %v2394
      %v2483 = vpop.f32.mrb[0].mxu0
      %v2484 = vadd.f32 0.0, %v2483
      %v2485 = vpop.f32.mrb[0].mxu0
      %2486 = vmatprep.mubr.f32.mxu0 0.0
      %2487 = vmatmul.mubr.f32.gmra.mrb[0].mxu0 %v2397
      %v2488 = vpop.f32.mrb[0].mxu0
      %v2489 = vadd.f32 0.0, %v2488
      %v2490 = vpop.f32.mrb[0].mxu0
      %2491 = vmatprep.mubr.f32.mxu0 0.0
      %2492 = vmatmul.mubr.f32.gmra.mrb[0].mxu0 %v2400
      %v2493 = vpop.f32.mrb[0].mxu0
      %v2494 = vadd.f32 0.0, %v2493
      %v2495 = vpop.f32.mrb[0].mxu0
      %2496 = vmatprep.mubr.f32.mxu0 0.0
      %2497 = vmatmul.mubr.f32.gmra.mrb[0].mxu0 %v2403
      %v2498 = vpop.f32.mrb[0].mxu0
      %v2499 = vadd.f32 0.0, %v2498
      %v2500 = vpop.f32.mrb[0].mxu0
      %2501 = vmatprep.mubr.f32.mxu0 0.0
      %2502 = vmatmul.mubr.f32.gmra.mrb[0].mxu0 %v2406
      %v2503 = vpop.f32.mrb[0].mxu0
      %v2504 = vadd.f32 0.0, %v2503
      %v2505 = vpop.f32.mrb[0].mxu0
      %2506 = vmatprep.mubr.f32.mxu0 0.0
      %2507 = vmatmul.mubr.f32.gmra.mrb[0].mxu0 %v2409
      %v2508 = vpop.f32.mrb[0].mxu0
      %v2509 = vadd.f32 0.0, %v2508
      %v2510 = vpop.f32.mrb[0].mxu0
      %2511 = vmatprep.mubr.f32.mxu0 0.0
      %2512 = vmatmul.mubr.f32.gmra.mrb[0].mxu0 %v2412
      %v2513 = vpop.f32.mrb[0].mxu0
      %v2514 = vadd.f32 0.0, %v2513
      %v2515 = vpop.f32.mrb[0].mxu0
      %2516 = vmatprep.mubr.f32.mxu0 0.0
      %2517 = vmatmul.mubr.f32.gmra.mrb[0].mxu0 %v2415
      %v2518 = vpop.f32.mrb[0].mxu0
      %v2519 = vadd.f32 0.0, %v2518
      %v2520 = vpop.f32.mrb[0].mxu0
      %2521 = vdwg.mxu0
      %v2522 = vadd.f32 %v2343, %v2484
      %v2523 = vadd.f32 %v2344, %v2489
      %v2524 = vadd.f32 %v2345, %v2494
      %v2525 = vadd.f32 %v2346, %v2499
      %v2526 = vadd.f32 %v2347, %v2504
      %v2527 = vadd.f32 %v2348, %v2509
      %v2528 = vadd.f32 %v2349, %v2514
      %v2529 = vadd.f32 %v2350, %v2519
      %s2530 = scalar_lea.vmem %s4, 32
      %v2531 = vld [vmem:[%s2530] sm:$0xff]
      %v2533 = vsel %vm1816, %v2351, 0
      %v2536 = vsel %vm1816, %v2352, 0
      %v2539 = vsel %vm1816, %v2353, 0
      %v2542 = vsel %vm1816, %v2354, 0
      %v2545 = vsel %vm1816, %v2355, 0
      %v2548 = vsel %vm1816, %v2356, 0
      %v2551 = vsel %vm1816, %v2357, 0
      %v2554 = vsel %vm1816, %v2358, 0
      %2556 = vmatprep.subr.mxu0 0.0
      %2557 = vmatpush1.msra.mxu0 %v2531
      %2558 = vmatprep.subr.mxu0 0.0
      %2559 = vmatpush1.msra.mxu0 0.0
      %2560 = vmatprep.subr.mxu0 0.0
      %2561 = vmatpush1.msra.mxu0 0.0
      %2562 = vmatprep.subr.mxu0 0.0
      %2563 = vmatpush1.msra.mxu0 0.0
      %2564 = vmatprep.subr.mxu0 0.0
      %2565 = vmatpush1.msra.mxu0 0.0
      %2566 = vmatprep.subr.mxu0 0.0
      %2567 = vmatpush1.msra.mxu0 0.0
      %2568 = vmatprep.subr.mxu0 0.0
      %2569 = vmatpush1.msra.mxu0 0.0
      %2570 = vmatprep.subr.mxu0 0.0
      %2571 = vmatpush1.msra.mxu0 0.0
      %2572 = vmatprep.subr.mxu0 0.0
      %2573 = vmatpush1.msra.mxu0 0.0
      %2574 = vmatprep.subr.mxu0 0.0
      %2575 = vmatpush1.msra.mxu0 0.0
      %2576 = vmatprep.subr.mxu0 0.0
      %2577 = vmatpush1.msra.mxu0 0.0
      %2578 = vmatprep.subr.mxu0 0.0
      %2579 = vmatpush1.msra.mxu0 0.0
      %2580 = vmatprep.subr.mxu0 0.0
      %2581 = vmatpush1.msra.mxu0 0.0
      %2582 = vmatprep.subr.mxu0 0.0
      %2583 = vmatpush1.msra.mxu0 0.0
      %2584 = vmatprep.subr.mxu0 0.0
      %2585 = vmatpush1.msra.mxu0 0.0
      %2586 = vmatprep.subr.mxu0 0.0
      %2587 = vmatpush1.msra.mxu0 0.0
      %2588 = vmatprep.subr.mxu0 0.0
      %2589 = vmatpush1.msra.mxu0 0.0
      %2590 = vmatprep.subr.mxu0 0.0
      %2591 = vmatpush1.msra.mxu0 0.0
      %2592 = vmatprep.subr.mxu0 0.0
      %2593 = vmatpush1.msra.mxu0 0.0
      %2594 = vmatprep.subr.mxu0 0.0
      %2595 = vmatpush1.msra.mxu0 0.0
      %2596 = vmatprep.subr.mxu0 0.0
      %2597 = vmatpush1.msra.mxu0 0.0
      %2598 = vmatprep.subr.mxu0 0.0
      %2599 = vmatpush1.msra.mxu0 0.0
      %2600 = vmatprep.subr.mxu0 0.0
      %2601 = vmatpush1.msra.mxu0 0.0
      %2602 = vmatprep.subr.mxu0 0.0
      %2603 = vmatpush1.msra.mxu0 0.0
      %2604 = vmatprep.subr.mxu0 0.0
      %2605 = vmatpush1.msra.mxu0 0.0
      %2606 = vmatprep.subr.mxu0 0.0
      %2607 = vmatpush1.msra.mxu0 0.0
      %2608 = vmatprep.subr.mxu0 0.0
      %2609 = vmatpush1.msra.mxu0 0.0
      %2610 = vmatprep.subr.mxu0 0.0
      %2611 = vmatpush1.msra.mxu0 0.0
      %2612 = vmatprep.subr.mxu0 0.0
      %2613 = vmatpush1.msra.mxu0 0.0
      %2614 = vmatprep.subr.mxu0 0.0
      %2615 = vmatpush1.msra.mxu0 0.0
      %2616 = vmatprep.subr.mxu0 0.0
      %2617 = vmatpush1.msra.mxu0 0.0
      %2618 = vmatprep.subr.mxu0 0.0
      %2619 = vmatpush1.msra.mxu0 0.0
      %2620 = vmatprep.mubr.f32.mxu0 0.0
      %2621 = vmatmul.mubr.f32.gmra.mrb[0].mxu0 %v2533
      %v2622 = vpop.f32.mrb[0].mxu0
      %v2623 = vadd.f32 0.0, %v2622
      %v2624 = vpop.f32.mrb[0].mxu0
      %2625 = vmatprep.mubr.f32.mxu0 0.0
      %2626 = vmatmul.mubr.f32.gmra.mrb[0].mxu0 %v2536
      %v2627 = vpop.f32.mrb[0].mxu0
      %v2628 = vadd.f32 0.0, %v2627
      %v2629 = vpop.f32.mrb[0].mxu0
      %2630 = vmatprep.mubr.f32.mxu0 0.0
      %2631 = vmatmul.mubr.f32.gmra.mrb[0].mxu0 %v2539
      %v2632 = vpop.f32.mrb[0].mxu0
      %v2633 = vadd.f32 0.0, %v2632
      %v2634 = vpop.f32.mrb[0].mxu0
      %2635 = vmatprep.mubr.f32.mxu0 0.0
      %2636 = vmatmul.mubr.f32.gmra.mrb[0].mxu0 %v2542
      %v2637 = vpop.f32.mrb[0].mxu0
      %v2638 = vadd.f32 0.0, %v2637
      %v2639 = vpop.f32.mrb[0].mxu0
      %2640 = vmatprep.mubr.f32.mxu0 0.0
      %2641 = vmatmul.mubr.f32.gmra.mrb[0].mxu0 %v2545
      %v2642 = vpop.f32.mrb[0].mxu0
      %v2643 = vadd.f32 0.0, %v2642
      %v2644 = vpop.f32.mrb[0].mxu0
      %2645 = vmatprep.mubr.f32.mxu0 0.0
      %2646 = vmatmul.mubr.f32.gmra.mrb[0].mxu0 %v2548
      %v2647 = vpop.f32.mrb[0].mxu0
      %v2648 = vadd.f32 0.0, %v2647
      %v2649 = vpop.f32.mrb[0].mxu0
      %2650 = vmatprep.mubr.f32.mxu0 0.0
      %2651 = vmatmul.mubr.f32.gmra.mrb[0].mxu0 %v2551
      %v2652 = vpop.f32.mrb[0].mxu0
      %v2653 = vadd.f32 0.0, %v2652
      %v2654 = vpop.f32.mrb[0].mxu0
      %2655 = vmatprep.mubr.f32.mxu0 0.0
      %2656 = vmatmul.mubr.f32.gmra.mrb[0].mxu0 %v2554
      %v2657 = vpop.f32.mrb[0].mxu0
      %v2658 = vadd.f32 0.0, %v2657
      %v2659 = vpop.f32.mrb[0].mxu0
      %2660 = vdwg.mxu0
      %v2661 = vadd.f32 %v2522, %v2623
      %v2662 = vadd.f32 %v2523, %v2628
      %v2663 = vadd.f32 %v2524, %v2633
      %v2664 = vadd.f32 %v2525, %v2638
      %v2665 = vadd.f32 %v2526, %v2643
      %v2666 = vadd.f32 %v2527, %v2648
      %v2667 = vadd.f32 %v2528, %v2653
      %v2668 = vadd.f32 %v2529, %v2658
      %s2669 = scalar_lea.vmem %s4, 40
      %v2670 = vld [vmem:[%s2669] sm:$0xff]
      %v2672 = vsel %vm1816, %v2383, 0
      %v2675 = vsel %vm1816, %v2384, 0
      %v2678 = vsel %vm1816, %v2385, 0
      %v2681 = vsel %vm1816, %v2386, 0
      %v2684 = vsel %vm1816, %v2387, 0
      %v2687 = vsel %vm1816, %v2388, 0
      %v2690 = vsel %vm1816, %v2389, 0
      %v2693 = vsel %vm1816, %v2390, 0
      %2695 = vmatprep.subr.mxu0 0.0
      %2696 = vmatpush1.msra.mxu0 %v2670
      %2697 = vmatprep.subr.mxu0 0.0
      %2698 = vmatpush1.msra.mxu0 0.0
      %2699 = vmatprep.subr.mxu0 0.0
      %2700 = vmatpush1.msra.mxu0 0.0
      %2701 = vmatprep.subr.mxu0 0.0
      %2702 = vmatpush1.msra.mxu0 0.0
      %2703 = vmatprep.subr.mxu0 0.0
      %2704 = vmatpush1.msra.mxu0 0.0
      %2705 = vmatprep.subr.mxu0 0.0
      %2706 = vmatpush1.msra.mxu0 0.0
      %2707 = vmatprep.subr.mxu0 0.0
      %2708 = vmatpush1.msra.mxu0 0.0
      %2709 = vmatprep.subr.mxu0 0.0
      %2710 = vmatpush1.msra.mxu0 0.0
      %2711 = vmatprep.subr.mxu0 0.0
      %2712 = vmatpush1.msra.mxu0 0.0
      %2713 = vmatprep.subr.mxu0 0.0
      %2714 = vmatpush1.msra.mxu0 0.0
      %2715 = vmatprep.subr.mxu0 0.0
      %2716 = vmatpush1.msra.mxu0 0.0
      %2717 = vmatprep.subr.mxu0 0.0
      %2718 = vmatpush1.msra.mxu0 0.0
      %2719 = vmatprep.subr.mxu0 0.0
      %2720 = vmatpush1.msra.mxu0 0.0
      %2721 = vmatprep.subr.mxu0 0.0
      %2722 = vmatpush1.msra.mxu0 0.0
      %2723 = vmatprep.subr.mxu0 0.0
      %2724 = vmatpush1.msra.mxu0 0.0
      %2725 = vmatprep.subr.mxu0 0.0
      %2726 = vmatpush1.msra.mxu0 0.0
      %2727 = vmatprep.subr.mxu0 0.0
      %2728 = vmatpush1.msra.mxu0 0.0
      %2729 = vmatprep.subr.mxu0 0.0
      %2730 = vmatpush1.msra.mxu0 0.0
      %2731 = vmatprep.subr.mxu0 0.0
      %2732 = vmatpush1.msra.mxu0 0.0
      %2733 = vmatprep.subr.mxu0 0.0
      %2734 = vmatpush1.msra.mxu0 0.0
      %2735 = vmatprep.subr.mxu0 0.0
      %2736 = vmatpush1.msra.mxu0 0.0
      %2737 = vmatprep.subr.mxu0 0.0
      %2738 = vmatpush1.msra.mxu0 0.0
      %2739 = vmatprep.subr.mxu0 0.0
      %2740 = vmatpush1.msra.mxu0 0.0
      %2741 = vmatprep.subr.mxu0 0.0
      %2742 = vmatpush1.msra.mxu0 0.0
      %2743 = vmatprep.subr.mxu0 0.0
      %2744 = vmatpush1.msra.mxu0 0.0
      %2745 = vmatprep.subr.mxu0 0.0
      %2746 = vmatpush1.msra.mxu0 0.0
      %2747 = vmatprep.subr.mxu0 0.0
      %2748 = vmatpush1.msra.mxu0 0.0
      %2749 = vmatprep.subr.mxu0 0.0
      %2750 = vmatpush1.msra.mxu0 0.0
      %2751 = vmatprep.subr.mxu0 0.0
      %2752 = vmatpush1.msra.mxu0 0.0
      %2753 = vmatprep.subr.mxu0 0.0
      %2754 = vmatpush1.msra.mxu0 0.0
      %2755 = vmatprep.subr.mxu0 0.0
      %2756 = vmatpush1.msra.mxu0 0.0
      %2757 = vmatprep.subr.mxu0 0.0
      %2758 = vmatpush1.msra.mxu0 0.0
      %2759 = vmatprep.mubr.f32.mxu0 0.0
      %2760 = vmatmul.mubr.f32.gmra.mrb[0].mxu0 %v2672
      %v2761 = vpop.f32.mrb[0].mxu0
      %v2762 = vadd.f32 0.0, %v2761
      %v2763 = vpop.f32.mrb[0].mxu0
      %2764 = vmatprep.mubr.f32.mxu0 0.0
      %2765 = vmatmul.mubr.f32.gmra.mrb[0].mxu0 %v2675
      %v2766 = vpop.f32.mrb[0].mxu0
      %v2767 = vadd.f32 0.0, %v2766
      %v2768 = vpop.f32.mrb[0].mxu0
      %2769 = vmatprep.mubr.f32.mxu0 0.0
      %2770 = vmatmul.mubr.f32.gmra.mrb[0].mxu0 %v2678
      %v2771 = vpop.f32.mrb[0].mxu0
      %v2772 = vadd.f32 0.0, %v2771
      %v2773 = vpop.f32.mrb[0].mxu0
      %2774 = vmatprep.mubr.f32.mxu0 0.0
      %2775 = vmatmul.mubr.f32.gmra.mrb[0].mxu0 %v2681
      %v2776 = vpop.f32.mrb[0].mxu0
      %v2777 = vadd.f32 0.0, %v2776
      %v2778 = vpop.f32.mrb[0].mxu0
      %2779 = vmatprep.mubr.f32.mxu0 0.0
      %2780 = vmatmul.mubr.f32.gmra.mrb[0].mxu0 %v2684
      %v2781 = vpop.f32.mrb[0].mxu0
      %v2782 = vadd.f32 0.0, %v2781
      %v2783 = vpop.f32.mrb[0].mxu0
      %2784 = vmatprep.mubr.f32.mxu0 0.0
      %2785 = vmatmul.mubr.f32.gmra.mrb[0].mxu0 %v2687
      %v2786 = vpop.f32.mrb[0].mxu0
      %v2787 = vadd.f32 0.0, %v2786
      %v2788 = vpop.f32.mrb[0].mxu0
      %2789 = vmatprep.mubr.f32.mxu0 0.0
      %2790 = vmatmul.mubr.f32.gmra.mrb[0].mxu0 %v2690
      %v2791 = vpop.f32.mrb[0].mxu0
      %v2792 = vadd.f32 0.0, %v2791
      %v2793 = vpop.f32.mrb[0].mxu0
      %2794 = vmatprep.mubr.f32.mxu0 0.0
      %2795 = vmatmul.mubr.f32.gmra.mrb[0].mxu0 %v2693
      %v2796 = vpop.f32.mrb[0].mxu0
      %v2797 = vadd.f32 0.0, %v2796
      %v2798 = vpop.f32.mrb[0].mxu0
      %2799 = vdwg.mxu0
      %v2800 = vadd.f32 %v2661, %v2762
      %v2801 = vadd.f32 %v2662, %v2767
      %v2802 = vadd.f32 %v2663, %v2772
      %v2803 = vadd.f32 %v2664, %v2777
      %v2804 = vadd.f32 %v2665, %v2782
      %v2805 = vadd.f32 %v2666, %v2787
      %v2806 = vadd.f32 %v2667, %v2792
      %v2807 = vadd.f32 %v2668, %v2797
      %v2808 = vld [vmem:[#allocation3 + $0x18] sm:$0xff]
      %v2809 = vld [vmem:[#allocation3 + $0x20] sm:$0xff]
      %v2810 = vld [vmem:[#allocation3 + $0x28] sm:$0xff]
      %v2811 = vld [vmem:[#allocation3 + $0x30] sm:$0xff]
      %v2812 = vld [vmem:[#allocation3 + $0x38] sm:$0xff]
      %v2813 = vld [vmem:[#allocation3 + $0x40] sm:$0xff]
      %v2814 = vld [vmem:[#allocation3 + $0x48] sm:$0xff]
      %v2815 = vld [vmem:[#allocation3 + $0x50] sm:$0xff]
      %v2816 = vld [vmem:[#allocation3 + $0x17] sm:$0xff]
      %v2817 = vld [vmem:[#allocation3 + $0x1f] sm:$0xff]
      %v2818 = vld [vmem:[#allocation3 + $0x27] sm:$0xff]
      %v2819 = vld [vmem:[#allocation3 + $0x2f] sm:$0xff]
      %v2820 = vld [vmem:[#allocation3 + $0x37] sm:$0xff]
      %v2821 = vld [vmem:[#allocation3 + $0x3f] sm:$0xff]
      %v2822 = vld [vmem:[#allocation3 + $0x47] sm:$0xff]
      %v2823 = vld [vmem:[#allocation3 + $0x4f] sm:$0xff]
      %v2824 = vld [vmem:[#allocation3 + $0x19] sm:$0xff]
      %v2825 = vld [vmem:[#allocation3 + $0x21] sm:$0xff]
      %v2826 = vld [vmem:[#allocation3 + $0x29] sm:$0xff]
      %v2827 = vld [vmem:[#allocation3 + $0x31] sm:$0xff]
      %v2828 = vld [vmem:[#allocation3 + $0x39] sm:$0xff]
      %v2829 = vld [vmem:[#allocation3 + $0x41] sm:$0xff]
      %v2830 = vld [vmem:[#allocation3 + $0x49] sm:$0xff]
      %v2831 = vld [vmem:[#allocation3 + $0x51] sm:$0xff]
      %v2832 = vsel %vm1871, %v2808, %v2816
      %v2833 = vsel %vm1872, %v2809, %v2817
      %v2834 = vsel %vm1873, %v2810, %v2818
      %v2835 = vsel %vm1874, %v2811, %v2819
      %v2836 = vsel %vm1875, %v2812, %v2820
      %v2837 = vsel %vm1876, %v2813, %v2821
      %v2838 = vsel %vm1877, %v2814, %v2822
      %v2839 = vsel %vm1878, %v2815, %v2823
      %v2840 = vsel %vm1879, %v2808, %v2824
      %v2841 = vsel %vm1880, %v2809, %v2825
      %v2842 = vsel %vm1881, %v2810, %v2826
      %v2843 = vsel %vm1882, %v2811, %v2827
      %v2844 = vsel %vm1883, %v2812, %v2828
      %v2845 = vsel %vm1884, %v2813, %v2829
      %v2846 = vsel %vm1885, %v2814, %v2830
      %v2847 = vsel %vm1886, %v2815, %v2831
      %s2848 = scalar_lea.vmem %s4, 48
      %v2849 = vld [vmem:[%s2848] sm:$0xff]
      %v2851 = vsel %vm1816, %v2832, 0
      %v2854 = vsel %vm1816, %v2833, 0
      %v2857 = vsel %vm1816, %v2834, 0
      %v2860 = vsel %vm1816, %v2835, 0
      %v2863 = vsel %vm1816, %v2836, 0
      %v2866 = vsel %vm1816, %v2837, 0
      %v2869 = vsel %vm1816, %v2838, 0
      %v2872 = vsel %vm1816, %v2839, 0
      %2874 = vmatprep.subr.mxu0 0.0
      %2875 = vmatpush1.msra.mxu0 %v2849
      %2876 = vmatprep.subr.mxu0 0.0
      %2877 = vmatpush1.msra.mxu0 0.0
      %2878 = vmatprep.subr.mxu0 0.0
      %2879 = vmatpush1.msra.mxu0 0.0
      %2880 = vmatprep.subr.mxu0 0.0
      %2881 = vmatpush1.msra.mxu0 0.0
      %2882 = vmatprep.subr.mxu0 0.0
      %2883 = vmatpush1.msra.mxu0 0.0
      %2884 = vmatprep.subr.mxu0 0.0
      %2885 = vmatpush1.msra.mxu0 0.0
      %2886 = vmatprep.subr.mxu0 0.0
      %2887 = vmatpush1.msra.mxu0 0.0
      %2888 = vmatprep.subr.mxu0 0.0
      %2889 = vmatpush1.msra.mxu0 0.0
      %2890 = vmatprep.subr.mxu0 0.0
      %2891 = vmatpush1.msra.mxu0 0.0
      %2892 = vmatprep.subr.mxu0 0.0
      %2893 = vmatpush1.msra.mxu0 0.0
      %2894 = vmatprep.subr.mxu0 0.0
      %2895 = vmatpush1.msra.mxu0 0.0
      %2896 = vmatprep.subr.mxu0 0.0
      %2897 = vmatpush1.msra.mxu0 0.0
      %2898 = vmatprep.subr.mxu0 0.0
      %2899 = vmatpush1.msra.mxu0 0.0
      %2900 = vmatprep.subr.mxu0 0.0
      %2901 = vmatpush1.msra.mxu0 0.0
      %2902 = vmatprep.subr.mxu0 0.0
      %2903 = vmatpush1.msra.mxu0 0.0
      %2904 = vmatprep.subr.mxu0 0.0
      %2905 = vmatpush1.msra.mxu0 0.0
      %2906 = vmatprep.subr.mxu0 0.0
      %2907 = vmatpush1.msra.mxu0 0.0
      %2908 = vmatprep.subr.mxu0 0.0
      %2909 = vmatpush1.msra.mxu0 0.0
      %2910 = vmatprep.subr.mxu0 0.0
      %2911 = vmatpush1.msra.mxu0 0.0
      %2912 = vmatprep.subr.mxu0 0.0
      %2913 = vmatpush1.msra.mxu0 0.0
      %2914 = vmatprep.subr.mxu0 0.0
      %2915 = vmatpush1.msra.mxu0 0.0
      %2916 = vmatprep.subr.mxu0 0.0
      %2917 = vmatpush1.msra.mxu0 0.0
      %2918 = vmatprep.subr.mxu0 0.0
      %2919 = vmatpush1.msra.mxu0 0.0
      %2920 = vmatprep.subr.mxu0 0.0
      %2921 = vmatpush1.msra.mxu0 0.0
      %2922 = vmatprep.subr.mxu0 0.0
      %2923 = vmatpush1.msra.mxu0 0.0
      %2924 = vmatprep.subr.mxu0 0.0
      %2925 = vmatpush1.msra.mxu0 0.0
      %2926 = vmatprep.subr.mxu0 0.0
      %2927 = vmatpush1.msra.mxu0 0.0
      %2928 = vmatprep.subr.mxu0 0.0
      %2929 = vmatpush1.msra.mxu0 0.0
      %2930 = vmatprep.subr.mxu0 0.0
      %2931 = vmatpush1.msra.mxu0 0.0
      %2932 = vmatprep.subr.mxu0 0.0
      %2933 = vmatpush1.msra.mxu0 0.0
      %2934 = vmatprep.subr.mxu0 0.0
      %2935 = vmatpush1.msra.mxu0 0.0
      %2936 = vmatprep.subr.mxu0 0.0
      %2937 = vmatpush1.msra.mxu0 0.0
      %2938 = vmatprep.mubr.f32.mxu0 0.0
      %2939 = vmatmul.mubr.f32.gmra.mrb[0].mxu0 %v2851
      %v2940 = vpop.f32.mrb[0].mxu0
      %v2941 = vadd.f32 0.0, %v2940
      %v2942 = vpop.f32.mrb[0].mxu0
      %2943 = vmatprep.mubr.f32.mxu0 0.0
      %2944 = vmatmul.mubr.f32.gmra.mrb[0].mxu0 %v2854
      %v2945 = vpop.f32.mrb[0].mxu0
      %v2946 = vadd.f32 0.0, %v2945
      %v2947 = vpop.f32.mrb[0].mxu0
      %2948 = vmatprep.mubr.f32.mxu0 0.0
      %2949 = vmatmul.mubr.f32.gmra.mrb[0].mxu0 %v2857
      %v2950 = vpop.f32.mrb[0].mxu0
      %v2951 = vadd.f32 0.0, %v2950
      %v2952 = vpop.f32.mrb[0].mxu0
      %2953 = vmatprep.mubr.f32.mxu0 0.0
      %2954 = vmatmul.mubr.f32.gmra.mrb[0].mxu0 %v2860
      %v2955 = vpop.f32.mrb[0].mxu0
      %v2956 = vadd.f32 0.0, %v2955
      %v2957 = vpop.f32.mrb[0].mxu0
      %2958 = vmatprep.mubr.f32.mxu0 0.0
      %2959 = vmatmul.mubr.f32.gmra.mrb[0].mxu0 %v2863
      %v2960 = vpop.f32.mrb[0].mxu0
      %v2961 = vadd.f32 0.0, %v2960
      %v2962 = vpop.f32.mrb[0].mxu0
      %2963 = vmatprep.mubr.f32.mxu0 0.0
      %2964 = vmatmul.mubr.f32.gmra.mrb[0].mxu0 %v2866
      %v2965 = vpop.f32.mrb[0].mxu0
      %v2966 = vadd.f32 0.0, %v2965
      %v2967 = vpop.f32.mrb[0].mxu0
      %2968 = vmatprep.mubr.f32.mxu0 0.0
      %2969 = vmatmul.mubr.f32.gmra.mrb[0].mxu0 %v2869
      %v2970 = vpop.f32.mrb[0].mxu0
      %v2971 = vadd.f32 0.0, %v2970
      %v2972 = vpop.f32.mrb[0].mxu0
      %2973 = vmatprep.mubr.f32.mxu0 0.0
      %2974 = vmatmul.mubr.f32.gmra.mrb[0].mxu0 %v2872
      %v2975 = vpop.f32.mrb[0].mxu0
      %v2976 = vadd.f32 0.0, %v2975
      %v2977 = vpop.f32.mrb[0].mxu0
      %2978 = vdwg.mxu0
      %v2979 = vadd.f32 %v2800, %v2941
      %v2980 = vadd.f32 %v2801, %v2946
      %v2981 = vadd.f32 %v2802, %v2951
      %v2982 = vadd.f32 %v2803, %v2956
      %v2983 = vadd.f32 %v2804, %v2961
      %v2984 = vadd.f32 %v2805, %v2966
      %v2985 = vadd.f32 %v2806, %v2971
      %v2986 = vadd.f32 %v2807, %v2976
      %s2987 = scalar_lea.vmem %s4, 56
      %v2988 = vld [vmem:[%s2987] sm:$0xff]
      %v2990 = vsel %vm1816, %v2808, 0
      %v2993 = vsel %vm1816, %v2809, 0
      %v2996 = vsel %vm1816, %v2810, 0
      %v2999 = vsel %vm1816, %v2811, 0
      %v3002 = vsel %vm1816, %v2812, 0
      %v3005 = vsel %vm1816, %v2813, 0
      %v3008 = vsel %vm1816, %v2814, 0
      %v3011 = vsel %vm1816, %v2815, 0
      %3013 = vmatprep.subr.mxu0 0.0
      %3014 = vmatpush1.msra.mxu0 %v2988
      %3015 = vmatprep.subr.mxu0 0.0
      %3016 = vmatpush1.msra.mxu0 0.0
      %3017 = vmatprep.subr.mxu0 0.0
      %3018 = vmatpush1.msra.mxu0 0.0
      %3019 = vmatprep.subr.mxu0 0.0
      %3020 = vmatpush1.msra.mxu0 0.0
      %3021 = vmatprep.subr.mxu0 0.0
      %3022 = vmatpush1.msra.mxu0 0.0
      %3023 = vmatprep.subr.mxu0 0.0
      %3024 = vmatpush1.msra.mxu0 0.0
      %3025 = vmatprep.subr.mxu0 0.0
      %3026 = vmatpush1.msra.mxu0 0.0
      %3027 = vmatprep.subr.mxu0 0.0
      %3028 = vmatpush1.msra.mxu0 0.0
      %3029 = vmatprep.subr.mxu0 0.0
      %3030 = vmatpush1.msra.mxu0 0.0
      %3031 = vmatprep.subr.mxu0 0.0
      %3032 = vmatpush1.msra.mxu0 0.0
      %3033 = vmatprep.subr.mxu0 0.0
      %3034 = vmatpush1.msra.mxu0 0.0
      %3035 = vmatprep.subr.mxu0 0.0
      %3036 = vmatpush1.msra.mxu0 0.0
      %3037 = vmatprep.subr.mxu0 0.0
      %3038 = vmatpush1.msra.mxu0 0.0
      %3039 = vmatprep.subr.mxu0 0.0
      %3040 = vmatpush1.msra.mxu0 0.0
      %3041 = vmatprep.subr.mxu0 0.0
      %3042 = vmatpush1.msra.mxu0 0.0
      %3043 = vmatprep.subr.mxu0 0.0
      %3044 = vmatpush1.msra.mxu0 0.0
      %3045 = vmatprep.subr.mxu0 0.0
      %3046 = vmatpush1.msra.mxu0 0.0
      %3047 = vmatprep.subr.mxu0 0.0
      %3048 = vmatpush1.msra.mxu0 0.0
      %3049 = vmatprep.subr.mxu0 0.0
      %3050 = vmatpush1.msra.mxu0 0.0
      %3051 = vmatprep.subr.mxu0 0.0
      %3052 = vmatpush1.msra.mxu0 0.0
      %3053 = vmatprep.subr.mxu0 0.0
      %3054 = vmatpush1.msra.mxu0 0.0
      %3055 = vmatprep.subr.mxu0 0.0
      %3056 = vmatpush1.msra.mxu0 0.0
      %3057 = vmatprep.subr.mxu0 0.0
      %3058 = vmatpush1.msra.mxu0 0.0
      %3059 = vmatprep.subr.mxu0 0.0
      %3060 = vmatpush1.msra.mxu0 0.0
      %3061 = vmatprep.subr.mxu0 0.0
      %3062 = vmatpush1.msra.mxu0 0.0
      %3063 = vmatprep.subr.mxu0 0.0
      %3064 = vmatpush1.msra.mxu0 0.0
      %3065 = vmatprep.subr.mxu0 0.0
      %3066 = vmatpush1.msra.mxu0 0.0
      %3067 = vmatprep.subr.mxu0 0.0
      %3068 = vmatpush1.msra.mxu0 0.0
      %3069 = vmatprep.subr.mxu0 0.0
      %3070 = vmatpush1.msra.mxu0 0.0
      %3071 = vmatprep.subr.mxu0 0.0
      %3072 = vmatpush1.msra.mxu0 0.0
      %3073 = vmatprep.subr.mxu0 0.0
      %3074 = vmatpush1.msra.mxu0 0.0
      %3075 = vmatprep.subr.mxu0 0.0
      %3076 = vmatpush1.msra.mxu0 0.0
      %3077 = vmatprep.mubr.f32.mxu0 0.0
      %3078 = vmatmul.mubr.f32.gmra.mrb[0].mxu0 %v2990
      %v3079 = vpop.f32.mrb[0].mxu0
      %v3080 = vadd.f32 0.0, %v3079
      %v3081 = vpop.f32.mrb[0].mxu0
      %3082 = vmatprep.mubr.f32.mxu0 0.0
      %3083 = vmatmul.mubr.f32.gmra.mrb[0].mxu0 %v2993
      %v3084 = vpop.f32.mrb[0].mxu0
      %v3085 = vadd.f32 0.0, %v3084
      %v3086 = vpop.f32.mrb[0].mxu0
      %3087 = vmatprep.mubr.f32.mxu0 0.0
      %3088 = vmatmul.mubr.f32.gmra.mrb[0].mxu0 %v2996
      %v3089 = vpop.f32.mrb[0].mxu0
      %v3090 = vadd.f32 0.0, %v3089
      %v3091 = vpop.f32.mrb[0].mxu0
      %3092 = vmatprep.mubr.f32.mxu0 0.0
      %3093 = vmatmul.mubr.f32.gmra.mrb[0].mxu0 %v2999
      %v3094 = vpop.f32.mrb[0].mxu0
      %v3095 = vadd.f32 0.0, %v3094
      %v3096 = vpop.f32.mrb[0].mxu0
      %3097 = vmatprep.mubr.f32.mxu0 0.0
      %3098 = vmatmul.mubr.f32.gmra.mrb[0].mxu0 %v3002
      %v3099 = vpop.f32.mrb[0].mxu0
      %v3100 = vadd.f32 0.0, %v3099
      %v3101 = vpop.f32.mrb[0].mxu0
      %3102 = vmatprep.mubr.f32.mxu0 0.0
      %3103 = vmatmul.mubr.f32.gmra.mrb[0].mxu0 %v3005
      %v3104 = vpop.f32.mrb[0].mxu0
      %v3105 = vadd.f32 0.0, %v3104
      %v3106 = vpop.f32.mrb[0].mxu0
      %3107 = vmatprep.mubr.f32.mxu0 0.0
      %3108 = vmatmul.mubr.f32.gmra.mrb[0].mxu0 %v3008
      %v3109 = vpop.f32.mrb[0].mxu0
      %v3110 = vadd.f32 0.0, %v3109
      %v3111 = vpop.f32.mrb[0].mxu0
      %3112 = vmatprep.mubr.f32.mxu0 0.0
      %3113 = vmatmul.mubr.f32.gmra.mrb[0].mxu0 %v3011
      %v3114 = vpop.f32.mrb[0].mxu0
      %v3115 = vadd.f32 0.0, %v3114
      %v3116 = vpop.f32.mrb[0].mxu0
      %3117 = vdwg.mxu0
      %v3118 = vadd.f32 %v2979, %v3080
      %v3119 = vadd.f32 %v2980, %v3085
      %v3120 = vadd.f32 %v2981, %v3090
      %v3121 = vadd.f32 %v2982, %v3095
      %v3122 = vadd.f32 %v2983, %v3100
      %v3123 = vadd.f32 %v2984, %v3105
      %v3124 = vadd.f32 %v2985, %v3110
      %v3125 = vadd.f32 %v2986, %v3115
      %s3126 = scalar_lea.vmem %s4, 64
      %v3127 = vld [vmem:[%s3126] sm:$0xff]
      %v3129 = vsel %vm1816, %v2840, 0
      %v3132 = vsel %vm1816, %v2841, 0
      %v3135 = vsel %vm1816, %v2842, 0
      %v3138 = vsel %vm1816, %v2843, 0
      %v3141 = vsel %vm1816, %v2844, 0
      %v3144 = vsel %vm1816, %v2845, 0
      %v3147 = vsel %vm1816, %v2846, 0
      %v3150 = vsel %vm1816, %v2847, 0
      %3152 = vmatprep.subr.mxu0 0.0
      %3153 = vmatpush1.msra.mxu0 %v3127
      %3154 = vmatprep.subr.mxu0 0.0
      %3155 = vmatpush1.msra.mxu0 0.0
      %3156 = vmatprep.subr.mxu0 0.0
      %3157 = vmatpush1.msra.mxu0 0.0
      %3158 = vmatprep.subr.mxu0 0.0
      %3159 = vmatpush1.msra.mxu0 0.0
      %3160 = vmatprep.subr.mxu0 0.0
      %3161 = vmatpush1.msra.mxu0 0.0
      %3162 = vmatprep.subr.mxu0 0.0
      %3163 = vmatpush1.msra.mxu0 0.0
      %3164 = vmatprep.subr.mxu0 0.0
      %3165 = vmatpush1.msra.mxu0 0.0
      %3166 = vmatprep.subr.mxu0 0.0
      %3167 = vmatpush1.msra.mxu0 0.0
      %3168 = vmatprep.subr.mxu0 0.0
      %3169 = vmatpush1.msra.mxu0 0.0
      %3170 = vmatprep.subr.mxu0 0.0
      %3171 = vmatpush1.msra.mxu0 0.0
      %3172 = vmatprep.subr.mxu0 0.0
      %3173 = vmatpush1.msra.mxu0 0.0
      %3174 = vmatprep.subr.mxu0 0.0
      %3175 = vmatpush1.msra.mxu0 0.0
      %3176 = vmatprep.subr.mxu0 0.0
      %3177 = vmatpush1.msra.mxu0 0.0
      %3178 = vmatprep.subr.mxu0 0.0
      %3179 = vmatpush1.msra.mxu0 0.0
      %3180 = vmatprep.subr.mxu0 0.0
      %3181 = vmatpush1.msra.mxu0 0.0
      %3182 = vmatprep.subr.mxu0 0.0
      %3183 = vmatpush1.msra.mxu0 0.0
      %3184 = vmatprep.subr.mxu0 0.0
      %3185 = vmatpush1.msra.mxu0 0.0
      %3186 = vmatprep.subr.mxu0 0.0
      %3187 = vmatpush1.msra.mxu0 0.0
      %3188 = vmatprep.subr.mxu0 0.0
      %3189 = vmatpush1.msra.mxu0 0.0
      %3190 = vmatprep.subr.mxu0 0.0
      %3191 = vmatpush1.msra.mxu0 0.0
      %3192 = vmatprep.subr.mxu0 0.0
      %3193 = vmatpush1.msra.mxu0 0.0
      %3194 = vmatprep.subr.mxu0 0.0
      %3195 = vmatpush1.msra.mxu0 0.0
      %3196 = vmatprep.subr.mxu0 0.0
      %3197 = vmatpush1.msra.mxu0 0.0
      %3198 = vmatprep.subr.mxu0 0.0
      %3199 = vmatpush1.msra.mxu0 0.0
      %3200 = vmatprep.subr.mxu0 0.0
      %3201 = vmatpush1.msra.mxu0 0.0
      %3202 = vmatprep.subr.mxu0 0.0
      %3203 = vmatpush1.msra.mxu0 0.0
      %3204 = vmatprep.subr.mxu0 0.0
      %3205 = vmatpush1.msra.mxu0 0.0
      %3206 = vmatprep.subr.mxu0 0.0
      %3207 = vmatpush1.msra.mxu0 0.0
      %3208 = vmatprep.subr.mxu0 0.0
      %3209 = vmatpush1.msra.mxu0 0.0
      %3210 = vmatprep.subr.mxu0 0.0
      %3211 = vmatpush1.msra.mxu0 0.0
      %3212 = vmatprep.subr.mxu0 0.0
      %3213 = vmatpush1.msra.mxu0 0.0
      %3214 = vmatprep.subr.mxu0 0.0
      %3215 = vmatpush1.msra.mxu0 0.0
      %3216 = vmatprep.mubr.f32.mxu0 0.0
      %3217 = vmatmul.mubr.f32.gmra.mrb[0].mxu0 %v3129
      %v3218 = vpop.f32.mrb[0].mxu0
      %v3219 = vadd.f32 0.0, %v3218
      %v3220 = vpop.f32.mrb[0].mxu0
      %3221 = vmatprep.mubr.f32.mxu0 0.0
      %3222 = vmatmul.mubr.f32.gmra.mrb[0].mxu0 %v3132
      %v3223 = vpop.f32.mrb[0].mxu0
      %v3224 = vadd.f32 0.0, %v3223
      %v3225 = vpop.f32.mrb[0].mxu0
      %3226 = vmatprep.mubr.f32.mxu0 0.0
      %3227 = vmatmul.mubr.f32.gmra.mrb[0].mxu0 %v3135
      %v3228 = vpop.f32.mrb[0].mxu0
      %v3229 = vadd.f32 0.0, %v3228
      %v3230 = vpop.f32.mrb[0].mxu0
      %3231 = vmatprep.mubr.f32.mxu0 0.0
      %3232 = vmatmul.mubr.f32.gmra.mrb[0].mxu0 %v3138
      %v3233 = vpop.f32.mrb[0].mxu0
      %v3234 = vadd.f32 0.0, %v3233
      %v3235 = vpop.f32.mrb[0].mxu0
      %3236 = vmatprep.mubr.f32.mxu0 0.0
      %3237 = vmatmul.mubr.f32.gmra.mrb[0].mxu0 %v3141
      %v3238 = vpop.f32.mrb[0].mxu0
      %v3239 = vadd.f32 0.0, %v3238
      %v3240 = vpop.f32.mrb[0].mxu0
      %3241 = vmatprep.mubr.f32.mxu0 0.0
      %3242 = vmatmul.mubr.f32.gmra.mrb[0].mxu0 %v3144
      %v3243 = vpop.f32.mrb[0].mxu0
      %v3244 = vadd.f32 0.0, %v3243
      %v3245 = vpop.f32.mrb[0].mxu0
      %3246 = vmatprep.mubr.f32.mxu0 0.0
      %3247 = vmatmul.mubr.f32.gmra.mrb[0].mxu0 %v3147
      %v3248 = vpop.f32.mrb[0].mxu0
      %v3249 = vadd.f32 0.0, %v3248
      %v3250 = vpop.f32.mrb[0].mxu0
      %3251 = vmatprep.mubr.f32.mxu0 0.0
      %3252 = vmatmul.mubr.f32.gmra.mrb[0].mxu0 %v3150
      %v3253 = vpop.f32.mrb[0].mxu0
      %v3254 = vadd.f32 0.0, %v3253
      %v3255 = vpop.f32.mrb[0].mxu0
      %3256 = vdwg.mxu0
      %v3257 = vadd.f32 %v3118, %v3219
      %v3258 = vadd.f32 %v3119, %v3224
      %v3259 = vadd.f32 %v3120, %v3229
      %v3260 = vadd.f32 %v3121, %v3234
      %v3261 = vadd.f32 %v3122, %v3239
      %v3262 = vadd.f32 %v3123, %v3244
      %v3263 = vadd.f32 %v3124, %v3249
      %v3264 = vadd.f32 %v3125, %v3254
      %v3265 = vmax.f32 %v3257, 0.0
      %v3266 = vmax.f32 %v3258, 0.0
      %v3267 = vmax.f32 %v3259, 0.0
      %v3268 = vmax.f32 %v3260, 0.0
      %v3269 = vmax.f32 %v3261, 0.0
      %v3270 = vmax.f32 %v3262, 0.0
      %v3271 = vmax.f32 %v3263, 0.0
      %v3272 = vmax.f32 %v3264, 0.0
      %3273 = vst.msk [vmem:[%s251] sm:$0xff] %vm1816, %v3265
      %3274 = vst.msk [vmem:[%s251 + $0x8] sm:$0xff] %vm1816, %v3266
      %3275 = vst.msk [vmem:[%s251 + $0x10] sm:$0xff] %vm1816, %v3267
      %3276 = vst.msk [vmem:[%s251 + $0x18] sm:$0xff] %vm1816, %v3268
      %3277 = vst.msk [vmem:[%s251 + $0x20] sm:$0xff] %vm1816, %v3269
      %3278 = vst.msk [vmem:[%s251 + $0x28] sm:$0xff] %vm1816, %v3270
      %3279 = vst.msk [vmem:[%s251 + $0x30] sm:$0xff] %vm1816, %v3271
      %3280 = vst.msk [vmem:[%s251 + $0x38] sm:$0xff] %vm1816, %v3272
      %p3281 = scmp.lt.s32.totalorder %s17, 1
      %s3282 = scalar_select %p3281, %s17, 1
      %s3283 = smul.addr %s3282, 8
      %s3284 = smul.addr %s3283, 8
      %s3285 = scalar_lea.vmem %s6, %s3284
      // Predicated region
      $region45: #{tpu_custom_call.1} parent=43 // pred_check
        %p3286 = pneg %p166
      $region46: #{tpu_custom_call.1} parent=43 // pred_check_branch
        %3288 = sbr.rel (%p3286) target = $region48
      $region47: #{tpu_custom_call.1} parent=43 // pred_region
        _
      $region48: #{tpu_custom_call.1} parent=43 // pred_fallthru
        _
    $region44: #{tpu_custom_call.1} parent=5 // pred_fallthru
      _
    %p3289 = scmp.le.s32.totalorder 2, %s12
    // Predicated region
    $region49: #{tpu_custom_call.1} parent=5 // pred_check
      %p3290 = pneg %p3289
    $region50: #{tpu_custom_call.1} parent=5 // pred_check_branch
      %3292 = sbr.rel (%p3290) target = $region52
    $region51: #{tpu_custom_call.1} parent=5 // pred_region
      %s3293 = ssub.s32 %s12, 2
      // Predicated region
      $region53: #{tpu_custom_call.1} parent=51 // pred_check
        %p3294 = pneg %p172
      $region54: #{tpu_custom_call.1} parent=51 // pred_check_branch
        %3296 = sbr.rel (%p3294) target = $region56
      $region55: #{tpu_custom_call.1} parent=51 // pred_region
        %p3297 = scmp.lt.s32.totalorder %s18, 1
        %s3298 = scalar_select %p3297, %s18, 1
        %s3299 = smul.addr %s3298, 8
        %s3300 = smul.addr %s3299, 8
        %s3301 = scalar_lea.vmem %s6, %s3300
      $region56: #{tpu_custom_call.1} parent=51 // pred_fallthru
        _
    $region52: #{tpu_custom_call.1} parent=5 // pred_fallthru
      _
  $region6: #{tpu_custom_call.1} parent=0 // loop_footer
    %s16 = sadd.s32 1, %s12
  $region7: #{tpu_custom_call.1} parent=0 // loop_footer_branch
    %11 = sbr.rel target = $region3
  $region8: #{tpu_custom_call.1} parent=0 // loop_exit
    _

</llo_original>
